<compile_context>
chip_gen: v6e
topology: v6e:2x2x1
jax: 0.10.0
libtpu: 0.0.40
codegen_flags: <defaults>
</compile_context>

<pallas_src>
import jax
import jax.numpy as jnp
from jax.experimental import pallas as pl
from jax.experimental.pallas import tpu as pltpu

C_HID = 32     # both conv layers have 32 output channels
KSIZE = 5      # conv kernel size (padding=2, stride=1)
LANE = 128     # TPU lane width
MAX_BB = 1024  # max batch elements (lanes) per grid step


def _cdiv(a, b):
    return -(-a // b)


def cnn_kernel(x_ref, w1_ref, b1_ref, w2_ref, b2_ref, wd_ref, bd_ref, o_ref):
    BB = x_ref.shape[1]
    t2 = w1_ref.shape[0] // (2 * C_HID)   # T // 2
    t4 = w2_ref.shape[0] // (2 * C_HID)   # T // 4

    # ---- conv1 (+bias+ReLU): one block-Toeplitz MXU matmul, batch on lanes.
    h1 = jnp.dot(w1_ref[...], x_ref[...], preferred_element_type=jnp.float32)
    h1 = jnp.maximum(h1 + b1_ref[...], 0.0)                         # (T*32, BB)

    # maxpool(kernel=2, stride=2) over time == elementwise max of the even/odd
    # 32-row channel slabs; fused on values, no scratch round trip.
    h1 = h1.reshape(t2, 2 * C_HID, BB)
    p1 = jnp.maximum(h1[:, :C_HID, :], h1[:, C_HID:, :]).reshape(t2 * C_HID, BB)
    # Dropout(p=0.4): identity in eval mode.

    # ---- conv2 (+bias+ReLU): block-Toeplitz matmul (K = T2*32).
    h2 = jnp.dot(w2_ref[...], p1, preferred_element_type=jnp.float32)
    h2 = jnp.maximum(h2 + b2_ref[...], 0.0)                          # (T2*32, BB)

    h2 = h2.reshape(t4, 2 * C_HID, BB)
    p2 = jnp.maximum(h2[:, :C_HID, :], h2[:, C_HID:, :]).reshape(t4 * C_HID, BB)
    # Dropout(p=0.4): identity in eval mode.

    # ---- dense + numerically-stable sigmoid, lane-dense (1, BB) output row.
    logit = jnp.dot(wd_ref[...], p2, preferred_element_type=jnp.float32)
    logit = logit + bd_ref[...]
    ez = jnp.exp(-jnp.abs(logit))
    o_ref[...] = jnp.where(logit >= 0.0, 1.0 / (1.0 + ez), ez / (1.0 + ez))


def _toeplitz_conv_weight(w, t_len):
    """w: (C_out, C_in, K) conv1d weight -> (t_len*C_out, t_len*C_in) block-banded
    matrix M with M[t*C_out+co, s*C_in+ci] = w[co, ci, s-t+pad] (zero outside band),
    matching 'same' padding cross-correlation (PyTorch Conv1d, padding=(K-1)//2)."""
    c_out, c_in, k = w.shape
    pad = (k - 1) // 2
    t = jnp.arange(t_len)
    tap = t[None, :] - t[:, None] + pad                     # (t_out, t_in)
    valid = (tap >= 0) & (tap < k)
    wk = jnp.transpose(w, (2, 0, 1))                        # (K, C_out, C_in)
    g = wk[jnp.clip(tap, 0, k - 1)]                         # (t_out, t_in, C_out, C_in)
    g = jnp.where(valid[:, :, None, None], g, 0.0)
    return jnp.transpose(g, (0, 2, 1, 3)).reshape(t_len * c_out, t_len * c_in)


@jax.jit
def cnn_forward(x, w1, b1, w2, b2, wd, bd):
    """x: (B, time, features) float32.  Returns (B, 1) sigmoid outputs."""
    B, T, F = x.shape
    T2, T4 = T // 2, T // 4

    # ---- parameter re-layout (wrapper-side, done once per compile).
    w1t = _toeplitz_conv_weight(w1.astype(jnp.float32), T)           # (T*32,  T*F)
    w2t = _toeplitz_conv_weight(w2.astype(jnp.float32), T2)          # (T2*32, T2*32)
    b1r = jnp.tile(b1.astype(jnp.float32), T).reshape(T * C_HID, 1)  # row t*32+c -> b1[c]
    b2r = jnp.tile(b2.astype(jnp.float32), T2).reshape(T2 * C_HID, 1)
    # torch flatten is channel-major: flat[c*T4 + t]; our rows are t*32 + c.
    wdr = wd.astype(jnp.float32).reshape(C_HID, T4).T.reshape(1, T4 * C_HID)
    bdr = bd.astype(jnp.float32).reshape(1, 1)

    # ---- input re-layout: (B, T, F) -> (T*F, B) with batch on the lane axis.
    xf = jnp.transpose(x.astype(jnp.float32), (1, 2, 0)).reshape(T * F, B)

    # ---- batch blocking: lane-dense blocks of BB images.
    nblk = _cdiv(B, MAX_BB)
    if B > LANE:
        nblk = max(nblk, 2)            # give v7x's second TensorCore work
    BB = _cdiv(_cdiv(B, nblk), LANE) * LANE
    Bp = BB * nblk
    if Bp > B:
        xf = jnp.pad(xf, ((0, 0), (0, Bp - B)))

    out = pl.pallas_call(
        cnn_kernel,
        out_shape=jax.ShapeDtypeStruct((1, Bp), jnp.float32),
        grid_spec=pltpu.PrefetchScalarGridSpec(
            num_scalar_prefetch=0,
            grid=(nblk,),
            in_specs=[
                pl.BlockSpec((T * F, BB), lambda i: (0, i)),            # x block
                pl.BlockSpec((T * C_HID, T * F), lambda i: (0, 0)),     # conv1 Toeplitz
                pl.BlockSpec((T * C_HID, 1), lambda i: (0, 0)),         # b1 rows
                pl.BlockSpec((T2 * C_HID, T2 * C_HID), lambda i: (0, 0)),  # conv2 Toeplitz
                pl.BlockSpec((T2 * C_HID, 1), lambda i: (0, 0)),        # b2 rows
                pl.BlockSpec((1, T4 * C_HID), lambda i: (0, 0)),        # dense weight
                pl.BlockSpec((1, 1), lambda i: (0, 0)),                 # dense bias
            ],
            out_specs=pl.BlockSpec((1, BB), lambda i: (0, i)),
        ),
        compiler_params=pltpu.CompilerParams(
            dimension_semantics=("parallel",),
            vmem_limit_bytes=32 << 20),
    )(xf, w1t, b1r, w2t, b2r, wdr, bdr)

    return out[0, :B].reshape(B, 1)


def ref_forward(x, w1, b1, w2, b2, wd, bd):
    """Pure-JAX reference matching the PyTorch module (eval mode)."""
    xt = jnp.transpose(x, (0, 2, 1))  # (B, F, T) == NCL
    dn1 = jax.lax.conv_dimension_numbers(xt.shape, w1.shape, ("NCH", "OIH", "NCH"))
    h = jax.lax.conv_general_dilated(xt, w1, (1,), ((2, 2),), dimension_numbers=dn1)
    h = jnp.maximum(h + b1[None, :, None], 0.0)
    B, C, T = h.shape
    h = h.reshape(B, C, T // 2, 2).max(axis=-1)
    dn2 = jax.lax.conv_dimension_numbers(h.shape, w2.shape, ("NCH", "OIH", "NCH"))
    g = jax.lax.conv_general_dilated(h, w2, (1,), ((2, 2),), dimension_numbers=dn2)
    g = jnp.maximum(g + b2[None, :, None], 0.0)
    g = g.reshape(B, C, g.shape[-1] // 2, 2).max(axis=-1)
    flat = g.reshape(B, -1)  # channel-major flatten, like torch .view
    return jax.nn.sigmoid(flat @ wd.T + bd)


if __name__ == "__main__":
    # Small shapes consistent with the module: batch=2, features=4, time=16.
    B, TIME, FEAT = 2, 16, 4
    T4 = TIME // 4

    key = jax.random.PRNGKey(0)
    kx, k1, k2, k3, k4, k5, k6 = jax.random.split(key, 7)
    x = jax.random.normal(kx, (B, TIME, FEAT), jnp.float32)

    # Deterministic synthetic parameters (shapes from nn.Module __init__).
    w1 = 0.1 * jax.random.normal(k1, (C_HID, FEAT, KSIZE), jnp.float32)
    b1 = 0.1 * jax.random.normal(k2, (C_HID,), jnp.float32)
    w2 = 0.1 * jax.random.normal(k3, (C_HID, C_HID, KSIZE), jnp.float32)
    b2 = 0.1 * jax.random.normal(k4, (C_HID,), jnp.float32)
    wd = 0.1 * jax.random.normal(k5, (1, C_HID * T4), jnp.float32)
    bd = 0.1 * jax.random.normal(k6, (1,), jnp.float32)

    out = jax.block_until_ready(cnn_forward(x, w1, b1, w2, b2, wd, bd))
    ref = ref_forward(x, w1, b1, w2, b2, wd, bd)
    assert out.shape == (B, 1)
    assert jnp.allclose(out, ref, rtol=1e-5, atol=1e-5), (out, ref)
    print("KERNEL_OK")
</pallas_src>

<mosaic_0001>
module attributes {stable_mosaic.version = 11 : i64} {
  func.func @cnn_kernel(%arg0: i32, %arg1: memref<64x128xf32, #tpu.memory_space<vmem>>, %arg2: memref<512x64xf32, #tpu.memory_space<vmem>>, %arg3: memref<512x1xf32, #tpu.memory_space<vmem>>, %arg4: memref<256x256xf32, #tpu.memory_space<vmem>>, %arg5: memref<256x1xf32, #tpu.memory_space<vmem>>, %arg6: memref<1x128xf32, #tpu.memory_space<vmem>>, %arg7: memref<1x1xf32, #tpu.memory_space<vmem>>, %arg8: memref<1x128xf32, #tpu.memory_space<vmem>>) attributes {dimension_semantics = [#tpu.dimension_semantics<parallel>], iteration_bounds = array<i64: 1>, scalar_prefetch = 0 : i64, scratch_operands = 0 : i64, tpu.core_type = #tpu.core_type<tc>, window_params = [{transform_indices = @transform_0, window_bounds = array<i64: 64, 128>}, {pipeline_mode = #tpu.pipeline_mode<synchronous>, transform_indices = @transform_1, window_bounds = array<i64: 512, 64>}, {pipeline_mode = #tpu.pipeline_mode<synchronous>, transform_indices = @transform_2, window_bounds = array<i64: 512, 1>}, {pipeline_mode = #tpu.pipeline_mode<synchronous>, transform_indices = @transform_3, window_bounds = array<i64: 256, 256>}, {pipeline_mode = #tpu.pipeline_mode<synchronous>, transform_indices = @transform_4, window_bounds = array<i64: 256, 1>}, {pipeline_mode = #tpu.pipeline_mode<synchronous>, transform_indices = @transform_5, window_bounds = array<i64: 1, 128>}, {pipeline_mode = #tpu.pipeline_mode<synchronous>, transform_indices = @transform_6, window_bounds = array<i64: 1, 1>}, {transform_indices = @transform_7, window_bounds = array<i64: 1, 128>}]} {
    %c0 = arith.constant 0 : index
    %c0_0 = arith.constant 0 : index
    %0 = vector.load %arg2[%c0, %c0_0] : memref<512x64xf32, #tpu.memory_space<vmem>>, vector<512x64xf32>
    %c0_1 = arith.constant 0 : index
    %c0_2 = arith.constant 0 : index
    %1 = vector.load %arg1[%c0_1, %c0_2] : memref<64x128xf32, #tpu.memory_space<vmem>>, vector<64x128xf32>
    %cst = arith.constant dense<0.000000e+00> : vector<512x128xf32>
    %2 = tpu.matmul %0, %1, %cst {dimension_numbers = #tpu.dot_dimension_numbers<[1], [0], [0], [1], [0, 0, 1, 1], [], []>} : vector<512x64xf32>, vector<64x128xf32>, vector<512x128xf32> -> vector<512x128xf32>
    %c0_3 = arith.constant 0 : index
    %c0_4 = arith.constant 0 : index
    %3 = vector.load %arg3[%c0_3, %c0_4] : memref<512x1xf32, #tpu.memory_space<vmem>>, vector<512x1xf32>
    %4 = vector.broadcast %3 : vector<512x1xf32> to vector<512x128xf32>
    %5 = arith.addf %2, %4 : vector<512x128xf32>
    %cst_5 = arith.constant 0.000000e+00 : f32
    %6 = vector.broadcast %cst_5 : f32 to vector<512x128xf32>
    %7 = arith.maximumf %5, %6 : vector<512x128xf32>
    %8 = vector.shape_cast %7 : vector<512x128xf32> to vector<8x64x128xf32>
    %9 = vector.extract_strided_slice %8 {offsets = [0, 0, 0], sizes = [8, 32, 128], strides = [1, 1, 1]} : vector<8x64x128xf32> to vector<8x32x128xf32>
    %10 = vector.extract_strided_slice %8 {offsets = [0, 32, 0], sizes = [8, 32, 128], strides = [1, 1, 1]} : vector<8x64x128xf32> to vector<8x32x128xf32>
    %11 = arith.maximumf %9, %10 : vector<8x32x128xf32>
    %12 = vector.shape_cast %11 : vector<8x32x128xf32> to vector<256x128xf32>
    %c0_6 = arith.constant 0 : index
    %c0_7 = arith.constant 0 : index
    %13 = vector.load %arg4[%c0_6, %c0_7] : memref<256x256xf32, #tpu.memory_space<vmem>>, vector<256x256xf32>
    %cst_8 = arith.constant dense<0.000000e+00> : vector<256x128xf32>
    %14 = tpu.matmul %13, %12, %cst_8 {dimension_numbers = #tpu.dot_dimension_numbers<[1], [0], [0], [1], [0, 0, 1, 1], [], []>} : vector<256x256xf32>, vector<256x128xf32>, vector<256x128xf32> -> vector<256x128xf32>
    %c0_9 = arith.constant 0 : index
    %c0_10 = arith.constant 0 : index
    %15 = vector.load %arg5[%c0_9, %c0_10] : memref<256x1xf32, #tpu.memory_space<vmem>>, vector<256x1xf32>
    %16 = vector.broadcast %15 : vector<256x1xf32> to vector<256x128xf32>
    %17 = arith.addf %14, %16 : vector<256x128xf32>
    %cst_11 = arith.constant 0.000000e+00 : f32
    %18 = vector.broadcast %cst_11 : f32 to vector<256x128xf32>
    %19 = arith.maximumf %17, %18 : vector<256x128xf32>
    %20 = vector.shape_cast %19 : vector<256x128xf32> to vector<4x64x128xf32>
    %21 = vector.extract_strided_slice %20 {offsets = [0, 0, 0], sizes = [4, 32, 128], strides = [1, 1, 1]} : vector<4x64x128xf32> to vector<4x32x128xf32>
    %22 = vector.extract_strided_slice %20 {offsets = [0, 32, 0], sizes = [4, 32, 128], strides = [1, 1, 1]} : vector<4x64x128xf32> to vector<4x32x128xf32>
    %23 = arith.maximumf %21, %22 : vector<4x32x128xf32>
    %24 = vector.shape_cast %23 : vector<4x32x128xf32> to vector<128x128xf32>
    %c0_12 = arith.constant 0 : index
    %c0_13 = arith.constant 0 : index
    %25 = vector.load %arg6[%c0_12, %c0_13] : memref<1x128xf32, #tpu.memory_space<vmem>>, vector<1x128xf32>
    %cst_14 = arith.constant dense<0.000000e+00> : vector<1x128xf32>
    %26 = tpu.matmul %25, %24, %cst_14 {dimension_numbers = #tpu.dot_dimension_numbers<[1], [0], [0], [1], [0, 0, 1, 1], [], []>} : vector<1x128xf32>, vector<128x128xf32>, vector<1x128xf32> -> vector<1x128xf32>
    %c0_15 = arith.constant 0 : index
    %c0_16 = arith.constant 0 : index
    %27 = vector.load %arg7[%c0_15, %c0_16] : memref<1x1xf32, #tpu.memory_space<vmem>>, vector<1x1xf32>
    %28 = vector.broadcast %27 : vector<1x1xf32> to vector<1x128xf32>
    %29 = arith.addf %26, %28 : vector<1x128xf32>
    %30 = math.absf %29 : vector<1x128xf32>
    %cst_17 = arith.constant 0.000000e+00 : f32
    %31 = vector.broadcast %cst_17 : f32 to vector<1x128xf32>
    %32 = arith.subf %31, %30 : vector<1x128xf32>
    %33 = math.exp %32 : vector<1x128xf32>
    %cst_18 = arith.constant 0.000000e+00 : f32
    %34 = vector.broadcast %cst_18 : f32 to vector<1x128xf32>
    %35 = arith.cmpf oge, %29, %34 : vector<1x128xf32>
    %cst_19 = arith.constant 1.000000e+00 : f32
    %36 = vector.broadcast %cst_19 : f32 to vector<1x128xf32>
    %37 = arith.addf %36, %33 : vector<1x128xf32>
    %cst_20 = arith.constant 1.000000e+00 : f32
    %38 = vector.broadcast %cst_20 : f32 to vector<1x128xf32>
    %39 = arith.divf %38, %37 : vector<1x128xf32>
    %cst_21 = arith.constant 1.000000e+00 : f32
    %40 = vector.broadcast %cst_21 : f32 to vector<1x128xf32>
    %41 = arith.addf %40, %33 : vector<1x128xf32>
    %42 = arith.divf %33, %41 : vector<1x128xf32>
    %43 = arith.select %35, %39, %42 : vector<1x128xi1>, vector<1x128xf32>
    %c0_22 = arith.constant 0 : index
    %c0_23 = arith.constant 0 : index
    %44 = vector.load %arg8[%c0_22, %c0_23] : memref<1x128xf32, #tpu.memory_space<vmem>>, vector<1x128xf32>
    tpu.vector_store %arg8[%c0_22, %c0_23], %43 {strides = array<i32>} : memref<1x128xf32, #tpu.memory_space<vmem>>, vector<1x128xf32>,
    return
  }
  func.func @transform_0(%arg0: i32) -> (i32, i32) {
    %c0_i32 = arith.constant 0 : i32
    %c0_i32_0 = arith.constant 0 : i32
    return %c0_i32, %arg0 : i32, i32
  }
  func.func @transform_1(%arg0: i32) -> (i32, i32) {
    %c0_i32 = arith.constant 0 : i32
    %c0_i32_0 = arith.constant 0 : i32
    %c0_i32_1 = arith.constant 0 : i32
    return %c0_i32, %c0_i32_0 : i32, i32
  }
  func.func @transform_2(%arg0: i32) -> (i32, i32) {
    %c0_i32 = arith.constant 0 : i32
    %c0_i32_0 = arith.constant 0 : i32
    %c0_i32_1 = arith.constant 0 : i32
    return %c0_i32, %c0_i32_0 : i32, i32
  }
  func.func @transform_3(%arg0: i32) -> (i32, i32) {
    %c0_i32 = arith.constant 0 : i32
    %c0_i32_0 = arith.constant 0 : i32
    %c0_i32_1 = arith.constant 0 : i32
    return %c0_i32, %c0_i32_0 : i32, i32
  }
  func.func @transform_4(%arg0: i32) -> (i32, i32) {
    %c0_i32 = arith.constant 0 : i32
    %c0_i32_0 = arith.constant 0 : i32
    %c0_i32_1 = arith.constant 0 : i32
    return %c0_i32, %c0_i32_0 : i32, i32
  }
  func.func @transform_5(%arg0: i32) -> (i32, i32) {
    %c0_i32 = arith.constant 0 : i32
    %c0_i32_0 = arith.constant 0 : i32
    %c0_i32_1 = arith.constant 0 : i32
    return %c0_i32, %c0_i32_0 : i32, i32
  }
  func.func @transform_6(%arg0: i32) -> (i32, i32) {
    %c0_i32 = arith.constant 0 : i32
    %c0_i32_0 = arith.constant 0 : i32
    %c0_i32_1 = arith.constant 0 : i32
    return %c0_i32, %c0_i32_0 : i32, i32
  }
  func.func @transform_7(%arg0: i32) -> (i32, i32) {
    %c0_i32 = arith.constant 0 : i32
    %c0_i32_0 = arith.constant 0 : i32
    return %c0_i32, %arg0 : i32, i32
  }
}

</mosaic_0001>

<llo_original>
// kernel: tile.13
$region0: #{tile.13}
  #allocation0 [shape = 's32[1]{0}', space=sflag, size = 0x4, scoped, tag = 'scoped memory for tile.13']
  %s0 = inlined_call_operand.vmem [shape: f32[32], index: 0, kind: input, shape index: {}]
  %s1 = inlined_call_operand.vmem [shape: f32[16,32], index: 1, kind: output, shape index: {}]
  // Predicated region
  $region2: #{tile.13} parent=0 // pred_check
    _
  $region3: #{tile.13} parent=0 // pred_check_branch
    %3 = sbr.rel (0) target = $region5
  $region4: #{tile.13} parent=0 // pred_region
    _
  $region5: #{tile.13} parent=0 // pred_fallthru
    _
  %v4 = vld [vmem:[%s0] ss:$0 sm:$0xff]
  %5 = vst [vmem:[%s1] sm:$0xff] %v4
  %s6 = scalar_lea.vmem %s1, 8
  %7 = vst [vmem:[%s6] sm:$0xff] %v4

// kernel: tile.0
$region0: #{tile.0}
  %s0 = inlined_call_operand.vmem [shape: f32[16,32], index: 0, kind: input, shape index: {}]
  %s1 = inlined_call_operand.vmem [shape: f32[512,1], index: 1, kind: output, shape index: {}]
  %v2 = vld [vmem:[%s0] sm:$0xff]
  %vm3 = vcmask 7168
  %4 = vst.msk [vmem:[%s1] sm:$0x1] %vm3, %v2
  %s5 = scalar_lea.vmem %s1, 31
  %6 = vst.msk [vmem:[%s5] sm:$0x2] %vm3, %v2
  %s7 = scalar_lea.vmem %s1, 62
  %8 = vst.msk [vmem:[%s7] sm:$0x4] %vm3, %v2
  %s9 = scalar_lea.vmem %s1, 93
  %10 = vst.msk [vmem:[%s9] sm:$0x8] %vm3, %v2
  %s11 = scalar_lea.vmem %s1, 124
  %12 = vst.msk [vmem:[%s11] sm:$0x10] %vm3, %v2
  %s13 = scalar_lea.vmem %s1, 155
  %14 = vst.msk [vmem:[%s13] sm:$0x20] %vm3, %v2
  %s15 = scalar_lea.vmem %s1, 186
  %16 = vst.msk [vmem:[%s15] sm:$0x40] %vm3, %v2
  %s17 = scalar_lea.vmem %s1, 217
  %18 = vst.msk [vmem:[%s17] sm:$0x80] %vm3, %v2
  %s19 = scalar_lea.vmem %s0, 8
  %v20 = vld [vmem:[%s19] sm:$0xff]
  %vm21 = vcmask 7168
  %s22 = scalar_lea.vmem %s1, 256
  %23 = vst.msk [vmem:[%s22] sm:$0x1] %vm21, %v20
  %s24 = scalar_lea.vmem %s1, 287
  %25 = vst.msk [vmem:[%s24] sm:$0x2] %vm21, %v20
  %s26 = scalar_lea.vmem %s1, 318
  %27 = vst.msk [vmem:[%s26] sm:$0x4] %vm21, %v20
  %s28 = scalar_lea.vmem %s1, 349
  %29 = vst.msk [vmem:[%s28] sm:$0x8] %vm21, %v20
  %s30 = scalar_lea.vmem %s1, 380
  %31 = vst.msk [vmem:[%s30] sm:$0x10] %vm21, %v20
  %s32 = scalar_lea.vmem %s1, 411
  %33 = vst.msk [vmem:[%s32] sm:$0x20] %vm21, %v20
  %s34 = scalar_lea.vmem %s1, 442
  %35 = vst.msk [vmem:[%s34] sm:$0x40] %vm21, %v20
  %s36 = scalar_lea.vmem %s1, 473
  %37 = vst.msk [vmem:[%s36] sm:$0x80] %vm21, %v20
  %v38 = vld [vmem:[%s0] sm:$0xff]
  %39 = vrot.lane.b32.xlu0 %v38, 127
  %v40 = vpop.permute.xlu0 %39
  %vm41 = vcmask 7168
  %s42 = scalar_lea.vmem %s1, 1
  %43 = vst.msk [vmem:[%s42] sm:$0x1] %vm41, %v40
  %s44 = scalar_lea.vmem %s1, 32
  %45 = vst.msk [vmem:[%s44] sm:$0x2] %vm41, %v40
  %s46 = scalar_lea.vmem %s1, 63
  %47 = vst.msk [vmem:[%s46] sm:$0x4] %vm41, %v40
  %s48 = scalar_lea.vmem %s1, 94
  %49 = vst.msk [vmem:[%s48] sm:$0x8] %vm41, %v40
  %s50 = scalar_lea.vmem %s1, 125
  %51 = vst.msk [vmem:[%s50] sm:$0x10] %vm41, %v40
  %s52 = scalar_lea.vmem %s1, 156
  %53 = vst.msk [vmem:[%s52] sm:$0x20] %vm41, %v40
  %s54 = scalar_lea.vmem %s1, 187
  %55 = vst.msk [vmem:[%s54] sm:$0x40] %vm41, %v40
  %s56 = scalar_lea.vmem %s1, 218
  %57 = vst.msk [vmem:[%s56] sm:$0x80] %vm41, %v40
  %s58 = scalar_lea.vmem %s0, 8
  %v59 = vld [vmem:[%s58] sm:$0xff]
  %60 = vrot.lane.b32.xlu0 %v59, 127
  %v61 = vpop.permute.xlu0 %60
  %vm62 = vcmask 7168
  %s63 = scalar_lea.vmem %s1, 257
  %64 = vst.msk [vmem:[%s63] sm:$0x1] %vm62, %v61
  %s65 = scalar_lea.vmem %s1, 288
  %66 = vst.msk [vmem:[%s65] sm:$0x2] %vm62, %v61
  %s67 = scalar_lea.vmem %s1, 319
  %68 = vst.msk [vmem:[%s67] sm:$0x4] %vm62, %v61
  %s69 = scalar_lea.vmem %s1, 350
  %70 = vst.msk [vmem:[%s69] sm:$0x8] %vm62, %v61
  %s71 = scalar_lea.vmem %s1, 381
  %72 = vst.msk [vmem:[%s71] sm:$0x10] %vm62, %v61
  %s73 = scalar_lea.vmem %s1, 412
  %74 = vst.msk [vmem:[%s73] sm:$0x20] %vm62, %v61
  %s75 = scalar_lea.vmem %s1, 443
  %76 = vst.msk [vmem:[%s75] sm:$0x40] %vm62, %v61
  %s77 = scalar_lea.vmem %s1, 474
  %78 = vst.msk [vmem:[%s77] sm:$0x80] %vm62, %v61
  %v79 = vld [vmem:[%s0] sm:$0xff]
  %80 = vrot.lane.b32.xlu0 %v79, 126
  %v81 = vpop.permute.xlu0 %80
  %vm82 = vcmask 7168
  %s83 = scalar_lea.vmem %s1, 2
  %84 = vst.msk [vmem:[%s83] sm:$0x1] %vm82, %v81
  %s85 = scalar_lea.vmem %s1, 33
  %86 = vst.msk [vmem:[%s85] sm:$0x2] %vm82, %v81
  %s87 = scalar_lea.vmem %s1, 64
  %88 = vst.msk [vmem:[%s87] sm:$0x4] %vm82, %v81
  %s89 = scalar_lea.vmem %s1, 95
  %90 = vst.msk [vmem:[%s89] sm:$0x8] %vm82, %v81
  %s91 = scalar_lea.vmem %s1, 126
  %92 = vst.msk [vmem:[%s91] sm:$0x10] %vm82, %v81
  %s93 = scalar_lea.vmem %s1, 157
  %94 = vst.msk [vmem:[%s93] sm:$0x20] %vm82, %v81
  %s95 = scalar_lea.vmem %s1, 188
  %96 = vst.msk [vmem:[%s95] sm:$0x40] %vm82, %v81
  %s97 = scalar_lea.vmem %s1, 219
  %98 = vst.msk [vmem:[%s97] sm:$0x80] %vm82, %v81
  %s99 = scalar_lea.vmem %s0, 8
  %v100 = vld [vmem:[%s99] sm:$0xff]
  %101 = vrot.lane.b32.xlu0 %v100, 126
  %v102 = vpop.permute.xlu0 %101
  %vm103 = vcmask 7168
  %s104 = scalar_lea.vmem %s1, 258
  %105 = vst.msk [vmem:[%s104] sm:$0x1] %vm103, %v102
  %s106 = scalar_lea.vmem %s1, 289
  %107 = vst.msk [vmem:[%s106] sm:$0x2] %vm103, %v102
  %s108 = scalar_lea.vmem %s1, 320
  %109 = vst.msk [vmem:[%s108] sm:$0x4] %vm103, %v102
  %s110 = scalar_lea.vmem %s1, 351
  %111 = vst.msk [vmem:[%s110] sm:$0x8] %vm103, %v102
  %s112 = scalar_lea.vmem %s1, 382
  %113 = vst.msk [vmem:[%s112] sm:$0x10] %vm103, %v102
  %s114 = scalar_lea.vmem %s1, 413
  %115 = vst.msk [vmem:[%s114] sm:$0x20] %vm103, %v102
  %s116 = scalar_lea.vmem %s1, 444
  %117 = vst.msk [vmem:[%s116] sm:$0x40] %vm103, %v102
  %s118 = scalar_lea.vmem %s1, 475
  %119 = vst.msk [vmem:[%s118] sm:$0x80] %vm103, %v102
  %v120 = vld [vmem:[%s0] sm:$0xff]
  %121 = vrot.lane.b32.xlu0 %v120, 125
  %v122 = vpop.permute.xlu0 %121
  %vm123 = vcmask 7168
  %s124 = scalar_lea.vmem %s1, 3
  %125 = vst.msk [vmem:[%s124] sm:$0x1] %vm123, %v122
  %s126 = scalar_lea.vmem %s1, 34
  %127 = vst.msk [vmem:[%s126] sm:$0x2] %vm123, %v122
  %s128 = scalar_lea.vmem %s1, 65
  %129 = vst.msk [vmem:[%s128] sm:$0x4] %vm123, %v122
  %s130 = scalar_lea.vmem %s1, 96
  %131 = vst.msk [vmem:[%s130] sm:$0x8] %vm123, %v122
  %s132 = scalar_lea.vmem %s1, 127
  %133 = vst.msk [vmem:[%s132] sm:$0x10] %vm123, %v122
  %s134 = scalar_lea.vmem %s1, 158
  %135 = vst.msk [vmem:[%s134] sm:$0x20] %vm123, %v122
  %s136 = scalar_lea.vmem %s1, 189
  %137 = vst.msk [vmem:[%s136] sm:$0x40] %vm123, %v122
  %s138 = scalar_lea.vmem %s1, 220
  %139 = vst.msk [vmem:[%s138] sm:$0x80] %vm123, %v122
  %s140 = scalar_lea.vmem %s0, 8
  %v141 = vld [vmem:[%s140] sm:$0xff]
  %142 = vrot.lane.b32.xlu0 %v141, 125
  %v143 = vpop.permute.xlu0 %142
  %vm144 = vcmask 7168
  %s145 = scalar_lea.vmem %s1, 259
  %146 = vst.msk [vmem:[%s145] sm:$0x1] %vm144, %v143
  %s147 = scalar_lea.vmem %s1, 290
  %148 = vst.msk [vmem:[%s147] sm:$0x2] %vm144, %v143
  %s149 = scalar_lea.vmem %s1, 321
  %150 = vst.msk [vmem:[%s149] sm:$0x4] %vm144, %v143
  %s151 = scalar_lea.vmem %s1, 352
  %152 = vst.msk [vmem:[%s151] sm:$0x8] %vm144, %v143
  %s153 = scalar_lea.vmem %s1, 383
  %154 = vst.msk [vmem:[%s153] sm:$0x10] %vm144, %v143
  %s155 = scalar_lea.vmem %s1, 414
  %156 = vst.msk [vmem:[%s155] sm:$0x20] %vm144, %v143
  %s157 = scalar_lea.vmem %s1, 445
  %158 = vst.msk [vmem:[%s157] sm:$0x40] %vm144, %v143
  %s159 = scalar_lea.vmem %s1, 476
  %160 = vst.msk [vmem:[%s159] sm:$0x80] %vm144, %v143
  %v161 = vld [vmem:[%s0] sm:$0xff]
  %162 = vrot.lane.b32.xlu0 %v161, 124
  %v163 = vpop.permute.xlu0 %162
  %vm164 = vcmask 7168
  %s165 = scalar_lea.vmem %s1, 4
  %166 = vst.msk [vmem:[%s165] sm:$0x1] %vm164, %v163
  %s167 = scalar_lea.vmem %s1, 35
  %168 = vst.msk [vmem:[%s167] sm:$0x2] %vm164, %v163
  %s169 = scalar_lea.vmem %s1, 66
  %170 = vst.msk [vmem:[%s169] sm:$0x4] %vm164, %v163
  %s171 = scalar_lea.vmem %s1, 97
  %172 = vst.msk [vmem:[%s171] sm:$0x8] %vm164, %v163
  %s173 = scalar_lea.vmem %s1, 128
  %174 = vst.msk [vmem:[%s173] sm:$0x10] %vm164, %v163
  %s175 = scalar_lea.vmem %s1, 159
  %176 = vst.msk [vmem:[%s175] sm:$0x20] %vm164, %v163
  %s177 = scalar_lea.vmem %s1, 190
  %178 = vst.msk [vmem:[%s177] sm:$0x40] %vm164, %v163
  %s179 = scalar_lea.vmem %s1, 221
  %180 = vst.msk [vmem:[%s179] sm:$0x80] %vm164, %v163
  %s181 = scalar_lea.vmem %s0, 8
  %v182 = vld [vmem:[%s181] sm:$0xff]
  %183 = vrot.lane.b32.xlu0 %v182, 124
  %v184 = vpop.permute.xlu0 %183
  %vm185 = vcmask 7168
  %s186 = scalar_lea.vmem %s1, 260
  %187 = vst.msk [vmem:[%s186] sm:$0x1] %vm185, %v184
  %s188 = scalar_lea.vmem %s1, 291
  %189 = vst.msk [vmem:[%s188] sm:$0x2] %vm185, %v184
  %s190 = scalar_lea.vmem %s1, 322
  %191 = vst.msk [vmem:[%s190] sm:$0x4] %vm185, %v184
  %s192 = scalar_lea.vmem %s1, 353
  %193 = vst.msk [vmem:[%s192] sm:$0x8] %vm185, %v184
  %s194 = scalar_lea.vmem %s1, 384
  %195 = vst.msk [vmem:[%s194] sm:$0x10] %vm185, %v184
  %s196 = scalar_lea.vmem %s1, 415
  %197 = vst.msk [vmem:[%s196] sm:$0x20] %vm185, %v184
  %s198 = scalar_lea.vmem %s1, 446
  %199 = vst.msk [vmem:[%s198] sm:$0x40] %vm185, %v184
  %s200 = scalar_lea.vmem %s1, 477
  %201 = vst.msk [vmem:[%s200] sm:$0x80] %vm185, %v184
  %v202 = vld [vmem:[%s0] sm:$0xff]
  %203 = vrot.lane.b32.xlu0 %v202, 123
  %v204 = vpop.permute.xlu0 %203
  %vm205 = vcmask 7168
  %s206 = scalar_lea.vmem %s1, 5
  %207 = vst.msk [vmem:[%s206] sm:$0x1] %vm205, %v204
  %s208 = scalar_lea.vmem %s1, 36
  %209 = vst.msk [vmem:[%s208] sm:$0x2] %vm205, %v204
  %s210 = scalar_lea.vmem %s1, 67
  %211 = vst.msk [vmem:[%s210] sm:$0x4] %vm205, %v204
  %s212 = scalar_lea.vmem %s1, 98
  %213 = vst.msk [vmem:[%s212] sm:$0x8] %vm205, %v204
  %s214 = scalar_lea.vmem %s1, 129
  %215 = vst.msk [vmem:[%s214] sm:$0x10] %vm205, %v204
  %s216 = scalar_lea.vmem %s1, 160
  %217 = vst.msk [vmem:[%s216] sm:$0x20] %vm205, %v204
  %s218 = scalar_lea.vmem %s1, 191
  %219 = vst.msk [vmem:[%s218] sm:$0x40] %vm205, %v204
  %s220 = scalar_lea.vmem %s1, 222
  %221 = vst.msk [vmem:[%s220] sm:$0x80] %vm205, %v204
  %s222 = scalar_lea.vmem %s0, 8
  %v223 = vld [vmem:[%s222] sm:$0xff]
  %224 = vrot.lane.b32.xlu0 %v223, 123
  %v225 = vpop.permute.xlu0 %224
  %vm226 = vcmask 7168
  %s227 = scalar_lea.vmem %s1, 261
  %228 = vst.msk [vmem:[%s227] sm:$0x1] %vm226, %v225
  %s229 = scalar_lea.vmem %s1, 292
  %230 = vst.msk [vmem:[%s229] sm:$0x2] %vm226, %v225
  %s231 = scalar_lea.vmem %s1, 323
  %232 = vst.msk [vmem:[%s231] sm:$0x4] %vm226, %v225
  %s233 = scalar_lea.vmem %s1, 354
  %234 = vst.msk [vmem:[%s233] sm:$0x8] %vm226, %v225
  %s235 = scalar_lea.vmem %s1, 385
  %236 = vst.msk [vmem:[%s235] sm:$0x10] %vm226, %v225
  %s237 = scalar_lea.vmem %s1, 416
  %238 = vst.msk [vmem:[%s237] sm:$0x20] %vm226, %v225
  %s239 = scalar_lea.vmem %s1, 447
  %240 = vst.msk [vmem:[%s239] sm:$0x40] %vm226, %v225
  %s241 = scalar_lea.vmem %s1, 478
  %242 = vst.msk [vmem:[%s241] sm:$0x80] %vm226, %v225
  %v243 = vld [vmem:[%s0] sm:$0xff]
  %244 = vrot.lane.b32.xlu0 %v243, 122
  %v245 = vpop.permute.xlu0 %244
  %vm246 = vcmask 7168
  %s247 = scalar_lea.vmem %s1, 6
  %248 = vst.msk [vmem:[%s247] sm:$0x1] %vm246, %v245
  %s249 = scalar_lea.vmem %s1, 37
  %250 = vst.msk [vmem:[%s249] sm:$0x2] %vm246, %v245
  %s251 = scalar_lea.vmem %s1, 68
  %252 = vst.msk [vmem:[%s251] sm:$0x4] %vm246, %v245
  %s253 = scalar_lea.vmem %s1, 99
  %254 = vst.msk [vmem:[%s253] sm:$0x8] %vm246, %v245
  %s255 = scalar_lea.vmem %s1, 130
  %256 = vst.msk [vmem:[%s255] sm:$0x10] %vm246, %v245
  %s257 = scalar_lea.vmem %s1, 161
  %258 = vst.msk [vmem:[%s257] sm:$0x20] %vm246, %v245
  %s259 = scalar_lea.vmem %s1, 192
  %260 = vst.msk [vmem:[%s259] sm:$0x40] %vm246, %v245
  %s261 = scalar_lea.vmem %s1, 223
  %262 = vst.msk [vmem:[%s261] sm:$0x80] %vm246, %v245
  %s263 = scalar_lea.vmem %s0, 8
  %v264 = vld [vmem:[%s263] sm:$0xff]
  %265 = vrot.lane.b32.xlu0 %v264, 122
  %v266 = vpop.permute.xlu0 %265
  %vm267 = vcmask 7168
  %s268 = scalar_lea.vmem %s1, 262
  %269 = vst.msk [vmem:[%s268] sm:$0x1] %vm267, %v266
  %s270 = scalar_lea.vmem %s1, 293
  %271 = vst.msk [vmem:[%s270] sm:$0x2] %vm267, %v266
  %s272 = scalar_lea.vmem %s1, 324
  %273 = vst.msk [vmem:[%s272] sm:$0x4] %vm267, %v266
  %s274 = scalar_lea.vmem %s1, 355
  %275 = vst.msk [vmem:[%s274] sm:$0x8] %vm267, %v266
  %s276 = scalar_lea.vmem %s1, 386
  %277 = vst.msk [vmem:[%s276] sm:$0x10] %vm267, %v266
  %s278 = scalar_lea.vmem %s1, 417
  %279 = vst.msk [vmem:[%s278] sm:$0x20] %vm267, %v266
  %s280 = scalar_lea.vmem %s1, 448
  %281 = vst.msk [vmem:[%s280] sm:$0x40] %vm267, %v266
  %s282 = scalar_lea.vmem %s1, 479
  %283 = vst.msk [vmem:[%s282] sm:$0x80] %vm267, %v266
  %v284 = vld [vmem:[%s0] sm:$0xff]
  %285 = vrot.lane.b32.xlu0 %v284, 121
  %v286 = vpop.permute.xlu0 %285
  %vm287 = vcmask 7168
  %s288 = scalar_lea.vmem %s1, 7
  %289 = vst.msk [vmem:[%s288] sm:$0x1] %vm287, %v286
  %s290 = scalar_lea.vmem %s1, 38
  %291 = vst.msk [vmem:[%s290] sm:$0x2] %vm287, %v286
  %s292 = scalar_lea.vmem %s1, 69
  %293 = vst.msk [vmem:[%s292] sm:$0x4] %vm287, %v286
  %s294 = scalar_lea.vmem %s1, 100
  %295 = vst.msk [vmem:[%s294] sm:$0x8] %vm287, %v286
  %s296 = scalar_lea.vmem %s1, 131
  %297 = vst.msk [vmem:[%s296] sm:$0x10] %vm287, %v286
  %s298 = scalar_lea.vmem %s1, 162
  %299 = vst.msk [vmem:[%s298] sm:$0x20] %vm287, %v286
  %s300 = scalar_lea.vmem %s1, 193
  %301 = vst.msk [vmem:[%s300] sm:$0x40] %vm287, %v286
  %s302 = scalar_lea.vmem %s1, 224
  %303 = vst.msk [vmem:[%s302] sm:$0x80] %vm287, %v286
  %s304 = scalar_lea.vmem %s0, 8
  %v305 = vld [vmem:[%s304] sm:$0xff]
  %306 = vrot.lane.b32.xlu0 %v305, 121
  %v307 = vpop.permute.xlu0 %306
  %vm308 = vcmask 7168
  %s309 = scalar_lea.vmem %s1, 263
  %310 = vst.msk [vmem:[%s309] sm:$0x1] %vm308, %v307
  %s311 = scalar_lea.vmem %s1, 294
  %312 = vst.msk [vmem:[%s311] sm:$0x2] %vm308, %v307
  %s313 = scalar_lea.vmem %s1, 325
  %314 = vst.msk [vmem:[%s313] sm:$0x4] %vm308, %v307
  %s315 = scalar_lea.vmem %s1, 356
  %316 = vst.msk [vmem:[%s315] sm:$0x8] %vm308, %v307
  %s317 = scalar_lea.vmem %s1, 387
  %318 = vst.msk [vmem:[%s317] sm:$0x10] %vm308, %v307
  %s319 = scalar_lea.vmem %s1, 418
  %320 = vst.msk [vmem:[%s319] sm:$0x20] %vm308, %v307
  %s321 = scalar_lea.vmem %s1, 449
  %322 = vst.msk [vmem:[%s321] sm:$0x40] %vm308, %v307
  %s323 = scalar_lea.vmem %s1, 480
  %324 = vst.msk [vmem:[%s323] sm:$0x80] %vm308, %v307
  %v325 = vld [vmem:[%s0] sm:$0xff]
  %326 = vrot.lane.b32.xlu0 %v325, 120
  %v327 = vpop.permute.xlu0 %326
  %vm328 = vcmask 7168
  %s329 = scalar_lea.vmem %s1, 8
  %330 = vst.msk [vmem:[%s329] sm:$0x1] %vm328, %v327
  %s331 = scalar_lea.vmem %s1, 39
  %332 = vst.msk [vmem:[%s331] sm:$0x2] %vm328, %v327
  %s333 = scalar_lea.vmem %s1, 70
  %334 = vst.msk [vmem:[%s333] sm:$0x4] %vm328, %v327
  %s335 = scalar_lea.vmem %s1, 101
  %336 = vst.msk [vmem:[%s335] sm:$0x8] %vm328, %v327
  %s337 = scalar_lea.vmem %s1, 132
  %338 = vst.msk [vmem:[%s337] sm:$0x10] %vm328, %v327
  %s339 = scalar_lea.vmem %s1, 163
  %340 = vst.msk [vmem:[%s339] sm:$0x20] %vm328, %v327
  %s341 = scalar_lea.vmem %s1, 194
  %342 = vst.msk [vmem:[%s341] sm:$0x40] %vm328, %v327
  %s343 = scalar_lea.vmem %s1, 225
  %344 = vst.msk [vmem:[%s343] sm:$0x80] %vm328, %v327
  %s345 = scalar_lea.vmem %s0, 8
  %v346 = vld [vmem:[%s345] sm:$0xff]
  %347 = vrot.lane.b32.xlu0 %v346, 120
  %v348 = vpop.permute.xlu0 %347
  %vm349 = vcmask 7168
  %s350 = scalar_lea.vmem %s1, 264
  %351 = vst.msk [vmem:[%s350] sm:$0x1] %vm349, %v348
  %s352 = scalar_lea.vmem %s1, 295
  %353 = vst.msk [vmem:[%s352] sm:$0x2] %vm349, %v348
  %s354 = scalar_lea.vmem %s1, 326
  %355 = vst.msk [vmem:[%s354] sm:$0x4] %vm349, %v348
  %s356 = scalar_lea.vmem %s1, 357
  %357 = vst.msk [vmem:[%s356] sm:$0x8] %vm349, %v348
  %s358 = scalar_lea.vmem %s1, 388
  %359 = vst.msk [vmem:[%s358] sm:$0x10] %vm349, %v348
  %s360 = scalar_lea.vmem %s1, 419
  %361 = vst.msk [vmem:[%s360] sm:$0x20] %vm349, %v348
  %s362 = scalar_lea.vmem %s1, 450
  %363 = vst.msk [vmem:[%s362] sm:$0x40] %vm349, %v348
  %s364 = scalar_lea.vmem %s1, 481
  %365 = vst.msk [vmem:[%s364] sm:$0x80] %vm349, %v348
  %v366 = vld [vmem:[%s0] sm:$0xff]
  %367 = vrot.lane.b32.xlu0 %v366, 119
  %v368 = vpop.permute.xlu0 %367
  %vm369 = vcmask 7168
  %s370 = scalar_lea.vmem %s1, 9
  %371 = vst.msk [vmem:[%s370] sm:$0x1] %vm369, %v368
  %s372 = scalar_lea.vmem %s1, 40
  %373 = vst.msk [vmem:[%s372] sm:$0x2] %vm369, %v368
  %s374 = scalar_lea.vmem %s1, 71
  %375 = vst.msk [vmem:[%s374] sm:$0x4] %vm369, %v368
  %s376 = scalar_lea.vmem %s1, 102
  %377 = vst.msk [vmem:[%s376] sm:$0x8] %vm369, %v368
  %s378 = scalar_lea.vmem %s1, 133
  %379 = vst.msk [vmem:[%s378] sm:$0x10] %vm369, %v368
  %s380 = scalar_lea.vmem %s1, 164
  %381 = vst.msk [vmem:[%s380] sm:$0x20] %vm369, %v368
  %s382 = scalar_lea.vmem %s1, 195
  %383 = vst.msk [vmem:[%s382] sm:$0x40] %vm369, %v368
  %s384 = scalar_lea.vmem %s1, 226
  %385 = vst.msk [vmem:[%s384] sm:$0x80] %vm369, %v368
  %s386 = scalar_lea.vmem %s0, 8
  %v387 = vld [vmem:[%s386] sm:$0xff]
  %388 = vrot.lane.b32.xlu0 %v387, 119
  %v389 = vpop.permute.xlu0 %388
  %vm390 = vcmask 7168
  %s391 = scalar_lea.vmem %s1, 265
  %392 = vst.msk [vmem:[%s391] sm:$0x1] %vm390, %v389
  %s393 = scalar_lea.vmem %s1, 296
  %394 = vst.msk [vmem:[%s393] sm:$0x2] %vm390, %v389
  %s395 = scalar_lea.vmem %s1, 327
  %396 = vst.msk [vmem:[%s395] sm:$0x4] %vm390, %v389
  %s397 = scalar_lea.vmem %s1, 358
  %398 = vst.msk [vmem:[%s397] sm:$0x8] %vm390, %v389
  %s399 = scalar_lea.vmem %s1, 389
  %400 = vst.msk [vmem:[%s399] sm:$0x10] %vm390, %v389
  %s401 = scalar_lea.vmem %s1, 420
  %402 = vst.msk [vmem:[%s401] sm:$0x20] %vm390, %v389
  %s403 = scalar_lea.vmem %s1, 451
  %404 = vst.msk [vmem:[%s403] sm:$0x40] %vm390, %v389
  %s405 = scalar_lea.vmem %s1, 482
  %406 = vst.msk [vmem:[%s405] sm:$0x80] %vm390, %v389
  %v407 = vld [vmem:[%s0] sm:$0xff]
  %408 = vrot.lane.b32.xlu0 %v407, 118
  %v409 = vpop.permute.xlu0 %408
  %vm410 = vcmask 7168
  %s411 = scalar_lea.vmem %s1, 10
  %412 = vst.msk [vmem:[%s411] sm:$0x1] %vm410, %v409
  %s413 = scalar_lea.vmem %s1, 41
  %414 = vst.msk [vmem:[%s413] sm:$0x2] %vm410, %v409
  %s415 = scalar_lea.vmem %s1, 72
  %416 = vst.msk [vmem:[%s415] sm:$0x4] %vm410, %v409
  %s417 = scalar_lea.vmem %s1, 103
  %418 = vst.msk [vmem:[%s417] sm:$0x8] %vm410, %v409
  %s419 = scalar_lea.vmem %s1, 134
  %420 = vst.msk [vmem:[%s419] sm:$0x10] %vm410, %v409
  %s421 = scalar_lea.vmem %s1, 165
  %422 = vst.msk [vmem:[%s421] sm:$0x20] %vm410, %v409
  %s423 = scalar_lea.vmem %s1, 196
  %424 = vst.msk [vmem:[%s423] sm:$0x40] %vm410, %v409
  %s425 = scalar_lea.vmem %s1, 227
  %426 = vst.msk [vmem:[%s425] sm:$0x80] %vm410, %v409
  %s427 = scalar_lea.vmem %s0, 8
  %v428 = vld [vmem:[%s427] sm:$0xff]
  %429 = vrot.lane.b32.xlu0 %v428, 118
  %v430 = vpop.permute.xlu0 %429
  %vm431 = vcmask 7168
  %s432 = scalar_lea.vmem %s1, 266
  %433 = vst.msk [vmem:[%s432] sm:$0x1] %vm431, %v430
  %s434 = scalar_lea.vmem %s1, 297
  %435 = vst.msk [vmem:[%s434] sm:$0x2] %vm431, %v430
  %s436 = scalar_lea.vmem %s1, 328
  %437 = vst.msk [vmem:[%s436] sm:$0x4] %vm431, %v430
  %s438 = scalar_lea.vmem %s1, 359
  %439 = vst.msk [vmem:[%s438] sm:$0x8] %vm431, %v430
  %s440 = scalar_lea.vmem %s1, 390
  %441 = vst.msk [vmem:[%s440] sm:$0x10] %vm431, %v430
  %s442 = scalar_lea.vmem %s1, 421
  %443 = vst.msk [vmem:[%s442] sm:$0x20] %vm431, %v430
  %s444 = scalar_lea.vmem %s1, 452
  %445 = vst.msk [vmem:[%s444] sm:$0x40] %vm431, %v430
  %s446 = scalar_lea.vmem %s1, 483
  %447 = vst.msk [vmem:[%s446] sm:$0x80] %vm431, %v430
  %v448 = vld [vmem:[%s0] sm:$0xff]
  %449 = vrot.lane.b32.xlu0 %v448, 117
  %v450 = vpop.permute.xlu0 %449
  %vm451 = vcmask 7168
  %s452 = scalar_lea.vmem %s1, 11
  %453 = vst.msk [vmem:[%s452] sm:$0x1] %vm451, %v450
  %s454 = scalar_lea.vmem %s1, 42
  %455 = vst.msk [vmem:[%s454] sm:$0x2] %vm451, %v450
  %s456 = scalar_lea.vmem %s1, 73
  %457 = vst.msk [vmem:[%s456] sm:$0x4] %vm451, %v450
  %s458 = scalar_lea.vmem %s1, 104
  %459 = vst.msk [vmem:[%s458] sm:$0x8] %vm451, %v450
  %s460 = scalar_lea.vmem %s1, 135
  %461 = vst.msk [vmem:[%s460] sm:$0x10] %vm451, %v450
  %s462 = scalar_lea.vmem %s1, 166
  %463 = vst.msk [vmem:[%s462] sm:$0x20] %vm451, %v450
  %s464 = scalar_lea.vmem %s1, 197
  %465 = vst.msk [vmem:[%s464] sm:$0x40] %vm451, %v450
  %s466 = scalar_lea.vmem %s1, 228
  %467 = vst.msk [vmem:[%s466] sm:$0x80] %vm451, %v450
  %s468 = scalar_lea.vmem %s0, 8
  %v469 = vld [vmem:[%s468] sm:$0xff]
  %470 = vrot.lane.b32.xlu0 %v469, 117
  %v471 = vpop.permute.xlu0 %470
  %vm472 = vcmask 7168
  %s473 = scalar_lea.vmem %s1, 267
  %474 = vst.msk [vmem:[%s473] sm:$0x1] %vm472, %v471
  %s475 = scalar_lea.vmem %s1, 298
  %476 = vst.msk [vmem:[%s475] sm:$0x2] %vm472, %v471
  %s477 = scalar_lea.vmem %s1, 329
  %478 = vst.msk [vmem:[%s477] sm:$0x4] %vm472, %v471
  %s479 = scalar_lea.vmem %s1, 360
  %480 = vst.msk [vmem:[%s479] sm:$0x8] %vm472, %v471
  %s481 = scalar_lea.vmem %s1, 391
  %482 = vst.msk [vmem:[%s481] sm:$0x10] %vm472, %v471
  %s483 = scalar_lea.vmem %s1, 422
  %484 = vst.msk [vmem:[%s483] sm:$0x20] %vm472, %v471
  %s485 = scalar_lea.vmem %s1, 453
  %486 = vst.msk [vmem:[%s485] sm:$0x40] %vm472, %v471
  %s487 = scalar_lea.vmem %s1, 484
  %488 = vst.msk [vmem:[%s487] sm:$0x80] %vm472, %v471
  %v489 = vld [vmem:[%s0] sm:$0xff]
  %490 = vrot.lane.b32.xlu0 %v489, 116
  %v491 = vpop.permute.xlu0 %490
  %vm492 = vcmask 7168
  %s493 = scalar_lea.vmem %s1, 12
  %494 = vst.msk [vmem:[%s493] sm:$0x1] %vm492, %v491
  %s495 = scalar_lea.vmem %s1, 43
  %496 = vst.msk [vmem:[%s495] sm:$0x2] %vm492, %v491
  %s497 = scalar_lea.vmem %s1, 74
  %498 = vst.msk [vmem:[%s497] sm:$0x4] %vm492, %v491
  %s499 = scalar_lea.vmem %s1, 105
  %500 = vst.msk [vmem:[%s499] sm:$0x8] %vm492, %v491
  %s501 = scalar_lea.vmem %s1, 136
  %502 = vst.msk [vmem:[%s501] sm:$0x10] %vm492, %v491
  %s503 = scalar_lea.vmem %s1, 167
  %504 = vst.msk [vmem:[%s503] sm:$0x20] %vm492, %v491
  %s505 = scalar_lea.vmem %s1, 198
  %506 = vst.msk [vmem:[%s505] sm:$0x40] %vm492, %v491
  %s507 = scalar_lea.vmem %s1, 229
  %508 = vst.msk [vmem:[%s507] sm:$0x80] %vm492, %v491
  %s509 = scalar_lea.vmem %s0, 8
  %v510 = vld [vmem:[%s509] sm:$0xff]
  %511 = vrot.lane.b32.xlu0 %v510, 116
  %v512 = vpop.permute.xlu0 %511
  %vm513 = vcmask 7168
  %s514 = scalar_lea.vmem %s1, 268
  %515 = vst.msk [vmem:[%s514] sm:$0x1] %vm513, %v512
  %s516 = scalar_lea.vmem %s1, 299
  %517 = vst.msk [vmem:[%s516] sm:$0x2] %vm513, %v512
  %s518 = scalar_lea.vmem %s1, 330
  %519 = vst.msk [vmem:[%s518] sm:$0x4] %vm513, %v512
  %s520 = scalar_lea.vmem %s1, 361
  %521 = vst.msk [vmem:[%s520] sm:$0x8] %vm513, %v512
  %s522 = scalar_lea.vmem %s1, 392
  %523 = vst.msk [vmem:[%s522] sm:$0x10] %vm513, %v512
  %s524 = scalar_lea.vmem %s1, 423
  %525 = vst.msk [vmem:[%s524] sm:$0x20] %vm513, %v512
  %s526 = scalar_lea.vmem %s1, 454
  %527 = vst.msk [vmem:[%s526] sm:$0x40] %vm513, %v512
  %s528 = scalar_lea.vmem %s1, 485
  %529 = vst.msk [vmem:[%s528] sm:$0x80] %vm513, %v512
  %v530 = vld [vmem:[%s0] sm:$0xff]
  %531 = vrot.lane.b32.xlu0 %v530, 115
  %v532 = vpop.permute.xlu0 %531
  %vm533 = vcmask 7168
  %s534 = scalar_lea.vmem %s1, 13
  %535 = vst.msk [vmem:[%s534] sm:$0x1] %vm533, %v532
  %s536 = scalar_lea.vmem %s1, 44
  %537 = vst.msk [vmem:[%s536] sm:$0x2] %vm533, %v532
  %s538 = scalar_lea.vmem %s1, 75
  %539 = vst.msk [vmem:[%s538] sm:$0x4] %vm533, %v532
  %s540 = scalar_lea.vmem %s1, 106
  %541 = vst.msk [vmem:[%s540] sm:$0x8] %vm533, %v532
  %s542 = scalar_lea.vmem %s1, 137
  %543 = vst.msk [vmem:[%s542] sm:$0x10] %vm533, %v532
  %s544 = scalar_lea.vmem %s1, 168
  %545 = vst.msk [vmem:[%s544] sm:$0x20] %vm533, %v532
  %s546 = scalar_lea.vmem %s1, 199
  %547 = vst.msk [vmem:[%s546] sm:$0x40] %vm533, %v532
  %s548 = scalar_lea.vmem %s1, 230
  %549 = vst.msk [vmem:[%s548] sm:$0x80] %vm533, %v532
  %s550 = scalar_lea.vmem %s0, 8
  %v551 = vld [vmem:[%s550] sm:$0xff]
  %552 = vrot.lane.b32.xlu0 %v551, 115
  %v553 = vpop.permute.xlu0 %552
  %vm554 = vcmask 7168
  %s555 = scalar_lea.vmem %s1, 269
  %556 = vst.msk [vmem:[%s555] sm:$0x1] %vm554, %v553
  %s557 = scalar_lea.vmem %s1, 300
  %558 = vst.msk [vmem:[%s557] sm:$0x2] %vm554, %v553
  %s559 = scalar_lea.vmem %s1, 331
  %560 = vst.msk [vmem:[%s559] sm:$0x4] %vm554, %v553
  %s561 = scalar_lea.vmem %s1, 362
  %562 = vst.msk [vmem:[%s561] sm:$0x8] %vm554, %v553
  %s563 = scalar_lea.vmem %s1, 393
  %564 = vst.msk [vmem:[%s563] sm:$0x10] %vm554, %v553
  %s565 = scalar_lea.vmem %s1, 424
  %566 = vst.msk [vmem:[%s565] sm:$0x20] %vm554, %v553
  %s567 = scalar_lea.vmem %s1, 455
  %568 = vst.msk [vmem:[%s567] sm:$0x40] %vm554, %v553
  %s569 = scalar_lea.vmem %s1, 486
  %570 = vst.msk [vmem:[%s569] sm:$0x80] %vm554, %v553
  %v571 = vld [vmem:[%s0] sm:$0xff]
  %572 = vrot.lane.b32.xlu0 %v571, 114
  %v573 = vpop.permute.xlu0 %572
  %vm574 = vcmask 7168
  %s575 = scalar_lea.vmem %s1, 14
  %576 = vst.msk [vmem:[%s575] sm:$0x1] %vm574, %v573
  %s577 = scalar_lea.vmem %s1, 45
  %578 = vst.msk [vmem:[%s577] sm:$0x2] %vm574, %v573
  %s579 = scalar_lea.vmem %s1, 76
  %580 = vst.msk [vmem:[%s579] sm:$0x4] %vm574, %v573
  %s581 = scalar_lea.vmem %s1, 107
  %582 = vst.msk [vmem:[%s581] sm:$0x8] %vm574, %v573
  %s583 = scalar_lea.vmem %s1, 138
  %584 = vst.msk [vmem:[%s583] sm:$0x10] %vm574, %v573
  %s585 = scalar_lea.vmem %s1, 169
  %586 = vst.msk [vmem:[%s585] sm:$0x20] %vm574, %v573
  %s587 = scalar_lea.vmem %s1, 200
  %588 = vst.msk [vmem:[%s587] sm:$0x40] %vm574, %v573
  %s589 = scalar_lea.vmem %s1, 231
  %590 = vst.msk [vmem:[%s589] sm:$0x80] %vm574, %v573
  %s591 = scalar_lea.vmem %s0, 8
  %v592 = vld [vmem:[%s591] sm:$0xff]
  %593 = vrot.lane.b32.xlu0 %v592, 114
  %v594 = vpop.permute.xlu0 %593
  %vm595 = vcmask 7168
  %s596 = scalar_lea.vmem %s1, 270
  %597 = vst.msk [vmem:[%s596] sm:$0x1] %vm595, %v594
  %s598 = scalar_lea.vmem %s1, 301
  %599 = vst.msk [vmem:[%s598] sm:$0x2] %vm595, %v594
  %s600 = scalar_lea.vmem %s1, 332
  %601 = vst.msk [vmem:[%s600] sm:$0x4] %vm595, %v594
  %s602 = scalar_lea.vmem %s1, 363
  %603 = vst.msk [vmem:[%s602] sm:$0x8] %vm595, %v594
  %s604 = scalar_lea.vmem %s1, 394
  %605 = vst.msk [vmem:[%s604] sm:$0x10] %vm595, %v594
  %s606 = scalar_lea.vmem %s1, 425
  %607 = vst.msk [vmem:[%s606] sm:$0x20] %vm595, %v594
  %s608 = scalar_lea.vmem %s1, 456
  %609 = vst.msk [vmem:[%s608] sm:$0x40] %vm595, %v594
  %s610 = scalar_lea.vmem %s1, 487
  %611 = vst.msk [vmem:[%s610] sm:$0x80] %vm595, %v594
  %v612 = vld [vmem:[%s0] sm:$0xff]
  %613 = vrot.lane.b32.xlu0 %v612, 113
  %v614 = vpop.permute.xlu0 %613
  %vm615 = vcmask 7168
  %s616 = scalar_lea.vmem %s1, 15
  %617 = vst.msk [vmem:[%s616] sm:$0x1] %vm615, %v614
  %s618 = scalar_lea.vmem %s1, 46
  %619 = vst.msk [vmem:[%s618] sm:$0x2] %vm615, %v614
  %s620 = scalar_lea.vmem %s1, 77
  %621 = vst.msk [vmem:[%s620] sm:$0x4] %vm615, %v614
  %s622 = scalar_lea.vmem %s1, 108
  %623 = vst.msk [vmem:[%s622] sm:$0x8] %vm615, %v614
  %s624 = scalar_lea.vmem %s1, 139
  %625 = vst.msk [vmem:[%s624] sm:$0x10] %vm615, %v614
  %s626 = scalar_lea.vmem %s1, 170
  %627 = vst.msk [vmem:[%s626] sm:$0x20] %vm615, %v614
  %s628 = scalar_lea.vmem %s1, 201
  %629 = vst.msk [vmem:[%s628] sm:$0x40] %vm615, %v614
  %s630 = scalar_lea.vmem %s1, 232
  %631 = vst.msk [vmem:[%s630] sm:$0x80] %vm615, %v614
  %s632 = scalar_lea.vmem %s0, 8
  %v633 = vld [vmem:[%s632] sm:$0xff]
  %634 = vrot.lane.b32.xlu0 %v633, 113
  %v635 = vpop.permute.xlu0 %634
  %vm636 = vcmask 7168
  %s637 = scalar_lea.vmem %s1, 271
  %638 = vst.msk [vmem:[%s637] sm:$0x1] %vm636, %v635
  %s639 = scalar_lea.vmem %s1, 302
  %640 = vst.msk [vmem:[%s639] sm:$0x2] %vm636, %v635
  %s641 = scalar_lea.vmem %s1, 333
  %642 = vst.msk [vmem:[%s641] sm:$0x4] %vm636, %v635
  %s643 = scalar_lea.vmem %s1, 364
  %644 = vst.msk [vmem:[%s643] sm:$0x8] %vm636, %v635
  %s645 = scalar_lea.vmem %s1, 395
  %646 = vst.msk [vmem:[%s645] sm:$0x10] %vm636, %v635
  %s647 = scalar_lea.vmem %s1, 426
  %648 = vst.msk [vmem:[%s647] sm:$0x20] %vm636, %v635
  %s649 = scalar_lea.vmem %s1, 457
  %650 = vst.msk [vmem:[%s649] sm:$0x40] %vm636, %v635
  %s651 = scalar_lea.vmem %s1, 488
  %652 = vst.msk [vmem:[%s651] sm:$0x80] %vm636, %v635
  %v653 = vld [vmem:[%s0] sm:$0xff]
  %654 = vrot.lane.b32.xlu0 %v653, 112
  %v655 = vpop.permute.xlu0 %654
  %vm656 = vcmask 7168
  %s657 = scalar_lea.vmem %s1, 16
  %658 = vst.msk [vmem:[%s657] sm:$0x1] %vm656, %v655
  %s659 = scalar_lea.vmem %s1, 47
  %660 = vst.msk [vmem:[%s659] sm:$0x2] %vm656, %v655
  %s661 = scalar_lea.vmem %s1, 78
  %662 = vst.msk [vmem:[%s661] sm:$0x4] %vm656, %v655
  %s663 = scalar_lea.vmem %s1, 109
  %664 = vst.msk [vmem:[%s663] sm:$0x8] %vm656, %v655
  %s665 = scalar_lea.vmem %s1, 140
  %666 = vst.msk [vmem:[%s665] sm:$0x10] %vm656, %v655
  %s667 = scalar_lea.vmem %s1, 171
  %668 = vst.msk [vmem:[%s667] sm:$0x20] %vm656, %v655
  %s669 = scalar_lea.vmem %s1, 202
  %670 = vst.msk [vmem:[%s669] sm:$0x40] %vm656, %v655
  %s671 = scalar_lea.vmem %s1, 233
  %672 = vst.msk [vmem:[%s671] sm:$0x80] %vm656, %v655
  %s673 = scalar_lea.vmem %s0, 8
  %v674 = vld [vmem:[%s673] sm:$0xff]
  %675 = vrot.lane.b32.xlu0 %v674, 112
  %v676 = vpop.permute.xlu0 %675
  %vm677 = vcmask 7168
  %s678 = scalar_lea.vmem %s1, 272
  %679 = vst.msk [vmem:[%s678] sm:$0x1] %vm677, %v676
  %s680 = scalar_lea.vmem %s1, 303
  %681 = vst.msk [vmem:[%s680] sm:$0x2] %vm677, %v676
  %s682 = scalar_lea.vmem %s1, 334
  %683 = vst.msk [vmem:[%s682] sm:$0x4] %vm677, %v676
  %s684 = scalar_lea.vmem %s1, 365
  %685 = vst.msk [vmem:[%s684] sm:$0x8] %vm677, %v676
  %s686 = scalar_lea.vmem %s1, 396
  %687 = vst.msk [vmem:[%s686] sm:$0x10] %vm677, %v676
  %s688 = scalar_lea.vmem %s1, 427
  %689 = vst.msk [vmem:[%s688] sm:$0x20] %vm677, %v676
  %s690 = scalar_lea.vmem %s1, 458
  %691 = vst.msk [vmem:[%s690] sm:$0x40] %vm677, %v676
  %s692 = scalar_lea.vmem %s1, 489
  %693 = vst.msk [vmem:[%s692] sm:$0x80] %vm677, %v676
  %v694 = vld [vmem:[%s0] sm:$0xff]
  %695 = vrot.lane.b32.xlu0 %v694, 111
  %v696 = vpop.permute.xlu0 %695
  %vm697 = vcmask 7168
  %s698 = scalar_lea.vmem %s1, 17
  %699 = vst.msk [vmem:[%s698] sm:$0x1] %vm697, %v696
  %s700 = scalar_lea.vmem %s1, 48
  %701 = vst.msk [vmem:[%s700] sm:$0x2] %vm697, %v696
  %s702 = scalar_lea.vmem %s1, 79
  %703 = vst.msk [vmem:[%s702] sm:$0x4] %vm697, %v696
  %s704 = scalar_lea.vmem %s1, 110
  %705 = vst.msk [vmem:[%s704] sm:$0x8] %vm697, %v696
  %s706 = scalar_lea.vmem %s1, 141
  %707 = vst.msk [vmem:[%s706] sm:$0x10] %vm697, %v696
  %s708 = scalar_lea.vmem %s1, 172
  %709 = vst.msk [vmem:[%s708] sm:$0x20] %vm697, %v696
  %s710 = scalar_lea.vmem %s1, 203
  %711 = vst.msk [vmem:[%s710] sm:$0x40] %vm697, %v696
  %s712 = scalar_lea.vmem %s1, 234
  %713 = vst.msk [vmem:[%s712] sm:$0x80] %vm697, %v696
  %s714 = scalar_lea.vmem %s0, 8
  %v715 = vld [vmem:[%s714] sm:$0xff]
  %716 = vrot.lane.b32.xlu0 %v715, 111
  %v717 = vpop.permute.xlu0 %716
  %vm718 = vcmask 7168
  %s719 = scalar_lea.vmem %s1, 273
  %720 = vst.msk [vmem:[%s719] sm:$0x1] %vm718, %v717
  %s721 = scalar_lea.vmem %s1, 304
  %722 = vst.msk [vmem:[%s721] sm:$0x2] %vm718, %v717
  %s723 = scalar_lea.vmem %s1, 335
  %724 = vst.msk [vmem:[%s723] sm:$0x4] %vm718, %v717
  %s725 = scalar_lea.vmem %s1, 366
  %726 = vst.msk [vmem:[%s725] sm:$0x8] %vm718, %v717
  %s727 = scalar_lea.vmem %s1, 397
  %728 = vst.msk [vmem:[%s727] sm:$0x10] %vm718, %v717
  %s729 = scalar_lea.vmem %s1, 428
  %730 = vst.msk [vmem:[%s729] sm:$0x20] %vm718, %v717
  %s731 = scalar_lea.vmem %s1, 459
  %732 = vst.msk [vmem:[%s731] sm:$0x40] %vm718, %v717
  %s733 = scalar_lea.vmem %s1, 490
  %734 = vst.msk [vmem:[%s733] sm:$0x80] %vm718, %v717
  %v735 = vld [vmem:[%s0] sm:$0xff]
  %736 = vrot.lane.b32.xlu0 %v735, 110
  %v737 = vpop.permute.xlu0 %736
  %vm738 = vcmask 7168
  %s739 = scalar_lea.vmem %s1, 18
  %740 = vst.msk [vmem:[%s739] sm:$0x1] %vm738, %v737
  %s741 = scalar_lea.vmem %s1, 49
  %742 = vst.msk [vmem:[%s741] sm:$0x2] %vm738, %v737
  %s743 = scalar_lea.vmem %s1, 80
  %744 = vst.msk [vmem:[%s743] sm:$0x4] %vm738, %v737
  %s745 = scalar_lea.vmem %s1, 111
  %746 = vst.msk [vmem:[%s745] sm:$0x8] %vm738, %v737
  %s747 = scalar_lea.vmem %s1, 142
  %748 = vst.msk [vmem:[%s747] sm:$0x10] %vm738, %v737
  %s749 = scalar_lea.vmem %s1, 173
  %750 = vst.msk [vmem:[%s749] sm:$0x20] %vm738, %v737
  %s751 = scalar_lea.vmem %s1, 204
  %752 = vst.msk [vmem:[%s751] sm:$0x40] %vm738, %v737
  %s753 = scalar_lea.vmem %s1, 235
  %754 = vst.msk [vmem:[%s753] sm:$0x80] %vm738, %v737
  %s755 = scalar_lea.vmem %s0, 8
  %v756 = vld [vmem:[%s755] sm:$0xff]
  %757 = vrot.lane.b32.xlu0 %v756, 110
  %v758 = vpop.permute.xlu0 %757
  %vm759 = vcmask 7168
  %s760 = scalar_lea.vmem %s1, 274
  %761 = vst.msk [vmem:[%s760] sm:$0x1] %vm759, %v758
  %s762 = scalar_lea.vmem %s1, 305
  %763 = vst.msk [vmem:[%s762] sm:$0x2] %vm759, %v758
  %s764 = scalar_lea.vmem %s1, 336
  %765 = vst.msk [vmem:[%s764] sm:$0x4] %vm759, %v758
  %s766 = scalar_lea.vmem %s1, 367
  %767 = vst.msk [vmem:[%s766] sm:$0x8] %vm759, %v758
  %s768 = scalar_lea.vmem %s1, 398
  %769 = vst.msk [vmem:[%s768] sm:$0x10] %vm759, %v758
  %s770 = scalar_lea.vmem %s1, 429
  %771 = vst.msk [vmem:[%s770] sm:$0x20] %vm759, %v758
  %s772 = scalar_lea.vmem %s1, 460
  %773 = vst.msk [vmem:[%s772] sm:$0x40] %vm759, %v758
  %s774 = scalar_lea.vmem %s1, 491
  %775 = vst.msk [vmem:[%s774] sm:$0x80] %vm759, %v758
  %v776 = vld [vmem:[%s0] sm:$0xff]
  %777 = vrot.lane.b32.xlu0 %v776, 109
  %v778 = vpop.permute.xlu0 %777
  %vm779 = vcmask 7168
  %s780 = scalar_lea.vmem %s1, 19
  %781 = vst.msk [vmem:[%s780] sm:$0x1] %vm779, %v778
  %s782 = scalar_lea.vmem %s1, 50
  %783 = vst.msk [vmem:[%s782] sm:$0x2] %vm779, %v778
  %s784 = scalar_lea.vmem %s1, 81
  %785 = vst.msk [vmem:[%s784] sm:$0x4] %vm779, %v778
  %s786 = scalar_lea.vmem %s1, 112
  %787 = vst.msk [vmem:[%s786] sm:$0x8] %vm779, %v778
  %s788 = scalar_lea.vmem %s1, 143
  %789 = vst.msk [vmem:[%s788] sm:$0x10] %vm779, %v778
  %s790 = scalar_lea.vmem %s1, 174
  %791 = vst.msk [vmem:[%s790] sm:$0x20] %vm779, %v778
  %s792 = scalar_lea.vmem %s1, 205
  %793 = vst.msk [vmem:[%s792] sm:$0x40] %vm779, %v778
  %s794 = scalar_lea.vmem %s1, 236
  %795 = vst.msk [vmem:[%s794] sm:$0x80] %vm779, %v778
  %s796 = scalar_lea.vmem %s0, 8
  %v797 = vld [vmem:[%s796] sm:$0xff]
  %798 = vrot.lane.b32.xlu0 %v797, 109
  %v799 = vpop.permute.xlu0 %798
  %vm800 = vcmask 7168
  %s801 = scalar_lea.vmem %s1, 275
  %802 = vst.msk [vmem:[%s801] sm:$0x1] %vm800, %v799
  %s803 = scalar_lea.vmem %s1, 306
  %804 = vst.msk [vmem:[%s803] sm:$0x2] %vm800, %v799
  %s805 = scalar_lea.vmem %s1, 337
  %806 = vst.msk [vmem:[%s805] sm:$0x4] %vm800, %v799
  %s807 = scalar_lea.vmem %s1, 368
  %808 = vst.msk [vmem:[%s807] sm:$0x8] %vm800, %v799
  %s809 = scalar_lea.vmem %s1, 399
  %810 = vst.msk [vmem:[%s809] sm:$0x10] %vm800, %v799
  %s811 = scalar_lea.vmem %s1, 430
  %812 = vst.msk [vmem:[%s811] sm:$0x20] %vm800, %v799
  %s813 = scalar_lea.vmem %s1, 461
  %814 = vst.msk [vmem:[%s813] sm:$0x40] %vm800, %v799
  %s815 = scalar_lea.vmem %s1, 492
  %816 = vst.msk [vmem:[%s815] sm:$0x80] %vm800, %v799
  %v817 = vld [vmem:[%s0] sm:$0xff]
  %818 = vrot.lane.b32.xlu0 %v817, 108
  %v819 = vpop.permute.xlu0 %818
  %vm820 = vcmask 7168
  %s821 = scalar_lea.vmem %s1, 20
  %822 = vst.msk [vmem:[%s821] sm:$0x1] %vm820, %v819
  %s823 = scalar_lea.vmem %s1, 51
  %824 = vst.msk [vmem:[%s823] sm:$0x2] %vm820, %v819
  %s825 = scalar_lea.vmem %s1, 82
  %826 = vst.msk [vmem:[%s825] sm:$0x4] %vm820, %v819
  %s827 = scalar_lea.vmem %s1, 113
  %828 = vst.msk [vmem:[%s827] sm:$0x8] %vm820, %v819
  %s829 = scalar_lea.vmem %s1, 144
  %830 = vst.msk [vmem:[%s829] sm:$0x10] %vm820, %v819
  %s831 = scalar_lea.vmem %s1, 175
  %832 = vst.msk [vmem:[%s831] sm:$0x20] %vm820, %v819
  %s833 = scalar_lea.vmem %s1, 206
  %834 = vst.msk [vmem:[%s833] sm:$0x40] %vm820, %v819
  %s835 = scalar_lea.vmem %s1, 237
  %836 = vst.msk [vmem:[%s835] sm:$0x80] %vm820, %v819
  %s837 = scalar_lea.vmem %s0, 8
  %v838 = vld [vmem:[%s837] sm:$0xff]
  %839 = vrot.lane.b32.xlu0 %v838, 108
  %v840 = vpop.permute.xlu0 %839
  %vm841 = vcmask 7168
  %s842 = scalar_lea.vmem %s1, 276
  %843 = vst.msk [vmem:[%s842] sm:$0x1] %vm841, %v840
  %s844 = scalar_lea.vmem %s1, 307
  %845 = vst.msk [vmem:[%s844] sm:$0x2] %vm841, %v840
  %s846 = scalar_lea.vmem %s1, 338
  %847 = vst.msk [vmem:[%s846] sm:$0x4] %vm841, %v840
  %s848 = scalar_lea.vmem %s1, 369
  %849 = vst.msk [vmem:[%s848] sm:$0x8] %vm841, %v840
  %s850 = scalar_lea.vmem %s1, 400
  %851 = vst.msk [vmem:[%s850] sm:$0x10] %vm841, %v840
  %s852 = scalar_lea.vmem %s1, 431
  %853 = vst.msk [vmem:[%s852] sm:$0x20] %vm841, %v840
  %s854 = scalar_lea.vmem %s1, 462
  %855 = vst.msk [vmem:[%s854] sm:$0x40] %vm841, %v840
  %s856 = scalar_lea.vmem %s1, 493
  %857 = vst.msk [vmem:[%s856] sm:$0x80] %vm841, %v840
  %v858 = vld [vmem:[%s0] sm:$0xff]
  %859 = vrot.lane.b32.xlu0 %v858, 107
  %v860 = vpop.permute.xlu0 %859
  %vm861 = vcmask 7168
  %s862 = scalar_lea.vmem %s1, 21
  %863 = vst.msk [vmem:[%s862] sm:$0x1] %vm861, %v860
  %s864 = scalar_lea.vmem %s1, 52
  %865 = vst.msk [vmem:[%s864] sm:$0x2] %vm861, %v860
  %s866 = scalar_lea.vmem %s1, 83
  %867 = vst.msk [vmem:[%s866] sm:$0x4] %vm861, %v860
  %s868 = scalar_lea.vmem %s1, 114
  %869 = vst.msk [vmem:[%s868] sm:$0x8] %vm861, %v860
  %s870 = scalar_lea.vmem %s1, 145
  %871 = vst.msk [vmem:[%s870] sm:$0x10] %vm861, %v860
  %s872 = scalar_lea.vmem %s1, 176
  %873 = vst.msk [vmem:[%s872] sm:$0x20] %vm861, %v860
  %s874 = scalar_lea.vmem %s1, 207
  %875 = vst.msk [vmem:[%s874] sm:$0x40] %vm861, %v860
  %s876 = scalar_lea.vmem %s1, 238
  %877 = vst.msk [vmem:[%s876] sm:$0x80] %vm861, %v860
  %s878 = scalar_lea.vmem %s0, 8
  %v879 = vld [vmem:[%s878] sm:$0xff]
  %880 = vrot.lane.b32.xlu0 %v879, 107
  %v881 = vpop.permute.xlu0 %880
  %vm882 = vcmask 7168
  %s883 = scalar_lea.vmem %s1, 277
  %884 = vst.msk [vmem:[%s883] sm:$0x1] %vm882, %v881
  %s885 = scalar_lea.vmem %s1, 308
  %886 = vst.msk [vmem:[%s885] sm:$0x2] %vm882, %v881
  %s887 = scalar_lea.vmem %s1, 339
  %888 = vst.msk [vmem:[%s887] sm:$0x4] %vm882, %v881
  %s889 = scalar_lea.vmem %s1, 370
  %890 = vst.msk [vmem:[%s889] sm:$0x8] %vm882, %v881
  %s891 = scalar_lea.vmem %s1, 401
  %892 = vst.msk [vmem:[%s891] sm:$0x10] %vm882, %v881
  %s893 = scalar_lea.vmem %s1, 432
  %894 = vst.msk [vmem:[%s893] sm:$0x20] %vm882, %v881
  %s895 = scalar_lea.vmem %s1, 463
  %896 = vst.msk [vmem:[%s895] sm:$0x40] %vm882, %v881
  %s897 = scalar_lea.vmem %s1, 494
  %898 = vst.msk [vmem:[%s897] sm:$0x80] %vm882, %v881
  %v899 = vld [vmem:[%s0] sm:$0xff]
  %900 = vrot.lane.b32.xlu0 %v899, 106
  %v901 = vpop.permute.xlu0 %900
  %vm902 = vcmask 7168
  %s903 = scalar_lea.vmem %s1, 22
  %904 = vst.msk [vmem:[%s903] sm:$0x1] %vm902, %v901
  %s905 = scalar_lea.vmem %s1, 53
  %906 = vst.msk [vmem:[%s905] sm:$0x2] %vm902, %v901
  %s907 = scalar_lea.vmem %s1, 84
  %908 = vst.msk [vmem:[%s907] sm:$0x4] %vm902, %v901
  %s909 = scalar_lea.vmem %s1, 115
  %910 = vst.msk [vmem:[%s909] sm:$0x8] %vm902, %v901
  %s911 = scalar_lea.vmem %s1, 146
  %912 = vst.msk [vmem:[%s911] sm:$0x10] %vm902, %v901
  %s913 = scalar_lea.vmem %s1, 177
  %914 = vst.msk [vmem:[%s913] sm:$0x20] %vm902, %v901
  %s915 = scalar_lea.vmem %s1, 208
  %916 = vst.msk [vmem:[%s915] sm:$0x40] %vm902, %v901
  %s917 = scalar_lea.vmem %s1, 239
  %918 = vst.msk [vmem:[%s917] sm:$0x80] %vm902, %v901
  %s919 = scalar_lea.vmem %s0, 8
  %v920 = vld [vmem:[%s919] sm:$0xff]
  %921 = vrot.lane.b32.xlu0 %v920, 106
  %v922 = vpop.permute.xlu0 %921
  %vm923 = vcmask 7168
  %s924 = scalar_lea.vmem %s1, 278
  %925 = vst.msk [vmem:[%s924] sm:$0x1] %vm923, %v922
  %s926 = scalar_lea.vmem %s1, 309
  %927 = vst.msk [vmem:[%s926] sm:$0x2] %vm923, %v922
  %s928 = scalar_lea.vmem %s1, 340
  %929 = vst.msk [vmem:[%s928] sm:$0x4] %vm923, %v922
  %s930 = scalar_lea.vmem %s1, 371
  %931 = vst.msk [vmem:[%s930] sm:$0x8] %vm923, %v922
  %s932 = scalar_lea.vmem %s1, 402
  %933 = vst.msk [vmem:[%s932] sm:$0x10] %vm923, %v922
  %s934 = scalar_lea.vmem %s1, 433
  %935 = vst.msk [vmem:[%s934] sm:$0x20] %vm923, %v922
  %s936 = scalar_lea.vmem %s1, 464
  %937 = vst.msk [vmem:[%s936] sm:$0x40] %vm923, %v922
  %s938 = scalar_lea.vmem %s1, 495
  %939 = vst.msk [vmem:[%s938] sm:$0x80] %vm923, %v922
  %v940 = vld [vmem:[%s0] sm:$0xff]
  %941 = vrot.lane.b32.xlu0 %v940, 105
  %v942 = vpop.permute.xlu0 %941
  %vm943 = vcmask 7168
  %s944 = scalar_lea.vmem %s1, 23
  %945 = vst.msk [vmem:[%s944] sm:$0x1] %vm943, %v942
  %s946 = scalar_lea.vmem %s1, 54
  %947 = vst.msk [vmem:[%s946] sm:$0x2] %vm943, %v942
  %s948 = scalar_lea.vmem %s1, 85
  %949 = vst.msk [vmem:[%s948] sm:$0x4] %vm943, %v942
  %s950 = scalar_lea.vmem %s1, 116
  %951 = vst.msk [vmem:[%s950] sm:$0x8] %vm943, %v942
  %s952 = scalar_lea.vmem %s1, 147
  %953 = vst.msk [vmem:[%s952] sm:$0x10] %vm943, %v942
  %s954 = scalar_lea.vmem %s1, 178
  %955 = vst.msk [vmem:[%s954] sm:$0x20] %vm943, %v942
  %s956 = scalar_lea.vmem %s1, 209
  %957 = vst.msk [vmem:[%s956] sm:$0x40] %vm943, %v942
  %s958 = scalar_lea.vmem %s1, 240
  %959 = vst.msk [vmem:[%s958] sm:$0x80] %vm943, %v942
  %s960 = scalar_lea.vmem %s0, 8
  %v961 = vld [vmem:[%s960] sm:$0xff]
  %962 = vrot.lane.b32.xlu0 %v961, 105
  %v963 = vpop.permute.xlu0 %962
  %vm964 = vcmask 7168
  %s965 = scalar_lea.vmem %s1, 279
  %966 = vst.msk [vmem:[%s965] sm:$0x1] %vm964, %v963
  %s967 = scalar_lea.vmem %s1, 310
  %968 = vst.msk [vmem:[%s967] sm:$0x2] %vm964, %v963
  %s969 = scalar_lea.vmem %s1, 341
  %970 = vst.msk [vmem:[%s969] sm:$0x4] %vm964, %v963
  %s971 = scalar_lea.vmem %s1, 372
  %972 = vst.msk [vmem:[%s971] sm:$0x8] %vm964, %v963
  %s973 = scalar_lea.vmem %s1, 403
  %974 = vst.msk [vmem:[%s973] sm:$0x10] %vm964, %v963
  %s975 = scalar_lea.vmem %s1, 434
  %976 = vst.msk [vmem:[%s975] sm:$0x20] %vm964, %v963
  %s977 = scalar_lea.vmem %s1, 465
  %978 = vst.msk [vmem:[%s977] sm:$0x40] %vm964, %v963
  %s979 = scalar_lea.vmem %s1, 496
  %980 = vst.msk [vmem:[%s979] sm:$0x80] %vm964, %v963
  %v981 = vld [vmem:[%s0] sm:$0xff]
  %982 = vrot.lane.b32.xlu0 %v981, 104
  %v983 = vpop.permute.xlu0 %982
  %vm984 = vcmask 7168
  %s985 = scalar_lea.vmem %s1, 24
  %986 = vst.msk [vmem:[%s985] sm:$0x1] %vm984, %v983
  %s987 = scalar_lea.vmem %s1, 55
  %988 = vst.msk [vmem:[%s987] sm:$0x2] %vm984, %v983
  %s989 = scalar_lea.vmem %s1, 86
  %990 = vst.msk [vmem:[%s989] sm:$0x4] %vm984, %v983
  %s991 = scalar_lea.vmem %s1, 117
  %992 = vst.msk [vmem:[%s991] sm:$0x8] %vm984, %v983
  %s993 = scalar_lea.vmem %s1, 148
  %994 = vst.msk [vmem:[%s993] sm:$0x10] %vm984, %v983
  %s995 = scalar_lea.vmem %s1, 179
  %996 = vst.msk [vmem:[%s995] sm:$0x20] %vm984, %v983
  %s997 = scalar_lea.vmem %s1, 210
  %998 = vst.msk [vmem:[%s997] sm:$0x40] %vm984, %v983
  %s999 = scalar_lea.vmem %s1, 241
  %1000 = vst.msk [vmem:[%s999] sm:$0x80] %vm984, %v983
  %s1001 = scalar_lea.vmem %s0, 8
  %v1002 = vld [vmem:[%s1001] sm:$0xff]
  %1003 = vrot.lane.b32.xlu0 %v1002, 104
  %v1004 = vpop.permute.xlu0 %1003
  %vm1005 = vcmask 7168
  %s1006 = scalar_lea.vmem %s1, 280
  %1007 = vst.msk [vmem:[%s1006] sm:$0x1] %vm1005, %v1004
  %s1008 = scalar_lea.vmem %s1, 311
  %1009 = vst.msk [vmem:[%s1008] sm:$0x2] %vm1005, %v1004
  %s1010 = scalar_lea.vmem %s1, 342
  %1011 = vst.msk [vmem:[%s1010] sm:$0x4] %vm1005, %v1004
  %s1012 = scalar_lea.vmem %s1, 373
  %1013 = vst.msk [vmem:[%s1012] sm:$0x8] %vm1005, %v1004
  %s1014 = scalar_lea.vmem %s1, 404
  %1015 = vst.msk [vmem:[%s1014] sm:$0x10] %vm1005, %v1004
  %s1016 = scalar_lea.vmem %s1, 435
  %1017 = vst.msk [vmem:[%s1016] sm:$0x20] %vm1005, %v1004
  %s1018 = scalar_lea.vmem %s1, 466
  %1019 = vst.msk [vmem:[%s1018] sm:$0x40] %vm1005, %v1004
  %s1020 = scalar_lea.vmem %s1, 497
  %1021 = vst.msk [vmem:[%s1020] sm:$0x80] %vm1005, %v1004
  %v1022 = vld [vmem:[%s0] sm:$0xff]
  %1023 = vrot.lane.b32.xlu0 %v1022, 103
  %v1024 = vpop.permute.xlu0 %1023
  %vm1025 = vcmask 7168
  %s1026 = scalar_lea.vmem %s1, 25
  %1027 = vst.msk [vmem:[%s1026] sm:$0x1] %vm1025, %v1024
  %s1028 = scalar_lea.vmem %s1, 56
  %1029 = vst.msk [vmem:[%s1028] sm:$0x2] %vm1025, %v1024
  %s1030 = scalar_lea.vmem %s1, 87
  %1031 = vst.msk [vmem:[%s1030] sm:$0x4] %vm1025, %v1024
  %s1032 = scalar_lea.vmem %s1, 118
  %1033 = vst.msk [vmem:[%s1032] sm:$0x8] %vm1025, %v1024
  %s1034 = scalar_lea.vmem %s1, 149
  %1035 = vst.msk [vmem:[%s1034] sm:$0x10] %vm1025, %v1024
  %s1036 = scalar_lea.vmem %s1, 180
  %1037 = vst.msk [vmem:[%s1036] sm:$0x20] %vm1025, %v1024
  %s1038 = scalar_lea.vmem %s1, 211
  %1039 = vst.msk [vmem:[%s1038] sm:$0x40] %vm1025, %v1024
  %s1040 = scalar_lea.vmem %s1, 242
  %1041 = vst.msk [vmem:[%s1040] sm:$0x80] %vm1025, %v1024
  %s1042 = scalar_lea.vmem %s0, 8
  %v1043 = vld [vmem:[%s1042] sm:$0xff]
  %1044 = vrot.lane.b32.xlu0 %v1043, 103
  %v1045 = vpop.permute.xlu0 %1044
  %vm1046 = vcmask 7168
  %s1047 = scalar_lea.vmem %s1, 281
  %1048 = vst.msk [vmem:[%s1047] sm:$0x1] %vm1046, %v1045
  %s1049 = scalar_lea.vmem %s1, 312
  %1050 = vst.msk [vmem:[%s1049] sm:$0x2] %vm1046, %v1045
  %s1051 = scalar_lea.vmem %s1, 343
  %1052 = vst.msk [vmem:[%s1051] sm:$0x4] %vm1046, %v1045
  %s1053 = scalar_lea.vmem %s1, 374
  %1054 = vst.msk [vmem:[%s1053] sm:$0x8] %vm1046, %v1045
  %s1055 = scalar_lea.vmem %s1, 405
  %1056 = vst.msk [vmem:[%s1055] sm:$0x10] %vm1046, %v1045
  %s1057 = scalar_lea.vmem %s1, 436
  %1058 = vst.msk [vmem:[%s1057] sm:$0x20] %vm1046, %v1045
  %s1059 = scalar_lea.vmem %s1, 467
  %1060 = vst.msk [vmem:[%s1059] sm:$0x40] %vm1046, %v1045
  %s1061 = scalar_lea.vmem %s1, 498
  %1062 = vst.msk [vmem:[%s1061] sm:$0x80] %vm1046, %v1045
  %v1063 = vld [vmem:[%s0] sm:$0xff]
  %1064 = vrot.lane.b32.xlu0 %v1063, 102
  %v1065 = vpop.permute.xlu0 %1064
  %vm1066 = vcmask 7168
  %s1067 = scalar_lea.vmem %s1, 26
  %1068 = vst.msk [vmem:[%s1067] sm:$0x1] %vm1066, %v1065
  %s1069 = scalar_lea.vmem %s1, 57
  %1070 = vst.msk [vmem:[%s1069] sm:$0x2] %vm1066, %v1065
  %s1071 = scalar_lea.vmem %s1, 88
  %1072 = vst.msk [vmem:[%s1071] sm:$0x4] %vm1066, %v1065
  %s1073 = scalar_lea.vmem %s1, 119
  %1074 = vst.msk [vmem:[%s1073] sm:$0x8] %vm1066, %v1065
  %s1075 = scalar_lea.vmem %s1, 150
  %1076 = vst.msk [vmem:[%s1075] sm:$0x10] %vm1066, %v1065
  %s1077 = scalar_lea.vmem %s1, 181
  %1078 = vst.msk [vmem:[%s1077] sm:$0x20] %vm1066, %v1065
  %s1079 = scalar_lea.vmem %s1, 212
  %1080 = vst.msk [vmem:[%s1079] sm:$0x40] %vm1066, %v1065
  %s1081 = scalar_lea.vmem %s1, 243
  %1082 = vst.msk [vmem:[%s1081] sm:$0x80] %vm1066, %v1065
  %s1083 = scalar_lea.vmem %s0, 8
  %v1084 = vld [vmem:[%s1083] sm:$0xff]
  %1085 = vrot.lane.b32.xlu0 %v1084, 102
  %v1086 = vpop.permute.xlu0 %1085
  %vm1087 = vcmask 7168
  %s1088 = scalar_lea.vmem %s1, 282
  %1089 = vst.msk [vmem:[%s1088] sm:$0x1] %vm1087, %v1086
  %s1090 = scalar_lea.vmem %s1, 313
  %1091 = vst.msk [vmem:[%s1090] sm:$0x2] %vm1087, %v1086
  %s1092 = scalar_lea.vmem %s1, 344
  %1093 = vst.msk [vmem:[%s1092] sm:$0x4] %vm1087, %v1086
  %s1094 = scalar_lea.vmem %s1, 375
  %1095 = vst.msk [vmem:[%s1094] sm:$0x8] %vm1087, %v1086
  %s1096 = scalar_lea.vmem %s1, 406
  %1097 = vst.msk [vmem:[%s1096] sm:$0x10] %vm1087, %v1086
  %s1098 = scalar_lea.vmem %s1, 437
  %1099 = vst.msk [vmem:[%s1098] sm:$0x20] %vm1087, %v1086
  %s1100 = scalar_lea.vmem %s1, 468
  %1101 = vst.msk [vmem:[%s1100] sm:$0x40] %vm1087, %v1086
  %s1102 = scalar_lea.vmem %s1, 499
  %1103 = vst.msk [vmem:[%s1102] sm:$0x80] %vm1087, %v1086
  %v1104 = vld [vmem:[%s0] sm:$0xff]
  %1105 = vrot.lane.b32.xlu0 %v1104, 101
  %v1106 = vpop.permute.xlu0 %1105
  %vm1107 = vcmask 7168
  %s1108 = scalar_lea.vmem %s1, 27
  %1109 = vst.msk [vmem:[%s1108] sm:$0x1] %vm1107, %v1106
  %s1110 = scalar_lea.vmem %s1, 58
  %1111 = vst.msk [vmem:[%s1110] sm:$0x2] %vm1107, %v1106
  %s1112 = scalar_lea.vmem %s1, 89
  %1113 = vst.msk [vmem:[%s1112] sm:$0x4] %vm1107, %v1106
  %s1114 = scalar_lea.vmem %s1, 120
  %1115 = vst.msk [vmem:[%s1114] sm:$0x8] %vm1107, %v1106
  %s1116 = scalar_lea.vmem %s1, 151
  %1117 = vst.msk [vmem:[%s1116] sm:$0x10] %vm1107, %v1106
  %s1118 = scalar_lea.vmem %s1, 182
  %1119 = vst.msk [vmem:[%s1118] sm:$0x20] %vm1107, %v1106
  %s1120 = scalar_lea.vmem %s1, 213
  %1121 = vst.msk [vmem:[%s1120] sm:$0x40] %vm1107, %v1106
  %s1122 = scalar_lea.vmem %s1, 244
  %1123 = vst.msk [vmem:[%s1122] sm:$0x80] %vm1107, %v1106
  %s1124 = scalar_lea.vmem %s0, 8
  %v1125 = vld [vmem:[%s1124] sm:$0xff]
  %1126 = vrot.lane.b32.xlu0 %v1125, 101
  %v1127 = vpop.permute.xlu0 %1126
  %vm1128 = vcmask 7168
  %s1129 = scalar_lea.vmem %s1, 283
  %1130 = vst.msk [vmem:[%s1129] sm:$0x1] %vm1128, %v1127
  %s1131 = scalar_lea.vmem %s1, 314
  %1132 = vst.msk [vmem:[%s1131] sm:$0x2] %vm1128, %v1127
  %s1133 = scalar_lea.vmem %s1, 345
  %1134 = vst.msk [vmem:[%s1133] sm:$0x4] %vm1128, %v1127
  %s1135 = scalar_lea.vmem %s1, 376
  %1136 = vst.msk [vmem:[%s1135] sm:$0x8] %vm1128, %v1127
  %s1137 = scalar_lea.vmem %s1, 407
  %1138 = vst.msk [vmem:[%s1137] sm:$0x10] %vm1128, %v1127
  %s1139 = scalar_lea.vmem %s1, 438
  %1140 = vst.msk [vmem:[%s1139] sm:$0x20] %vm1128, %v1127
  %s1141 = scalar_lea.vmem %s1, 469
  %1142 = vst.msk [vmem:[%s1141] sm:$0x40] %vm1128, %v1127
  %s1143 = scalar_lea.vmem %s1, 500
  %1144 = vst.msk [vmem:[%s1143] sm:$0x80] %vm1128, %v1127
  %v1145 = vld [vmem:[%s0] sm:$0xff]
  %1146 = vrot.lane.b32.xlu0 %v1145, 100
  %v1147 = vpop.permute.xlu0 %1146
  %vm1148 = vcmask 7168
  %s1149 = scalar_lea.vmem %s1, 28
  %1150 = vst.msk [vmem:[%s1149] sm:$0x1] %vm1148, %v1147
  %s1151 = scalar_lea.vmem %s1, 59
  %1152 = vst.msk [vmem:[%s1151] sm:$0x2] %vm1148, %v1147
  %s1153 = scalar_lea.vmem %s1, 90
  %1154 = vst.msk [vmem:[%s1153] sm:$0x4] %vm1148, %v1147
  %s1155 = scalar_lea.vmem %s1, 121
  %1156 = vst.msk [vmem:[%s1155] sm:$0x8] %vm1148, %v1147
  %s1157 = scalar_lea.vmem %s1, 152
  %1158 = vst.msk [vmem:[%s1157] sm:$0x10] %vm1148, %v1147
  %s1159 = scalar_lea.vmem %s1, 183
  %1160 = vst.msk [vmem:[%s1159] sm:$0x20] %vm1148, %v1147
  %s1161 = scalar_lea.vmem %s1, 214
  %1162 = vst.msk [vmem:[%s1161] sm:$0x40] %vm1148, %v1147
  %s1163 = scalar_lea.vmem %s1, 245
  %1164 = vst.msk [vmem:[%s1163] sm:$0x80] %vm1148, %v1147
  %s1165 = scalar_lea.vmem %s0, 8
  %v1166 = vld [vmem:[%s1165] sm:$0xff]
  %1167 = vrot.lane.b32.xlu0 %v1166, 100
  %v1168 = vpop.permute.xlu0 %1167
  %vm1169 = vcmask 7168
  %s1170 = scalar_lea.vmem %s1, 284
  %1171 = vst.msk [vmem:[%s1170] sm:$0x1] %vm1169, %v1168
  %s1172 = scalar_lea.vmem %s1, 315
  %1173 = vst.msk [vmem:[%s1172] sm:$0x2] %vm1169, %v1168
  %s1174 = scalar_lea.vmem %s1, 346
  %1175 = vst.msk [vmem:[%s1174] sm:$0x4] %vm1169, %v1168
  %s1176 = scalar_lea.vmem %s1, 377
  %1177 = vst.msk [vmem:[%s1176] sm:$0x8] %vm1169, %v1168
  %s1178 = scalar_lea.vmem %s1, 408
  %1179 = vst.msk [vmem:[%s1178] sm:$0x10] %vm1169, %v1168
  %s1180 = scalar_lea.vmem %s1, 439
  %1181 = vst.msk [vmem:[%s1180] sm:$0x20] %vm1169, %v1168
  %s1182 = scalar_lea.vmem %s1, 470
  %1183 = vst.msk [vmem:[%s1182] sm:$0x40] %vm1169, %v1168
  %s1184 = scalar_lea.vmem %s1, 501
  %1185 = vst.msk [vmem:[%s1184] sm:$0x80] %vm1169, %v1168
  %v1186 = vld [vmem:[%s0] sm:$0xff]
  %1187 = vrot.lane.b32.xlu0 %v1186, 99
  %v1188 = vpop.permute.xlu0 %1187
  %vm1189 = vcmask 7168
  %s1190 = scalar_lea.vmem %s1, 29
  %1191 = vst.msk [vmem:[%s1190] sm:$0x1] %vm1189, %v1188
  %s1192 = scalar_lea.vmem %s1, 60
  %1193 = vst.msk [vmem:[%s1192] sm:$0x2] %vm1189, %v1188
  %s1194 = scalar_lea.vmem %s1, 91
  %1195 = vst.msk [vmem:[%s1194] sm:$0x4] %vm1189, %v1188
  %s1196 = scalar_lea.vmem %s1, 122
  %1197 = vst.msk [vmem:[%s1196] sm:$0x8] %vm1189, %v1188
  %s1198 = scalar_lea.vmem %s1, 153
  %1199 = vst.msk [vmem:[%s1198] sm:$0x10] %vm1189, %v1188
  %s1200 = scalar_lea.vmem %s1, 184
  %1201 = vst.msk [vmem:[%s1200] sm:$0x20] %vm1189, %v1188
  %s1202 = scalar_lea.vmem %s1, 215
  %1203 = vst.msk [vmem:[%s1202] sm:$0x40] %vm1189, %v1188
  %s1204 = scalar_lea.vmem %s1, 246
  %1205 = vst.msk [vmem:[%s1204] sm:$0x80] %vm1189, %v1188
  %s1206 = scalar_lea.vmem %s0, 8
  %v1207 = vld [vmem:[%s1206] sm:$0xff]
  %1208 = vrot.lane.b32.xlu0 %v1207, 99
  %v1209 = vpop.permute.xlu0 %1208
  %vm1210 = vcmask 7168
  %s1211 = scalar_lea.vmem %s1, 285
  %1212 = vst.msk [vmem:[%s1211] sm:$0x1] %vm1210, %v1209
  %s1213 = scalar_lea.vmem %s1, 316
  %1214 = vst.msk [vmem:[%s1213] sm:$0x2] %vm1210, %v1209
  %s1215 = scalar_lea.vmem %s1, 347
  %1216 = vst.msk [vmem:[%s1215] sm:$0x4] %vm1210, %v1209
  %s1217 = scalar_lea.vmem %s1, 378
  %1218 = vst.msk [vmem:[%s1217] sm:$0x8] %vm1210, %v1209
  %s1219 = scalar_lea.vmem %s1, 409
  %1220 = vst.msk [vmem:[%s1219] sm:$0x10] %vm1210, %v1209
  %s1221 = scalar_lea.vmem %s1, 440
  %1222 = vst.msk [vmem:[%s1221] sm:$0x20] %vm1210, %v1209
  %s1223 = scalar_lea.vmem %s1, 471
  %1224 = vst.msk [vmem:[%s1223] sm:$0x40] %vm1210, %v1209
  %s1225 = scalar_lea.vmem %s1, 502
  %1226 = vst.msk [vmem:[%s1225] sm:$0x80] %vm1210, %v1209
  %v1227 = vld [vmem:[%s0] sm:$0xff]
  %1228 = vrot.lane.b32.xlu0 %v1227, 98
  %v1229 = vpop.permute.xlu0 %1228
  %vm1230 = vcmask 7168
  %s1231 = scalar_lea.vmem %s1, 30
  %1232 = vst.msk [vmem:[%s1231] sm:$0x1] %vm1230, %v1229
  %s1233 = scalar_lea.vmem %s1, 61
  %1234 = vst.msk [vmem:[%s1233] sm:$0x2] %vm1230, %v1229
  %s1235 = scalar_lea.vmem %s1, 92
  %1236 = vst.msk [vmem:[%s1235] sm:$0x4] %vm1230, %v1229
  %s1237 = scalar_lea.vmem %s1, 123
  %1238 = vst.msk [vmem:[%s1237] sm:$0x8] %vm1230, %v1229
  %s1239 = scalar_lea.vmem %s1, 154
  %1240 = vst.msk [vmem:[%s1239] sm:$0x10] %vm1230, %v1229
  %s1241 = scalar_lea.vmem %s1, 185
  %1242 = vst.msk [vmem:[%s1241] sm:$0x20] %vm1230, %v1229
  %s1243 = scalar_lea.vmem %s1, 216
  %1244 = vst.msk [vmem:[%s1243] sm:$0x40] %vm1230, %v1229
  %s1245 = scalar_lea.vmem %s1, 247
  %1246 = vst.msk [vmem:[%s1245] sm:$0x80] %vm1230, %v1229
  %s1247 = scalar_lea.vmem %s0, 8
  %v1248 = vld [vmem:[%s1247] sm:$0xff]
  %1249 = vrot.lane.b32.xlu0 %v1248, 98
  %v1250 = vpop.permute.xlu0 %1249
  %vm1251 = vcmask 7168
  %s1252 = scalar_lea.vmem %s1, 286
  %1253 = vst.msk [vmem:[%s1252] sm:$0x1] %vm1251, %v1250
  %s1254 = scalar_lea.vmem %s1, 317
  %1255 = vst.msk [vmem:[%s1254] sm:$0x2] %vm1251, %v1250
  %s1256 = scalar_lea.vmem %s1, 348
  %1257 = vst.msk [vmem:[%s1256] sm:$0x4] %vm1251, %v1250
  %s1258 = scalar_lea.vmem %s1, 379
  %1259 = vst.msk [vmem:[%s1258] sm:$0x8] %vm1251, %v1250
  %s1260 = scalar_lea.vmem %s1, 410
  %1261 = vst.msk [vmem:[%s1260] sm:$0x10] %vm1251, %v1250
  %s1262 = scalar_lea.vmem %s1, 441
  %1263 = vst.msk [vmem:[%s1262] sm:$0x20] %vm1251, %v1250
  %s1264 = scalar_lea.vmem %s1, 472
  %1265 = vst.msk [vmem:[%s1264] sm:$0x40] %vm1251, %v1250
  %s1266 = scalar_lea.vmem %s1, 503
  %1267 = vst.msk [vmem:[%s1266] sm:$0x80] %vm1251, %v1250
  %v1268 = vld [vmem:[%s0] sm:$0xff]
  %1269 = vrot.lane.b32.xlu0 %v1268, 97
  %v1270 = vpop.permute.xlu0 %1269
  %vm1271 = vcmask 7168
  %s1272 = scalar_lea.vmem %s1, 31
  %1273 = vst.msk [vmem:[%s1272] sm:$0x1] %vm1271, %v1270
  %s1274 = scalar_lea.vmem %s1, 62
  %1275 = vst.msk [vmem:[%s1274] sm:$0x2] %vm1271, %v1270
  %s1276 = scalar_lea.vmem %s1, 93
  %1277 = vst.msk [vmem:[%s1276] sm:$0x4] %vm1271, %v1270
  %s1278 = scalar_lea.vmem %s1, 124
  %1279 = vst.msk [vmem:[%s1278] sm:$0x8] %vm1271, %v1270
  %s1280 = scalar_lea.vmem %s1, 155
  %1281 = vst.msk [vmem:[%s1280] sm:$0x10] %vm1271, %v1270
  %s1282 = scalar_lea.vmem %s1, 186
  %1283 = vst.msk [vmem:[%s1282] sm:$0x20] %vm1271, %v1270
  %s1284 = scalar_lea.vmem %s1, 217
  %1285 = vst.msk [vmem:[%s1284] sm:$0x40] %vm1271, %v1270
  %s1286 = scalar_lea.vmem %s1, 248
  %1287 = vst.msk [vmem:[%s1286] sm:$0x80] %vm1271, %v1270
  %s1288 = scalar_lea.vmem %s0, 8
  %v1289 = vld [vmem:[%s1288] sm:$0xff]
  %1290 = vrot.lane.b32.xlu0 %v1289, 97
  %v1291 = vpop.permute.xlu0 %1290
  %vm1292 = vcmask 7168
  %s1293 = scalar_lea.vmem %s1, 287
  %1294 = vst.msk [vmem:[%s1293] sm:$0x1] %vm1292, %v1291
  %s1295 = scalar_lea.vmem %s1, 318
  %1296 = vst.msk [vmem:[%s1295] sm:$0x2] %vm1292, %v1291
  %s1297 = scalar_lea.vmem %s1, 349
  %1298 = vst.msk [vmem:[%s1297] sm:$0x4] %vm1292, %v1291
  %s1299 = scalar_lea.vmem %s1, 380
  %1300 = vst.msk [vmem:[%s1299] sm:$0x8] %vm1292, %v1291
  %s1301 = scalar_lea.vmem %s1, 411
  %1302 = vst.msk [vmem:[%s1301] sm:$0x10] %vm1292, %v1291
  %s1303 = scalar_lea.vmem %s1, 442
  %1304 = vst.msk [vmem:[%s1303] sm:$0x20] %vm1292, %v1291
  %s1305 = scalar_lea.vmem %s1, 473
  %1306 = vst.msk [vmem:[%s1305] sm:$0x40] %vm1292, %v1291
  %s1307 = scalar_lea.vmem %s1, 504
  %1308 = vst.msk [vmem:[%s1307] sm:$0x80] %vm1292, %v1291

// kernel: tile.18
$region0: #{tile.18}
  #allocation0 [shape = 's32[1]{0}', space=sflag, size = 0x4, scoped, tag = 'scoped memory for tile.18']
  %s0 = inlined_call_operand.vmem [shape: f32[32], index: 0, kind: input, shape index: {}]
  %s1 = inlined_call_operand.vmem [shape: f32[8,32], index: 1, kind: output, shape index: {}]
  // Predicated region
  $region2: #{tile.18} parent=0 // pred_check
    _
  $region3: #{tile.18} parent=0 // pred_check_branch
    %3 = sbr.rel (0) target = $region5
  $region4: #{tile.18} parent=0 // pred_region
    _
  $region5: #{tile.18} parent=0 // pred_fallthru
    _
  %v4 = vld [vmem:[%s0] ss:$0 sm:$0xff]
  %5 = vst [vmem:[%s1] sm:$0xff] %v4

// kernel: tile.1
$region0: #{tile.1}
  %s0 = inlined_call_operand.vmem [shape: f32[8,32], index: 0, kind: input, shape index: {}]
  %s1 = inlined_call_operand.vmem [shape: f32[256,1], index: 1, kind: output, shape index: {}]
  %v2 = vld [vmem:[%s0] sm:$0xff]
  %vm3 = vcmask 7168
  %4 = vst.msk [vmem:[%s1] sm:$0x1] %vm3, %v2
  %s5 = scalar_lea.vmem %s1, 31
  %6 = vst.msk [vmem:[%s5] sm:$0x2] %vm3, %v2
  %s7 = scalar_lea.vmem %s1, 62
  %8 = vst.msk [vmem:[%s7] sm:$0x4] %vm3, %v2
  %s9 = scalar_lea.vmem %s1, 93
  %10 = vst.msk [vmem:[%s9] sm:$0x8] %vm3, %v2
  %s11 = scalar_lea.vmem %s1, 124
  %12 = vst.msk [vmem:[%s11] sm:$0x10] %vm3, %v2
  %s13 = scalar_lea.vmem %s1, 155
  %14 = vst.msk [vmem:[%s13] sm:$0x20] %vm3, %v2
  %s15 = scalar_lea.vmem %s1, 186
  %16 = vst.msk [vmem:[%s15] sm:$0x40] %vm3, %v2
  %s17 = scalar_lea.vmem %s1, 217
  %18 = vst.msk [vmem:[%s17] sm:$0x80] %vm3, %v2
  %v19 = vld [vmem:[%s0] sm:$0xff]
  %20 = vrot.lane.b32.xlu0 %v19, 127
  %v21 = vpop.permute.xlu0 %20
  %vm22 = vcmask 7168
  %s23 = scalar_lea.vmem %s1, 1
  %24 = vst.msk [vmem:[%s23] sm:$0x1] %vm22, %v21
  %s25 = scalar_lea.vmem %s1, 32
  %26 = vst.msk [vmem:[%s25] sm:$0x2] %vm22, %v21
  %s27 = scalar_lea.vmem %s1, 63
  %28 = vst.msk [vmem:[%s27] sm:$0x4] %vm22, %v21
  %s29 = scalar_lea.vmem %s1, 94
  %30 = vst.msk [vmem:[%s29] sm:$0x8] %vm22, %v21
  %s31 = scalar_lea.vmem %s1, 125
  %32 = vst.msk [vmem:[%s31] sm:$0x10] %vm22, %v21
  %s33 = scalar_lea.vmem %s1, 156
  %34 = vst.msk [vmem:[%s33] sm:$0x20] %vm22, %v21
  %s35 = scalar_lea.vmem %s1, 187
  %36 = vst.msk [vmem:[%s35] sm:$0x40] %vm22, %v21
  %s37 = scalar_lea.vmem %s1, 218
  %38 = vst.msk [vmem:[%s37] sm:$0x80] %vm22, %v21
  %v39 = vld [vmem:[%s0] sm:$0xff]
  %40 = vrot.lane.b32.xlu0 %v39, 126
  %v41 = vpop.permute.xlu0 %40
  %vm42 = vcmask 7168
  %s43 = scalar_lea.vmem %s1, 2
  %44 = vst.msk [vmem:[%s43] sm:$0x1] %vm42, %v41
  %s45 = scalar_lea.vmem %s1, 33
  %46 = vst.msk [vmem:[%s45] sm:$0x2] %vm42, %v41
  %s47 = scalar_lea.vmem %s1, 64
  %48 = vst.msk [vmem:[%s47] sm:$0x4] %vm42, %v41
  %s49 = scalar_lea.vmem %s1, 95
  %50 = vst.msk [vmem:[%s49] sm:$0x8] %vm42, %v41
  %s51 = scalar_lea.vmem %s1, 126
  %52 = vst.msk [vmem:[%s51] sm:$0x10] %vm42, %v41
  %s53 = scalar_lea.vmem %s1, 157
  %54 = vst.msk [vmem:[%s53] sm:$0x20] %vm42, %v41
  %s55 = scalar_lea.vmem %s1, 188
  %56 = vst.msk [vmem:[%s55] sm:$0x40] %vm42, %v41
  %s57 = scalar_lea.vmem %s1, 219
  %58 = vst.msk [vmem:[%s57] sm:$0x80] %vm42, %v41
  %v59 = vld [vmem:[%s0] sm:$0xff]
  %60 = vrot.lane.b32.xlu0 %v59, 125
  %v61 = vpop.permute.xlu0 %60
  %vm62 = vcmask 7168
  %s63 = scalar_lea.vmem %s1, 3
  %64 = vst.msk [vmem:[%s63] sm:$0x1] %vm62, %v61
  %s65 = scalar_lea.vmem %s1, 34
  %66 = vst.msk [vmem:[%s65] sm:$0x2] %vm62, %v61
  %s67 = scalar_lea.vmem %s1, 65
  %68 = vst.msk [vmem:[%s67] sm:$0x4] %vm62, %v61
  %s69 = scalar_lea.vmem %s1, 96
  %70 = vst.msk [vmem:[%s69] sm:$0x8] %vm62, %v61
  %s71 = scalar_lea.vmem %s1, 127
  %72 = vst.msk [vmem:[%s71] sm:$0x10] %vm62, %v61
  %s73 = scalar_lea.vmem %s1, 158
  %74 = vst.msk [vmem:[%s73] sm:$0x20] %vm62, %v61
  %s75 = scalar_lea.vmem %s1, 189
  %76 = vst.msk [vmem:[%s75] sm:$0x40] %vm62, %v61
  %s77 = scalar_lea.vmem %s1, 220
  %78 = vst.msk [vmem:[%s77] sm:$0x80] %vm62, %v61
  %v79 = vld [vmem:[%s0] sm:$0xff]
  %80 = vrot.lane.b32.xlu0 %v79, 124
  %v81 = vpop.permute.xlu0 %80
  %vm82 = vcmask 7168
  %s83 = scalar_lea.vmem %s1, 4
  %84 = vst.msk [vmem:[%s83] sm:$0x1] %vm82, %v81
  %s85 = scalar_lea.vmem %s1, 35
  %86 = vst.msk [vmem:[%s85] sm:$0x2] %vm82, %v81
  %s87 = scalar_lea.vmem %s1, 66
  %88 = vst.msk [vmem:[%s87] sm:$0x4] %vm82, %v81
  %s89 = scalar_lea.vmem %s1, 97
  %90 = vst.msk [vmem:[%s89] sm:$0x8] %vm82, %v81
  %s91 = scalar_lea.vmem %s1, 128
  %92 = vst.msk [vmem:[%s91] sm:$0x10] %vm82, %v81
  %s93 = scalar_lea.vmem %s1, 159
  %94 = vst.msk [vmem:[%s93] sm:$0x20] %vm82, %v81
  %s95 = scalar_lea.vmem %s1, 190
  %96 = vst.msk [vmem:[%s95] sm:$0x40] %vm82, %v81
  %s97 = scalar_lea.vmem %s1, 221
  %98 = vst.msk [vmem:[%s97] sm:$0x80] %vm82, %v81
  %v99 = vld [vmem:[%s0] sm:$0xff]
  %100 = vrot.lane.b32.xlu0 %v99, 123
  %v101 = vpop.permute.xlu0 %100
  %vm102 = vcmask 7168
  %s103 = scalar_lea.vmem %s1, 5
  %104 = vst.msk [vmem:[%s103] sm:$0x1] %vm102, %v101
  %s105 = scalar_lea.vmem %s1, 36
  %106 = vst.msk [vmem:[%s105] sm:$0x2] %vm102, %v101
  %s107 = scalar_lea.vmem %s1, 67
  %108 = vst.msk [vmem:[%s107] sm:$0x4] %vm102, %v101
  %s109 = scalar_lea.vmem %s1, 98
  %110 = vst.msk [vmem:[%s109] sm:$0x8] %vm102, %v101
  %s111 = scalar_lea.vmem %s1, 129
  %112 = vst.msk [vmem:[%s111] sm:$0x10] %vm102, %v101
  %s113 = scalar_lea.vmem %s1, 160
  %114 = vst.msk [vmem:[%s113] sm:$0x20] %vm102, %v101
  %s115 = scalar_lea.vmem %s1, 191
  %116 = vst.msk [vmem:[%s115] sm:$0x40] %vm102, %v101
  %s117 = scalar_lea.vmem %s1, 222
  %118 = vst.msk [vmem:[%s117] sm:$0x80] %vm102, %v101
  %v119 = vld [vmem:[%s0] sm:$0xff]
  %120 = vrot.lane.b32.xlu0 %v119, 122
  %v121 = vpop.permute.xlu0 %120
  %vm122 = vcmask 7168
  %s123 = scalar_lea.vmem %s1, 6
  %124 = vst.msk [vmem:[%s123] sm:$0x1] %vm122, %v121
  %s125 = scalar_lea.vmem %s1, 37
  %126 = vst.msk [vmem:[%s125] sm:$0x2] %vm122, %v121
  %s127 = scalar_lea.vmem %s1, 68
  %128 = vst.msk [vmem:[%s127] sm:$0x4] %vm122, %v121
  %s129 = scalar_lea.vmem %s1, 99
  %130 = vst.msk [vmem:[%s129] sm:$0x8] %vm122, %v121
  %s131 = scalar_lea.vmem %s1, 130
  %132 = vst.msk [vmem:[%s131] sm:$0x10] %vm122, %v121
  %s133 = scalar_lea.vmem %s1, 161
  %134 = vst.msk [vmem:[%s133] sm:$0x20] %vm122, %v121
  %s135 = scalar_lea.vmem %s1, 192
  %136 = vst.msk [vmem:[%s135] sm:$0x40] %vm122, %v121
  %s137 = scalar_lea.vmem %s1, 223
  %138 = vst.msk [vmem:[%s137] sm:$0x80] %vm122, %v121
  %v139 = vld [vmem:[%s0] sm:$0xff]
  %140 = vrot.lane.b32.xlu0 %v139, 121
  %v141 = vpop.permute.xlu0 %140
  %vm142 = vcmask 7168
  %s143 = scalar_lea.vmem %s1, 7
  %144 = vst.msk [vmem:[%s143] sm:$0x1] %vm142, %v141
  %s145 = scalar_lea.vmem %s1, 38
  %146 = vst.msk [vmem:[%s145] sm:$0x2] %vm142, %v141
  %s147 = scalar_lea.vmem %s1, 69
  %148 = vst.msk [vmem:[%s147] sm:$0x4] %vm142, %v141
  %s149 = scalar_lea.vmem %s1, 100
  %150 = vst.msk [vmem:[%s149] sm:$0x8] %vm142, %v141
  %s151 = scalar_lea.vmem %s1, 131
  %152 = vst.msk [vmem:[%s151] sm:$0x10] %vm142, %v141
  %s153 = scalar_lea.vmem %s1, 162
  %154 = vst.msk [vmem:[%s153] sm:$0x20] %vm142, %v141
  %s155 = scalar_lea.vmem %s1, 193
  %156 = vst.msk [vmem:[%s155] sm:$0x40] %vm142, %v141
  %s157 = scalar_lea.vmem %s1, 224
  %158 = vst.msk [vmem:[%s157] sm:$0x80] %vm142, %v141
  %v159 = vld [vmem:[%s0] sm:$0xff]
  %160 = vrot.lane.b32.xlu0 %v159, 120
  %v161 = vpop.permute.xlu0 %160
  %vm162 = vcmask 7168
  %s163 = scalar_lea.vmem %s1, 8
  %164 = vst.msk [vmem:[%s163] sm:$0x1] %vm162, %v161
  %s165 = scalar_lea.vmem %s1, 39
  %166 = vst.msk [vmem:[%s165] sm:$0x2] %vm162, %v161
  %s167 = scalar_lea.vmem %s1, 70
  %168 = vst.msk [vmem:[%s167] sm:$0x4] %vm162, %v161
  %s169 = scalar_lea.vmem %s1, 101
  %170 = vst.msk [vmem:[%s169] sm:$0x8] %vm162, %v161
  %s171 = scalar_lea.vmem %s1, 132
  %172 = vst.msk [vmem:[%s171] sm:$0x10] %vm162, %v161
  %s173 = scalar_lea.vmem %s1, 163
  %174 = vst.msk [vmem:[%s173] sm:$0x20] %vm162, %v161
  %s175 = scalar_lea.vmem %s1, 194
  %176 = vst.msk [vmem:[%s175] sm:$0x40] %vm162, %v161
  %s177 = scalar_lea.vmem %s1, 225
  %178 = vst.msk [vmem:[%s177] sm:$0x80] %vm162, %v161
  %v179 = vld [vmem:[%s0] sm:$0xff]
  %180 = vrot.lane.b32.xlu0 %v179, 119
  %v181 = vpop.permute.xlu0 %180
  %vm182 = vcmask 7168
  %s183 = scalar_lea.vmem %s1, 9
  %184 = vst.msk [vmem:[%s183] sm:$0x1] %vm182, %v181
  %s185 = scalar_lea.vmem %s1, 40
  %186 = vst.msk [vmem:[%s185] sm:$0x2] %vm182, %v181
  %s187 = scalar_lea.vmem %s1, 71
  %188 = vst.msk [vmem:[%s187] sm:$0x4] %vm182, %v181
  %s189 = scalar_lea.vmem %s1, 102
  %190 = vst.msk [vmem:[%s189] sm:$0x8] %vm182, %v181
  %s191 = scalar_lea.vmem %s1, 133
  %192 = vst.msk [vmem:[%s191] sm:$0x10] %vm182, %v181
  %s193 = scalar_lea.vmem %s1, 164
  %194 = vst.msk [vmem:[%s193] sm:$0x20] %vm182, %v181
  %s195 = scalar_lea.vmem %s1, 195
  %196 = vst.msk [vmem:[%s195] sm:$0x40] %vm182, %v181
  %s197 = scalar_lea.vmem %s1, 226
  %198 = vst.msk [vmem:[%s197] sm:$0x80] %vm182, %v181
  %v199 = vld [vmem:[%s0] sm:$0xff]
  %200 = vrot.lane.b32.xlu0 %v199, 118
  %v201 = vpop.permute.xlu0 %200
  %vm202 = vcmask 7168
  %s203 = scalar_lea.vmem %s1, 10
  %204 = vst.msk [vmem:[%s203] sm:$0x1] %vm202, %v201
  %s205 = scalar_lea.vmem %s1, 41
  %206 = vst.msk [vmem:[%s205] sm:$0x2] %vm202, %v201
  %s207 = scalar_lea.vmem %s1, 72
  %208 = vst.msk [vmem:[%s207] sm:$0x4] %vm202, %v201
  %s209 = scalar_lea.vmem %s1, 103
  %210 = vst.msk [vmem:[%s209] sm:$0x8] %vm202, %v201
  %s211 = scalar_lea.vmem %s1, 134
  %212 = vst.msk [vmem:[%s211] sm:$0x10] %vm202, %v201
  %s213 = scalar_lea.vmem %s1, 165
  %214 = vst.msk [vmem:[%s213] sm:$0x20] %vm202, %v201
  %s215 = scalar_lea.vmem %s1, 196
  %216 = vst.msk [vmem:[%s215] sm:$0x40] %vm202, %v201
  %s217 = scalar_lea.vmem %s1, 227
  %218 = vst.msk [vmem:[%s217] sm:$0x80] %vm202, %v201
  %v219 = vld [vmem:[%s0] sm:$0xff]
  %220 = vrot.lane.b32.xlu0 %v219, 117
  %v221 = vpop.permute.xlu0 %220
  %vm222 = vcmask 7168
  %s223 = scalar_lea.vmem %s1, 11
  %224 = vst.msk [vmem:[%s223] sm:$0x1] %vm222, %v221
  %s225 = scalar_lea.vmem %s1, 42
  %226 = vst.msk [vmem:[%s225] sm:$0x2] %vm222, %v221
  %s227 = scalar_lea.vmem %s1, 73
  %228 = vst.msk [vmem:[%s227] sm:$0x4] %vm222, %v221
  %s229 = scalar_lea.vmem %s1, 104
  %230 = vst.msk [vmem:[%s229] sm:$0x8] %vm222, %v221
  %s231 = scalar_lea.vmem %s1, 135
  %232 = vst.msk [vmem:[%s231] sm:$0x10] %vm222, %v221
  %s233 = scalar_lea.vmem %s1, 166
  %234 = vst.msk [vmem:[%s233] sm:$0x20] %vm222, %v221
  %s235 = scalar_lea.vmem %s1, 197
  %236 = vst.msk [vmem:[%s235] sm:$0x40] %vm222, %v221
  %s237 = scalar_lea.vmem %s1, 228
  %238 = vst.msk [vmem:[%s237] sm:$0x80] %vm222, %v221
  %v239 = vld [vmem:[%s0] sm:$0xff]
  %240 = vrot.lane.b32.xlu0 %v239, 116
  %v241 = vpop.permute.xlu0 %240
  %vm242 = vcmask 7168
  %s243 = scalar_lea.vmem %s1, 12
  %244 = vst.msk [vmem:[%s243] sm:$0x1] %vm242, %v241
  %s245 = scalar_lea.vmem %s1, 43
  %246 = vst.msk [vmem:[%s245] sm:$0x2] %vm242, %v241
  %s247 = scalar_lea.vmem %s1, 74
  %248 = vst.msk [vmem:[%s247] sm:$0x4] %vm242, %v241
  %s249 = scalar_lea.vmem %s1, 105
  %250 = vst.msk [vmem:[%s249] sm:$0x8] %vm242, %v241
  %s251 = scalar_lea.vmem %s1, 136
  %252 = vst.msk [vmem:[%s251] sm:$0x10] %vm242, %v241
  %s253 = scalar_lea.vmem %s1, 167
  %254 = vst.msk [vmem:[%s253] sm:$0x20] %vm242, %v241
  %s255 = scalar_lea.vmem %s1, 198
  %256 = vst.msk [vmem:[%s255] sm:$0x40] %vm242, %v241
  %s257 = scalar_lea.vmem %s1, 229
  %258 = vst.msk [vmem:[%s257] sm:$0x80] %vm242, %v241
  %v259 = vld [vmem:[%s0] sm:$0xff]
  %260 = vrot.lane.b32.xlu0 %v259, 115
  %v261 = vpop.permute.xlu0 %260
  %vm262 = vcmask 7168
  %s263 = scalar_lea.vmem %s1, 13
  %264 = vst.msk [vmem:[%s263] sm:$0x1] %vm262, %v261
  %s265 = scalar_lea.vmem %s1, 44
  %266 = vst.msk [vmem:[%s265] sm:$0x2] %vm262, %v261
  %s267 = scalar_lea.vmem %s1, 75
  %268 = vst.msk [vmem:[%s267] sm:$0x4] %vm262, %v261
  %s269 = scalar_lea.vmem %s1, 106
  %270 = vst.msk [vmem:[%s269] sm:$0x8] %vm262, %v261
  %s271 = scalar_lea.vmem %s1, 137
  %272 = vst.msk [vmem:[%s271] sm:$0x10] %vm262, %v261
  %s273 = scalar_lea.vmem %s1, 168
  %274 = vst.msk [vmem:[%s273] sm:$0x20] %vm262, %v261
  %s275 = scalar_lea.vmem %s1, 199
  %276 = vst.msk [vmem:[%s275] sm:$0x40] %vm262, %v261
  %s277 = scalar_lea.vmem %s1, 230
  %278 = vst.msk [vmem:[%s277] sm:$0x80] %vm262, %v261
  %v279 = vld [vmem:[%s0] sm:$0xff]
  %280 = vrot.lane.b32.xlu0 %v279, 114
  %v281 = vpop.permute.xlu0 %280
  %vm282 = vcmask 7168
  %s283 = scalar_lea.vmem %s1, 14
  %284 = vst.msk [vmem:[%s283] sm:$0x1] %vm282, %v281
  %s285 = scalar_lea.vmem %s1, 45
  %286 = vst.msk [vmem:[%s285] sm:$0x2] %vm282, %v281
  %s287 = scalar_lea.vmem %s1, 76
  %288 = vst.msk [vmem:[%s287] sm:$0x4] %vm282, %v281
  %s289 = scalar_lea.vmem %s1, 107
  %290 = vst.msk [vmem:[%s289] sm:$0x8] %vm282, %v281
  %s291 = scalar_lea.vmem %s1, 138
  %292 = vst.msk [vmem:[%s291] sm:$0x10] %vm282, %v281
  %s293 = scalar_lea.vmem %s1, 169
  %294 = vst.msk [vmem:[%s293] sm:$0x20] %vm282, %v281
  %s295 = scalar_lea.vmem %s1, 200
  %296 = vst.msk [vmem:[%s295] sm:$0x40] %vm282, %v281
  %s297 = scalar_lea.vmem %s1, 231
  %298 = vst.msk [vmem:[%s297] sm:$0x80] %vm282, %v281
  %v299 = vld [vmem:[%s0] sm:$0xff]
  %300 = vrot.lane.b32.xlu0 %v299, 113
  %v301 = vpop.permute.xlu0 %300
  %vm302 = vcmask 7168
  %s303 = scalar_lea.vmem %s1, 15
  %304 = vst.msk [vmem:[%s303] sm:$0x1] %vm302, %v301
  %s305 = scalar_lea.vmem %s1, 46
  %306 = vst.msk [vmem:[%s305] sm:$0x2] %vm302, %v301
  %s307 = scalar_lea.vmem %s1, 77
  %308 = vst.msk [vmem:[%s307] sm:$0x4] %vm302, %v301
  %s309 = scalar_lea.vmem %s1, 108
  %310 = vst.msk [vmem:[%s309] sm:$0x8] %vm302, %v301
  %s311 = scalar_lea.vmem %s1, 139
  %312 = vst.msk [vmem:[%s311] sm:$0x10] %vm302, %v301
  %s313 = scalar_lea.vmem %s1, 170
  %314 = vst.msk [vmem:[%s313] sm:$0x20] %vm302, %v301
  %s315 = scalar_lea.vmem %s1, 201
  %316 = vst.msk [vmem:[%s315] sm:$0x40] %vm302, %v301
  %s317 = scalar_lea.vmem %s1, 232
  %318 = vst.msk [vmem:[%s317] sm:$0x80] %vm302, %v301
  %v319 = vld [vmem:[%s0] sm:$0xff]
  %320 = vrot.lane.b32.xlu0 %v319, 112
  %v321 = vpop.permute.xlu0 %320
  %vm322 = vcmask 7168
  %s323 = scalar_lea.vmem %s1, 16
  %324 = vst.msk [vmem:[%s323] sm:$0x1] %vm322, %v321
  %s325 = scalar_lea.vmem %s1, 47
  %326 = vst.msk [vmem:[%s325] sm:$0x2] %vm322, %v321
  %s327 = scalar_lea.vmem %s1, 78
  %328 = vst.msk [vmem:[%s327] sm:$0x4] %vm322, %v321
  %s329 = scalar_lea.vmem %s1, 109
  %330 = vst.msk [vmem:[%s329] sm:$0x8] %vm322, %v321
  %s331 = scalar_lea.vmem %s1, 140
  %332 = vst.msk [vmem:[%s331] sm:$0x10] %vm322, %v321
  %s333 = scalar_lea.vmem %s1, 171
  %334 = vst.msk [vmem:[%s333] sm:$0x20] %vm322, %v321
  %s335 = scalar_lea.vmem %s1, 202
  %336 = vst.msk [vmem:[%s335] sm:$0x40] %vm322, %v321
  %s337 = scalar_lea.vmem %s1, 233
  %338 = vst.msk [vmem:[%s337] sm:$0x80] %vm322, %v321
  %v339 = vld [vmem:[%s0] sm:$0xff]
  %340 = vrot.lane.b32.xlu0 %v339, 111
  %v341 = vpop.permute.xlu0 %340
  %vm342 = vcmask 7168
  %s343 = scalar_lea.vmem %s1, 17
  %344 = vst.msk [vmem:[%s343] sm:$0x1] %vm342, %v341
  %s345 = scalar_lea.vmem %s1, 48
  %346 = vst.msk [vmem:[%s345] sm:$0x2] %vm342, %v341
  %s347 = scalar_lea.vmem %s1, 79
  %348 = vst.msk [vmem:[%s347] sm:$0x4] %vm342, %v341
  %s349 = scalar_lea.vmem %s1, 110
  %350 = vst.msk [vmem:[%s349] sm:$0x8] %vm342, %v341
  %s351 = scalar_lea.vmem %s1, 141
  %352 = vst.msk [vmem:[%s351] sm:$0x10] %vm342, %v341
  %s353 = scalar_lea.vmem %s1, 172
  %354 = vst.msk [vmem:[%s353] sm:$0x20] %vm342, %v341
  %s355 = scalar_lea.vmem %s1, 203
  %356 = vst.msk [vmem:[%s355] sm:$0x40] %vm342, %v341
  %s357 = scalar_lea.vmem %s1, 234
  %358 = vst.msk [vmem:[%s357] sm:$0x80] %vm342, %v341
  %v359 = vld [vmem:[%s0] sm:$0xff]
  %360 = vrot.lane.b32.xlu0 %v359, 110
  %v361 = vpop.permute.xlu0 %360
  %vm362 = vcmask 7168
  %s363 = scalar_lea.vmem %s1, 18
  %364 = vst.msk [vmem:[%s363] sm:$0x1] %vm362, %v361
  %s365 = scalar_lea.vmem %s1, 49
  %366 = vst.msk [vmem:[%s365] sm:$0x2] %vm362, %v361
  %s367 = scalar_lea.vmem %s1, 80
  %368 = vst.msk [vmem:[%s367] sm:$0x4] %vm362, %v361
  %s369 = scalar_lea.vmem %s1, 111
  %370 = vst.msk [vmem:[%s369] sm:$0x8] %vm362, %v361
  %s371 = scalar_lea.vmem %s1, 142
  %372 = vst.msk [vmem:[%s371] sm:$0x10] %vm362, %v361
  %s373 = scalar_lea.vmem %s1, 173
  %374 = vst.msk [vmem:[%s373] sm:$0x20] %vm362, %v361
  %s375 = scalar_lea.vmem %s1, 204
  %376 = vst.msk [vmem:[%s375] sm:$0x40] %vm362, %v361
  %s377 = scalar_lea.vmem %s1, 235
  %378 = vst.msk [vmem:[%s377] sm:$0x80] %vm362, %v361
  %v379 = vld [vmem:[%s0] sm:$0xff]
  %380 = vrot.lane.b32.xlu0 %v379, 109
  %v381 = vpop.permute.xlu0 %380
  %vm382 = vcmask 7168
  %s383 = scalar_lea.vmem %s1, 19
  %384 = vst.msk [vmem:[%s383] sm:$0x1] %vm382, %v381
  %s385 = scalar_lea.vmem %s1, 50
  %386 = vst.msk [vmem:[%s385] sm:$0x2] %vm382, %v381
  %s387 = scalar_lea.vmem %s1, 81
  %388 = vst.msk [vmem:[%s387] sm:$0x4] %vm382, %v381
  %s389 = scalar_lea.vmem %s1, 112
  %390 = vst.msk [vmem:[%s389] sm:$0x8] %vm382, %v381
  %s391 = scalar_lea.vmem %s1, 143
  %392 = vst.msk [vmem:[%s391] sm:$0x10] %vm382, %v381
  %s393 = scalar_lea.vmem %s1, 174
  %394 = vst.msk [vmem:[%s393] sm:$0x20] %vm382, %v381
  %s395 = scalar_lea.vmem %s1, 205
  %396 = vst.msk [vmem:[%s395] sm:$0x40] %vm382, %v381
  %s397 = scalar_lea.vmem %s1, 236
  %398 = vst.msk [vmem:[%s397] sm:$0x80] %vm382, %v381
  %v399 = vld [vmem:[%s0] sm:$0xff]
  %400 = vrot.lane.b32.xlu0 %v399, 108
  %v401 = vpop.permute.xlu0 %400
  %vm402 = vcmask 7168
  %s403 = scalar_lea.vmem %s1, 20
  %404 = vst.msk [vmem:[%s403] sm:$0x1] %vm402, %v401
  %s405 = scalar_lea.vmem %s1, 51
  %406 = vst.msk [vmem:[%s405] sm:$0x2] %vm402, %v401
  %s407 = scalar_lea.vmem %s1, 82
  %408 = vst.msk [vmem:[%s407] sm:$0x4] %vm402, %v401
  %s409 = scalar_lea.vmem %s1, 113
  %410 = vst.msk [vmem:[%s409] sm:$0x8] %vm402, %v401
  %s411 = scalar_lea.vmem %s1, 144
  %412 = vst.msk [vmem:[%s411] sm:$0x10] %vm402, %v401
  %s413 = scalar_lea.vmem %s1, 175
  %414 = vst.msk [vmem:[%s413] sm:$0x20] %vm402, %v401
  %s415 = scalar_lea.vmem %s1, 206
  %416 = vst.msk [vmem:[%s415] sm:$0x40] %vm402, %v401
  %s417 = scalar_lea.vmem %s1, 237
  %418 = vst.msk [vmem:[%s417] sm:$0x80] %vm402, %v401
  %v419 = vld [vmem:[%s0] sm:$0xff]
  %420 = vrot.lane.b32.xlu0 %v419, 107
  %v421 = vpop.permute.xlu0 %420
  %vm422 = vcmask 7168
  %s423 = scalar_lea.vmem %s1, 21
  %424 = vst.msk [vmem:[%s423] sm:$0x1] %vm422, %v421
  %s425 = scalar_lea.vmem %s1, 52
  %426 = vst.msk [vmem:[%s425] sm:$0x2] %vm422, %v421
  %s427 = scalar_lea.vmem %s1, 83
  %428 = vst.msk [vmem:[%s427] sm:$0x4] %vm422, %v421
  %s429 = scalar_lea.vmem %s1, 114
  %430 = vst.msk [vmem:[%s429] sm:$0x8] %vm422, %v421
  %s431 = scalar_lea.vmem %s1, 145
  %432 = vst.msk [vmem:[%s431] sm:$0x10] %vm422, %v421
  %s433 = scalar_lea.vmem %s1, 176
  %434 = vst.msk [vmem:[%s433] sm:$0x20] %vm422, %v421
  %s435 = scalar_lea.vmem %s1, 207
  %436 = vst.msk [vmem:[%s435] sm:$0x40] %vm422, %v421
  %s437 = scalar_lea.vmem %s1, 238
  %438 = vst.msk [vmem:[%s437] sm:$0x80] %vm422, %v421
  %v439 = vld [vmem:[%s0] sm:$0xff]
  %440 = vrot.lane.b32.xlu0 %v439, 106
  %v441 = vpop.permute.xlu0 %440
  %vm442 = vcmask 7168
  %s443 = scalar_lea.vmem %s1, 22
  %444 = vst.msk [vmem:[%s443] sm:$0x1] %vm442, %v441
  %s445 = scalar_lea.vmem %s1, 53
  %446 = vst.msk [vmem:[%s445] sm:$0x2] %vm442, %v441
  %s447 = scalar_lea.vmem %s1, 84
  %448 = vst.msk [vmem:[%s447] sm:$0x4] %vm442, %v441
  %s449 = scalar_lea.vmem %s1, 115
  %450 = vst.msk [vmem:[%s449] sm:$0x8] %vm442, %v441
  %s451 = scalar_lea.vmem %s1, 146
  %452 = vst.msk [vmem:[%s451] sm:$0x10] %vm442, %v441
  %s453 = scalar_lea.vmem %s1, 177
  %454 = vst.msk [vmem:[%s453] sm:$0x20] %vm442, %v441
  %s455 = scalar_lea.vmem %s1, 208
  %456 = vst.msk [vmem:[%s455] sm:$0x40] %vm442, %v441
  %s457 = scalar_lea.vmem %s1, 239
  %458 = vst.msk [vmem:[%s457] sm:$0x80] %vm442, %v441
  %v459 = vld [vmem:[%s0] sm:$0xff]
  %460 = vrot.lane.b32.xlu0 %v459, 105
  %v461 = vpop.permute.xlu0 %460
  %vm462 = vcmask 7168
  %s463 = scalar_lea.vmem %s1, 23
  %464 = vst.msk [vmem:[%s463] sm:$0x1] %vm462, %v461
  %s465 = scalar_lea.vmem %s1, 54
  %466 = vst.msk [vmem:[%s465] sm:$0x2] %vm462, %v461
  %s467 = scalar_lea.vmem %s1, 85
  %468 = vst.msk [vmem:[%s467] sm:$0x4] %vm462, %v461
  %s469 = scalar_lea.vmem %s1, 116
  %470 = vst.msk [vmem:[%s469] sm:$0x8] %vm462, %v461
  %s471 = scalar_lea.vmem %s1, 147
  %472 = vst.msk [vmem:[%s471] sm:$0x10] %vm462, %v461
  %s473 = scalar_lea.vmem %s1, 178
  %474 = vst.msk [vmem:[%s473] sm:$0x20] %vm462, %v461
  %s475 = scalar_lea.vmem %s1, 209
  %476 = vst.msk [vmem:[%s475] sm:$0x40] %vm462, %v461
  %s477 = scalar_lea.vmem %s1, 240
  %478 = vst.msk [vmem:[%s477] sm:$0x80] %vm462, %v461
  %v479 = vld [vmem:[%s0] sm:$0xff]
  %480 = vrot.lane.b32.xlu0 %v479, 104
  %v481 = vpop.permute.xlu0 %480
  %vm482 = vcmask 7168
  %s483 = scalar_lea.vmem %s1, 24
  %484 = vst.msk [vmem:[%s483] sm:$0x1] %vm482, %v481
  %s485 = scalar_lea.vmem %s1, 55
  %486 = vst.msk [vmem:[%s485] sm:$0x2] %vm482, %v481
  %s487 = scalar_lea.vmem %s1, 86
  %488 = vst.msk [vmem:[%s487] sm:$0x4] %vm482, %v481
  %s489 = scalar_lea.vmem %s1, 117
  %490 = vst.msk [vmem:[%s489] sm:$0x8] %vm482, %v481
  %s491 = scalar_lea.vmem %s1, 148
  %492 = vst.msk [vmem:[%s491] sm:$0x10] %vm482, %v481
  %s493 = scalar_lea.vmem %s1, 179
  %494 = vst.msk [vmem:[%s493] sm:$0x20] %vm482, %v481
  %s495 = scalar_lea.vmem %s1, 210
  %496 = vst.msk [vmem:[%s495] sm:$0x40] %vm482, %v481
  %s497 = scalar_lea.vmem %s1, 241
  %498 = vst.msk [vmem:[%s497] sm:$0x80] %vm482, %v481
  %v499 = vld [vmem:[%s0] sm:$0xff]
  %500 = vrot.lane.b32.xlu0 %v499, 103
  %v501 = vpop.permute.xlu0 %500
  %vm502 = vcmask 7168
  %s503 = scalar_lea.vmem %s1, 25
  %504 = vst.msk [vmem:[%s503] sm:$0x1] %vm502, %v501
  %s505 = scalar_lea.vmem %s1, 56
  %506 = vst.msk [vmem:[%s505] sm:$0x2] %vm502, %v501
  %s507 = scalar_lea.vmem %s1, 87
  %508 = vst.msk [vmem:[%s507] sm:$0x4] %vm502, %v501
  %s509 = scalar_lea.vmem %s1, 118
  %510 = vst.msk [vmem:[%s509] sm:$0x8] %vm502, %v501
  %s511 = scalar_lea.vmem %s1, 149
  %512 = vst.msk [vmem:[%s511] sm:$0x10] %vm502, %v501
  %s513 = scalar_lea.vmem %s1, 180
  %514 = vst.msk [vmem:[%s513] sm:$0x20] %vm502, %v501
  %s515 = scalar_lea.vmem %s1, 211
  %516 = vst.msk [vmem:[%s515] sm:$0x40] %vm502, %v501
  %s517 = scalar_lea.vmem %s1, 242
  %518 = vst.msk [vmem:[%s517] sm:$0x80] %vm502, %v501
  %v519 = vld [vmem:[%s0] sm:$0xff]
  %520 = vrot.lane.b32.xlu0 %v519, 102
  %v521 = vpop.permute.xlu0 %520
  %vm522 = vcmask 7168
  %s523 = scalar_lea.vmem %s1, 26
  %524 = vst.msk [vmem:[%s523] sm:$0x1] %vm522, %v521
  %s525 = scalar_lea.vmem %s1, 57
  %526 = vst.msk [vmem:[%s525] sm:$0x2] %vm522, %v521
  %s527 = scalar_lea.vmem %s1, 88
  %528 = vst.msk [vmem:[%s527] sm:$0x4] %vm522, %v521
  %s529 = scalar_lea.vmem %s1, 119
  %530 = vst.msk [vmem:[%s529] sm:$0x8] %vm522, %v521
  %s531 = scalar_lea.vmem %s1, 150
  %532 = vst.msk [vmem:[%s531] sm:$0x10] %vm522, %v521
  %s533 = scalar_lea.vmem %s1, 181
  %534 = vst.msk [vmem:[%s533] sm:$0x20] %vm522, %v521
  %s535 = scalar_lea.vmem %s1, 212
  %536 = vst.msk [vmem:[%s535] sm:$0x40] %vm522, %v521
  %s537 = scalar_lea.vmem %s1, 243
  %538 = vst.msk [vmem:[%s537] sm:$0x80] %vm522, %v521
  %v539 = vld [vmem:[%s0] sm:$0xff]
  %540 = vrot.lane.b32.xlu0 %v539, 101
  %v541 = vpop.permute.xlu0 %540
  %vm542 = vcmask 7168
  %s543 = scalar_lea.vmem %s1, 27
  %544 = vst.msk [vmem:[%s543] sm:$0x1] %vm542, %v541
  %s545 = scalar_lea.vmem %s1, 58
  %546 = vst.msk [vmem:[%s545] sm:$0x2] %vm542, %v541
  %s547 = scalar_lea.vmem %s1, 89
  %548 = vst.msk [vmem:[%s547] sm:$0x4] %vm542, %v541
  %s549 = scalar_lea.vmem %s1, 120
  %550 = vst.msk [vmem:[%s549] sm:$0x8] %vm542, %v541
  %s551 = scalar_lea.vmem %s1, 151
  %552 = vst.msk [vmem:[%s551] sm:$0x10] %vm542, %v541
  %s553 = scalar_lea.vmem %s1, 182
  %554 = vst.msk [vmem:[%s553] sm:$0x20] %vm542, %v541
  %s555 = scalar_lea.vmem %s1, 213
  %556 = vst.msk [vmem:[%s555] sm:$0x40] %vm542, %v541
  %s557 = scalar_lea.vmem %s1, 244
  %558 = vst.msk [vmem:[%s557] sm:$0x80] %vm542, %v541
  %v559 = vld [vmem:[%s0] sm:$0xff]
  %560 = vrot.lane.b32.xlu0 %v559, 100
  %v561 = vpop.permute.xlu0 %560
  %vm562 = vcmask 7168
  %s563 = scalar_lea.vmem %s1, 28
  %564 = vst.msk [vmem:[%s563] sm:$0x1] %vm562, %v561
  %s565 = scalar_lea.vmem %s1, 59
  %566 = vst.msk [vmem:[%s565] sm:$0x2] %vm562, %v561
  %s567 = scalar_lea.vmem %s1, 90
  %568 = vst.msk [vmem:[%s567] sm:$0x4] %vm562, %v561
  %s569 = scalar_lea.vmem %s1, 121
  %570 = vst.msk [vmem:[%s569] sm:$0x8] %vm562, %v561
  %s571 = scalar_lea.vmem %s1, 152
  %572 = vst.msk [vmem:[%s571] sm:$0x10] %vm562, %v561
  %s573 = scalar_lea.vmem %s1, 183
  %574 = vst.msk [vmem:[%s573] sm:$0x20] %vm562, %v561
  %s575 = scalar_lea.vmem %s1, 214
  %576 = vst.msk [vmem:[%s575] sm:$0x40] %vm562, %v561
  %s577 = scalar_lea.vmem %s1, 245
  %578 = vst.msk [vmem:[%s577] sm:$0x80] %vm562, %v561
  %v579 = vld [vmem:[%s0] sm:$0xff]
  %580 = vrot.lane.b32.xlu0 %v579, 99
  %v581 = vpop.permute.xlu0 %580
  %vm582 = vcmask 7168
  %s583 = scalar_lea.vmem %s1, 29
  %584 = vst.msk [vmem:[%s583] sm:$0x1] %vm582, %v581
  %s585 = scalar_lea.vmem %s1, 60
  %586 = vst.msk [vmem:[%s585] sm:$0x2] %vm582, %v581
  %s587 = scalar_lea.vmem %s1, 91
  %588 = vst.msk [vmem:[%s587] sm:$0x4] %vm582, %v581
  %s589 = scalar_lea.vmem %s1, 122
  %590 = vst.msk [vmem:[%s589] sm:$0x8] %vm582, %v581
  %s591 = scalar_lea.vmem %s1, 153
  %592 = vst.msk [vmem:[%s591] sm:$0x10] %vm582, %v581
  %s593 = scalar_lea.vmem %s1, 184
  %594 = vst.msk [vmem:[%s593] sm:$0x20] %vm582, %v581
  %s595 = scalar_lea.vmem %s1, 215
  %596 = vst.msk [vmem:[%s595] sm:$0x40] %vm582, %v581
  %s597 = scalar_lea.vmem %s1, 246
  %598 = vst.msk [vmem:[%s597] sm:$0x80] %vm582, %v581
  %v599 = vld [vmem:[%s0] sm:$0xff]
  %600 = vrot.lane.b32.xlu0 %v599, 98
  %v601 = vpop.permute.xlu0 %600
  %vm602 = vcmask 7168
  %s603 = scalar_lea.vmem %s1, 30
  %604 = vst.msk [vmem:[%s603] sm:$0x1] %vm602, %v601
  %s605 = scalar_lea.vmem %s1, 61
  %606 = vst.msk [vmem:[%s605] sm:$0x2] %vm602, %v601
  %s607 = scalar_lea.vmem %s1, 92
  %608 = vst.msk [vmem:[%s607] sm:$0x4] %vm602, %v601
  %s609 = scalar_lea.vmem %s1, 123
  %610 = vst.msk [vmem:[%s609] sm:$0x8] %vm602, %v601
  %s611 = scalar_lea.vmem %s1, 154
  %612 = vst.msk [vmem:[%s611] sm:$0x10] %vm602, %v601
  %s613 = scalar_lea.vmem %s1, 185
  %614 = vst.msk [vmem:[%s613] sm:$0x20] %vm602, %v601
  %s615 = scalar_lea.vmem %s1, 216
  %616 = vst.msk [vmem:[%s615] sm:$0x40] %vm602, %v601
  %s617 = scalar_lea.vmem %s1, 247
  %618 = vst.msk [vmem:[%s617] sm:$0x80] %vm602, %v601
  %v619 = vld [vmem:[%s0] sm:$0xff]
  %620 = vrot.lane.b32.xlu0 %v619, 97
  %v621 = vpop.permute.xlu0 %620
  %vm622 = vcmask 7168
  %s623 = scalar_lea.vmem %s1, 31
  %624 = vst.msk [vmem:[%s623] sm:$0x1] %vm622, %v621
  %s625 = scalar_lea.vmem %s1, 62
  %626 = vst.msk [vmem:[%s625] sm:$0x2] %vm622, %v621
  %s627 = scalar_lea.vmem %s1, 93
  %628 = vst.msk [vmem:[%s627] sm:$0x4] %vm622, %v621
  %s629 = scalar_lea.vmem %s1, 124
  %630 = vst.msk [vmem:[%s629] sm:$0x8] %vm622, %v621
  %s631 = scalar_lea.vmem %s1, 155
  %632 = vst.msk [vmem:[%s631] sm:$0x10] %vm622, %v621
  %s633 = scalar_lea.vmem %s1, 186
  %634 = vst.msk [vmem:[%s633] sm:$0x20] %vm622, %v621
  %s635 = scalar_lea.vmem %s1, 217
  %636 = vst.msk [vmem:[%s635] sm:$0x40] %vm622, %v621
  %s637 = scalar_lea.vmem %s1, 248
  %638 = vst.msk [vmem:[%s637] sm:$0x80] %vm622, %v621

// kernel: cnn_forward.1
$region0: #{cnn_forward.1}
  #allocation0 [shape = 'u32[]', space=smem, size = 0x4, offset = 0x4, fixed_abs, tag = 'smem constant byte address 0x4 - core index']
  #allocation1 [shape = 'u32[144,128]{1,0:T(1,128)}', space=vmem, size = 0x12000, scoped, tag = 'internal scratch']
  #allocation2 [shape = 'f32[1,1]{1,0:T(1,128)S(1)}', space=vmem, size = 0x200, scoped, tag = 'scoped memory for cnn_forward.1']
  %s0 = inlined_call_operand.vmem [shape: f32[64,128], index: 0, kind: input, shape index: {}]
  %s1 = inlined_call_operand.vmem [shape: f32[512,64], index: 1, kind: input, shape index: {}]
  %s2 = inlined_call_operand.vmem [shape: f32[512,1], index: 2, kind: input, shape index: {}]
  %s3 = inlined_call_operand.vmem [shape: f32[256,256], index: 3, kind: input, shape index: {}]
  %s4 = inlined_call_operand.vmem [shape: f32[256,1], index: 4, kind: input, shape index: {}]
  %s5 = inlined_call_operand.vmem [shape: f32[1,128], index: 5, kind: input, shape index: {}]
  %s6 = inlined_call_operand.<no memory space> [shape: f32[1,1], index: 6, kind: input, shape index: {}]
  %s7 = inlined_call_operand.vmem [shape: f32[1,128], index: 7, kind: output, shape index: {}]
  %s8 = sld [smem:[#allocation0]]
  $region38: #{cnn_forward.1} parent=0
    _
  %s10 = ssub.s32 1, %s8
  %s11 = scalar_select 0, %s10, %s8
  %v12 = vstv %s6
  %13 = vst [vmem:[#allocation2] sm:$0x1] %v12
  // Predicated region
  $region2: #{cnn_forward.1} parent=0 // pred_check
    _
  $region3: #{cnn_forward.1} parent=0 // pred_check_branch
    %15 = sbr.rel (0) target = $region5
  $region4: #{cnn_forward.1} parent=0 // pred_region
    _
  $region5: #{cnn_forward.1} parent=0 // pred_fallthru
    _
  // Predicated region
  $region6: #{cnn_forward.1} parent=0 // pred_check
    _
  $region7: #{cnn_forward.1} parent=0 // pred_check_branch
    %17 = sbr.rel (0) target = $region9
  $region8: #{cnn_forward.1} parent=0 // pred_region
    _
  $region9: #{cnn_forward.1} parent=0 // pred_fallthru
    _
  // Predicated region
  $region10: #{cnn_forward.1} parent=0 // pred_check
    _
  $region11: #{cnn_forward.1} parent=0 // pred_check_branch
    %19 = sbr.rel (0) target = $region13
  $region12: #{cnn_forward.1} parent=0 // pred_region
    _
  $region13: #{cnn_forward.1} parent=0 // pred_fallthru
    _
  // Predicated region
  $region14: #{cnn_forward.1} parent=0 // pred_check
    _
  $region15: #{cnn_forward.1} parent=0 // pred_check_branch
    %21 = sbr.rel (0) target = $region17
  $region16: #{cnn_forward.1} parent=0 // pred_region
    _
  $region17: #{cnn_forward.1} parent=0 // pred_fallthru
    _
  // Predicated region
  $region18: #{cnn_forward.1} parent=0 // pred_check
    _
  $region19: #{cnn_forward.1} parent=0 // pred_check_branch
    %23 = sbr.rel (0) target = $region21
  $region20: #{cnn_forward.1} parent=0 // pred_region
    _
  $region21: #{cnn_forward.1} parent=0 // pred_fallthru
    _
  // Predicated region
  $region22: #{cnn_forward.1} parent=0 // pred_check
    _
  $region23: #{cnn_forward.1} parent=0 // pred_check_branch
    %25 = sbr.rel (0) target = $region25
  $region24: #{cnn_forward.1} parent=0 // pred_region
    _
  $region25: #{cnn_forward.1} parent=0 // pred_fallthru
    _
  // Predicated region
  $region26: #{cnn_forward.1} parent=0 // pred_check
    _
  $region27: #{cnn_forward.1} parent=0 // pred_check_branch
    %27 = sbr.rel (0) target = $region29
  $region28: #{cnn_forward.1} parent=0 // pred_region
    _
  $region29: #{cnn_forward.1} parent=0 // pred_fallthru
    _
  %v28 = vld [vmem:[%s1] sm:$0xff]
  %v29 = vld [vmem:[%s1 + $0x8] sm:$0xff]
  %v30 = vld [vmem:[%s1 + $0x10] sm:$0xff]
  %v31 = vld [vmem:[%s1 + $0x18] sm:$0xff]
  %v32 = vld [vmem:[%s1 + $0x20] sm:$0xff]
  %v33 = vld [vmem:[%s1 + $0x28] sm:$0xff]
  %v34 = vld [vmem:[%s1 + $0x30] sm:$0xff]
  %v35 = vld [vmem:[%s1 + $0x38] sm:$0xff]
  %v36 = vld [vmem:[%s1 + $0x40] sm:$0xff]
  %v37 = vld [vmem:[%s1 + $0x48] sm:$0xff]
  %v38 = vld [vmem:[%s1 + $0x50] sm:$0xff]
  %v39 = vld [vmem:[%s1 + $0x58] sm:$0xff]
  %v40 = vld [vmem:[%s1 + $0x60] sm:$0xff]
  %v41 = vld [vmem:[%s1 + $0x68] sm:$0xff]
  %v42 = vld [vmem:[%s1 + $0x70] sm:$0xff]
  %v43 = vld [vmem:[%s1 + $0x78] sm:$0xff]
  %v44 = vld [vmem:[%s1 + $0x80] sm:$0xff]
  %v45 = vld [vmem:[%s1 + $0x88] sm:$0xff]
  %v46 = vld [vmem:[%s1 + $0x90] sm:$0xff]
  %v47 = vld [vmem:[%s1 + $0x98] sm:$0xff]
  %v48 = vld [vmem:[%s1 + $0xa0] sm:$0xff]
  %v49 = vld [vmem:[%s1 + $0xa8] sm:$0xff]
  %v50 = vld [vmem:[%s1 + $0xb0] sm:$0xff]
  %v51 = vld [vmem:[%s1 + $0xb8] sm:$0xff]
  %v52 = vld [vmem:[%s1 + $0xc0] sm:$0xff]
  %v53 = vld [vmem:[%s1 + $0xc8] sm:$0xff]
  %v54 = vld [vmem:[%s1 + $0xd0] sm:$0xff]
  %v55 = vld [vmem:[%s1 + $0xd8] sm:$0xff]
  %v56 = vld [vmem:[%s1 + $0xe0] sm:$0xff]
  %v57 = vld [vmem:[%s1 + $0xe8] sm:$0xff]
  %v58 = vld [vmem:[%s1 + $0xf0] sm:$0xff]
  %v59 = vld [vmem:[%s1 + $0xf8] sm:$0xff]
  %v60 = vld [vmem:[%s1 + $0x100] sm:$0xff]
  %v61 = vld [vmem:[%s1 + $0x108] sm:$0xff]
  %v62 = vld [vmem:[%s1 + $0x110] sm:$0xff]
  %v63 = vld [vmem:[%s1 + $0x118] sm:$0xff]
  %v64 = vld [vmem:[%s1 + $0x120] sm:$0xff]
  %v65 = vld [vmem:[%s1 + $0x128] sm:$0xff]
  %v66 = vld [vmem:[%s1 + $0x130] sm:$0xff]
  %v67 = vld [vmem:[%s1 + $0x138] sm:$0xff]
  %v68 = vld [vmem:[%s1 + $0x140] sm:$0xff]
  %v69 = vld [vmem:[%s1 + $0x148] sm:$0xff]
  %v70 = vld [vmem:[%s1 + $0x150] sm:$0xff]
  %v71 = vld [vmem:[%s1 + $0x158] sm:$0xff]
  %v72 = vld [vmem:[%s1 + $0x160] sm:$0xff]
  %v73 = vld [vmem:[%s1 + $0x168] sm:$0xff]
  %v74 = vld [vmem:[%s1 + $0x170] sm:$0xff]
  %v75 = vld [vmem:[%s1 + $0x178] sm:$0xff]
  %v76 = vld [vmem:[%s1 + $0x180] sm:$0xff]
  %v77 = vld [vmem:[%s1 + $0x188] sm:$0xff]
  %v78 = vld [vmem:[%s1 + $0x190] sm:$0xff]
  %v79 = vld [vmem:[%s1 + $0x198] sm:$0xff]
  %v80 = vld [vmem:[%s1 + $0x1a0] sm:$0xff]
  %v81 = vld [vmem:[%s1 + $0x1a8] sm:$0xff]
  %v82 = vld [vmem:[%s1 + $0x1b0] sm:$0xff]
  %v83 = vld [vmem:[%s1 + $0x1b8] sm:$0xff]
  %v84 = vld [vmem:[%s1 + $0x1c0] sm:$0xff]
  %v85 = vld [vmem:[%s1 + $0x1c8] sm:$0xff]
  %v86 = vld [vmem:[%s1 + $0x1d0] sm:$0xff]
  %v87 = vld [vmem:[%s1 + $0x1d8] sm:$0xff]
  %v88 = vld [vmem:[%s1 + $0x1e0] sm:$0xff]
  %v89 = vld [vmem:[%s1 + $0x1e8] sm:$0xff]
  %v90 = vld [vmem:[%s1 + $0x1f0] sm:$0xff]
  %v91 = vld [vmem:[%s1 + $0x1f8] sm:$0xff]
  %v92 = vld [vmem:[%s0] sm:$0xff]
  %v93 = vld [vmem:[%s0 + $0x8] sm:$0xff]
  %v94 = vld [vmem:[%s0 + $0x10] sm:$0xff]
  %v95 = vld [vmem:[%s0 + $0x18] sm:$0xff]
  %v96 = vld [vmem:[%s0 + $0x20] sm:$0xff]
  %v97 = vld [vmem:[%s0 + $0x28] sm:$0xff]
  %v98 = vld [vmem:[%s0 + $0x30] sm:$0xff]
  %v99 = vld [vmem:[%s0 + $0x38] sm:$0xff]
  %v100 = vld [vmem:[%s2] sm:$0xff]
  %v101 = vld [vmem:[%s2 + $0x8] sm:$0xff]
  %v102 = vld [vmem:[%s2 + $0x10] sm:$0xff]
  %v103 = vld [vmem:[%s2 + $0x18] sm:$0xff]
  %v104 = vld [vmem:[%s2 + $0x20] sm:$0xff]
  %v105 = vld [vmem:[%s2 + $0x28] sm:$0xff]
  %v106 = vld [vmem:[%s2 + $0x30] sm:$0xff]
  %v107 = vld [vmem:[%s2 + $0x38] sm:$0xff]
  %v108 = vld [vmem:[%s2 + $0x40] sm:$0xff]
  %v109 = vld [vmem:[%s2 + $0x48] sm:$0xff]
  %v110 = vld [vmem:[%s2 + $0x50] sm:$0xff]
  %v111 = vld [vmem:[%s2 + $0x58] sm:$0xff]
  %v112 = vld [vmem:[%s2 + $0x60] sm:$0xff]
  %v113 = vld [vmem:[%s2 + $0x68] sm:$0xff]
  %v114 = vld [vmem:[%s2 + $0x70] sm:$0xff]
  %v115 = vld [vmem:[%s2 + $0x78] sm:$0xff]
  %v116 = vld [vmem:[%s2 + $0x80] sm:$0xff]
  %v117 = vld [vmem:[%s2 + $0x88] sm:$0xff]
  %v118 = vld [vmem:[%s2 + $0x90] sm:$0xff]
  %v119 = vld [vmem:[%s2 + $0x98] sm:$0xff]
  %v120 = vld [vmem:[%s2 + $0xa0] sm:$0xff]
  %v121 = vld [vmem:[%s2 + $0xa8] sm:$0xff]
  %v122 = vld [vmem:[%s2 + $0xb0] sm:$0xff]
  %v123 = vld [vmem:[%s2 + $0xb8] sm:$0xff]
  %v124 = vld [vmem:[%s2 + $0xc0] sm:$0xff]
  %v125 = vld [vmem:[%s2 + $0xc8] sm:$0xff]
  %v126 = vld [vmem:[%s2 + $0xd0] sm:$0xff]
  %v127 = vld [vmem:[%s2 + $0xd8] sm:$0xff]
  %v128 = vld [vmem:[%s2 + $0xe0] sm:$0xff]
  %v129 = vld [vmem:[%s2 + $0xe8] sm:$0xff]
  %v130 = vld [vmem:[%s2 + $0xf0] sm:$0xff]
  %v131 = vld [vmem:[%s2 + $0xf8] sm:$0xff]
  %v132 = vld [vmem:[%s2 + $0x100] sm:$0xff]
  %v133 = vld [vmem:[%s2 + $0x108] sm:$0xff]
  %v134 = vld [vmem:[%s2 + $0x110] sm:$0xff]
  %v135 = vld [vmem:[%s2 + $0x118] sm:$0xff]
  %v136 = vld [vmem:[%s2 + $0x120] sm:$0xff]
  %v137 = vld [vmem:[%s2 + $0x128] sm:$0xff]
  %v138 = vld [vmem:[%s2 + $0x130] sm:$0xff]
  %v139 = vld [vmem:[%s2 + $0x138] sm:$0xff]
  %v140 = vld [vmem:[%s2 + $0x140] sm:$0xff]
  %v141 = vld [vmem:[%s2 + $0x148] sm:$0xff]
  %v142 = vld [vmem:[%s2 + $0x150] sm:$0xff]
  %v143 = vld [vmem:[%s2 + $0x158] sm:$0xff]
  %v144 = vld [vmem:[%s2 + $0x160] sm:$0xff]
  %v145 = vld [vmem:[%s2 + $0x168] sm:$0xff]
  %v146 = vld [vmem:[%s2 + $0x170] sm:$0xff]
  %v147 = vld [vmem:[%s2 + $0x178] sm:$0xff]
  %v148 = vld [vmem:[%s2 + $0x180] sm:$0xff]
  %v149 = vld [vmem:[%s2 + $0x188] sm:$0xff]
  %v150 = vld [vmem:[%s2 + $0x190] sm:$0xff]
  %v151 = vld [vmem:[%s2 + $0x198] sm:$0xff]
  %v152 = vld [vmem:[%s2 + $0x1a0] sm:$0xff]
  %v153 = vld [vmem:[%s2 + $0x1a8] sm:$0xff]
  %v154 = vld [vmem:[%s2 + $0x1b0] sm:$0xff]
  %v155 = vld [vmem:[%s2 + $0x1b8] sm:$0xff]
  %v156 = vld [vmem:[%s2 + $0x1c0] sm:$0xff]
  %v157 = vld [vmem:[%s2 + $0x1c8] sm:$0xff]
  %v158 = vld [vmem:[%s2 + $0x1d0] sm:$0xff]
  %v159 = vld [vmem:[%s2 + $0x1d8] sm:$0xff]
  %v160 = vld [vmem:[%s2 + $0x1e0] sm:$0xff]
  %v161 = vld [vmem:[%s2 + $0x1e8] sm:$0xff]
  %v162 = vld [vmem:[%s2 + $0x1f0] sm:$0xff]
  %v163 = vld [vmem:[%s2 + $0x1f8] sm:$0xff]
  %165 = vset.pattern.permute.xlu0 0
  %166 = vperm.xlu0 %165, %v100
  %v167 = vpop.permute.xlu0 %166
  %170 = vset.pattern.permute.xlu0 0
  %171 = vperm.xlu0 %170, %v101
  %v172 = vpop.permute.xlu0 %171
  %175 = vset.pattern.permute.xlu0 0
  %176 = vperm.xlu0 %175, %v102
  %v177 = vpop.permute.xlu0 %176
  %180 = vset.pattern.permute.xlu0 0
  %181 = vperm.xlu0 %180, %v103
  %v182 = vpop.permute.xlu0 %181
  %185 = vset.pattern.permute.xlu0 0
  %186 = vperm.xlu0 %185, %v104
  %v187 = vpop.permute.xlu0 %186
  %190 = vset.pattern.permute.xlu0 0
  %191 = vperm.xlu0 %190, %v105
  %v192 = vpop.permute.xlu0 %191
  %195 = vset.pattern.permute.xlu0 0
  %196 = vperm.xlu0 %195, %v106
  %v197 = vpop.permute.xlu0 %196
  %200 = vset.pattern.permute.xlu0 0
  %201 = vperm.xlu0 %200, %v107
  %v202 = vpop.permute.xlu0 %201
  %205 = vset.pattern.permute.xlu0 0
  %206 = vperm.xlu0 %205, %v108
  %v207 = vpop.permute.xlu0 %206
  %210 = vset.pattern.permute.xlu0 0
  %211 = vperm.xlu0 %210, %v109
  %v212 = vpop.permute.xlu0 %211
  %215 = vset.pattern.permute.xlu0 0
  %216 = vperm.xlu0 %215, %v110
  %v217 = vpop.permute.xlu0 %216
  %220 = vset.pattern.permute.xlu0 0
  %221 = vperm.xlu0 %220, %v111
  %v222 = vpop.permute.xlu0 %221
  %225 = vset.pattern.permute.xlu0 0
  %226 = vperm.xlu0 %225, %v112
  %v227 = vpop.permute.xlu0 %226
  %230 = vset.pattern.permute.xlu0 0
  %231 = vperm.xlu0 %230, %v113
  %v232 = vpop.permute.xlu0 %231
  %235 = vset.pattern.permute.xlu0 0
  %236 = vperm.xlu0 %235, %v114
  %v237 = vpop.permute.xlu0 %236
  %240 = vset.pattern.permute.xlu0 0
  %241 = vperm.xlu0 %240, %v115
  %v242 = vpop.permute.xlu0 %241
  %245 = vset.pattern.permute.xlu0 0
  %246 = vperm.xlu0 %245, %v116
  %v247 = vpop.permute.xlu0 %246
  %250 = vset.pattern.permute.xlu0 0
  %251 = vperm.xlu0 %250, %v117
  %v252 = vpop.permute.xlu0 %251
  %255 = vset.pattern.permute.xlu0 0
  %256 = vperm.xlu0 %255, %v118
  %v257 = vpop.permute.xlu0 %256
  %260 = vset.pattern.permute.xlu0 0
  %261 = vperm.xlu0 %260, %v119
  %v262 = vpop.permute.xlu0 %261
  %265 = vset.pattern.permute.xlu0 0
  %266 = vperm.xlu0 %265, %v120
  %v267 = vpop.permute.xlu0 %266
  %270 = vset.pattern.permute.xlu0 0
  %271 = vperm.xlu0 %270, %v121
  %v272 = vpop.permute.xlu0 %271
  %275 = vset.pattern.permute.xlu0 0
  %276 = vperm.xlu0 %275, %v122
  %v277 = vpop.permute.xlu0 %276
  %280 = vset.pattern.permute.xlu0 0
  %281 = vperm.xlu0 %280, %v123
  %v282 = vpop.permute.xlu0 %281
  %285 = vset.pattern.permute.xlu0 0
  %286 = vperm.xlu0 %285, %v124
  %v287 = vpop.permute.xlu0 %286
  %290 = vset.pattern.permute.xlu0 0
  %291 = vperm.xlu0 %290, %v125
  %v292 = vpop.permute.xlu0 %291
  %295 = vset.pattern.permute.xlu0 0
  %296 = vperm.xlu0 %295, %v126
  %v297 = vpop.permute.xlu0 %296
  %300 = vset.pattern.permute.xlu0 0
  %301 = vperm.xlu0 %300, %v127
  %v302 = vpop.permute.xlu0 %301
  %305 = vset.pattern.permute.xlu0 0
  %306 = vperm.xlu0 %305, %v128
  %v307 = vpop.permute.xlu0 %306
  %310 = vset.pattern.permute.xlu0 0
  %311 = vperm.xlu0 %310, %v129
  %v312 = vpop.permute.xlu0 %311
  %315 = vset.pattern.permute.xlu0 0
  %316 = vperm.xlu0 %315, %v130
  %v317 = vpop.permute.xlu0 %316
  %320 = vset.pattern.permute.xlu0 0
  %321 = vperm.xlu0 %320, %v131
  %v322 = vpop.permute.xlu0 %321
  %325 = vset.pattern.permute.xlu0 0
  %326 = vperm.xlu0 %325, %v132
  %v327 = vpop.permute.xlu0 %326
  %330 = vset.pattern.permute.xlu0 0
  %331 = vperm.xlu0 %330, %v133
  %v332 = vpop.permute.xlu0 %331
  %335 = vset.pattern.permute.xlu0 0
  %336 = vperm.xlu0 %335, %v134
  %v337 = vpop.permute.xlu0 %336
  %340 = vset.pattern.permute.xlu0 0
  %341 = vperm.xlu0 %340, %v135
  %v342 = vpop.permute.xlu0 %341
  %345 = vset.pattern.permute.xlu0 0
  %346 = vperm.xlu0 %345, %v136
  %v347 = vpop.permute.xlu0 %346
  %350 = vset.pattern.permute.xlu0 0
  %351 = vperm.xlu0 %350, %v137
  %v352 = vpop.permute.xlu0 %351
  %355 = vset.pattern.permute.xlu0 0
  %356 = vperm.xlu0 %355, %v138
  %v357 = vpop.permute.xlu0 %356
  %360 = vset.pattern.permute.xlu0 0
  %361 = vperm.xlu0 %360, %v139
  %v362 = vpop.permute.xlu0 %361
  %365 = vset.pattern.permute.xlu0 0
  %366 = vperm.xlu0 %365, %v140
  %v367 = vpop.permute.xlu0 %366
  %370 = vset.pattern.permute.xlu0 0
  %371 = vperm.xlu0 %370, %v141
  %v372 = vpop.permute.xlu0 %371
  %375 = vset.pattern.permute.xlu0 0
  %376 = vperm.xlu0 %375, %v142
  %v377 = vpop.permute.xlu0 %376
  %380 = vset.pattern.permute.xlu0 0
  %381 = vperm.xlu0 %380, %v143
  %v382 = vpop.permute.xlu0 %381
  %385 = vset.pattern.permute.xlu0 0
  %386 = vperm.xlu0 %385, %v144
  %v387 = vpop.permute.xlu0 %386
  %390 = vset.pattern.permute.xlu0 0
  %391 = vperm.xlu0 %390, %v145
  %v392 = vpop.permute.xlu0 %391
  %395 = vset.pattern.permute.xlu0 0
  %396 = vperm.xlu0 %395, %v146
  %v397 = vpop.permute.xlu0 %396
  %400 = vset.pattern.permute.xlu0 0
  %401 = vperm.xlu0 %400, %v147
  %v402 = vpop.permute.xlu0 %401
  %405 = vset.pattern.permute.xlu0 0
  %406 = vperm.xlu0 %405, %v148
  %v407 = vpop.permute.xlu0 %406
  %410 = vset.pattern.permute.xlu0 0
  %411 = vperm.xlu0 %410, %v149
  %v412 = vpop.permute.xlu0 %411
  %415 = vset.pattern.permute.xlu0 0
  %416 = vperm.xlu0 %415, %v150
  %v417 = vpop.permute.xlu0 %416
  %420 = vset.pattern.permute.xlu0 0
  %421 = vperm.xlu0 %420, %v151
  %v422 = vpop.permute.xlu0 %421
  %425 = vset.pattern.permute.xlu0 0
  %426 = vperm.xlu0 %425, %v152
  %v427 = vpop.permute.xlu0 %426
  %430 = vset.pattern.permute.xlu0 0
  %431 = vperm.xlu0 %430, %v153
  %v432 = vpop.permute.xlu0 %431
  %435 = vset.pattern.permute.xlu0 0
  %436 = vperm.xlu0 %435, %v154
  %v437 = vpop.permute.xlu0 %436
  %440 = vset.pattern.permute.xlu0 0
  %441 = vperm.xlu0 %440, %v155
  %v442 = vpop.permute.xlu0 %441
  %445 = vset.pattern.permute.xlu0 0
  %446 = vperm.xlu0 %445, %v156
  %v447 = vpop.permute.xlu0 %446
  %450 = vset.pattern.permute.xlu0 0
  %451 = vperm.xlu0 %450, %v157
  %v452 = vpop.permute.xlu0 %451
  %455 = vset.pattern.permute.xlu0 0
  %456 = vperm.xlu0 %455, %v158
  %v457 = vpop.permute.xlu0 %456
  %460 = vset.pattern.permute.xlu0 0
  %461 = vperm.xlu0 %460, %v159
  %v462 = vpop.permute.xlu0 %461
  %465 = vset.pattern.permute.xlu0 0
  %466 = vperm.xlu0 %465, %v160
  %v467 = vpop.permute.xlu0 %466
  %470 = vset.pattern.permute.xlu0 0
  %471 = vperm.xlu0 %470, %v161
  %v472 = vpop.permute.xlu0 %471
  %475 = vset.pattern.permute.xlu0 0
  %476 = vperm.xlu0 %475, %v162
  %v477 = vpop.permute.xlu0 %476
  %480 = vset.pattern.permute.xlu0 0
  %481 = vperm.xlu0 %480, %v163
  %v482 = vpop.permute.xlu0 %481
  %vm484 = vcmask 523264
  %v486 = vsel %vm484, %v28, 0
  %v489 = vsel %vm484, %v29, 0
  %v492 = vsel %vm484, %v30, 0
  %v495 = vsel %vm484, %v31, 0
  %v498 = vsel %vm484, %v32, 0
  %v501 = vsel %vm484, %v33, 0
  %v504 = vsel %vm484, %v34, 0
  %v507 = vsel %vm484, %v35, 0
  %v510 = vsel %vm484, %v36, 0
  %v513 = vsel %vm484, %v37, 0
  %v516 = vsel %vm484, %v38, 0
  %v519 = vsel %vm484, %v39, 0
  %v522 = vsel %vm484, %v40, 0
  %v525 = vsel %vm484, %v41, 0
  %v528 = vsel %vm484, %v42, 0
  %v531 = vsel %vm484, %v43, 0
  %v534 = vsel %vm484, %v44, 0
  %v537 = vsel %vm484, %v45, 0
  %v540 = vsel %vm484, %v46, 0
  %v543 = vsel %vm484, %v47, 0
  %v546 = vsel %vm484, %v48, 0
  %v549 = vsel %vm484, %v49, 0
  %v552 = vsel %vm484, %v50, 0
  %v555 = vsel %vm484, %v51, 0
  %v558 = vsel %vm484, %v52, 0
  %v561 = vsel %vm484, %v53, 0
  %v564 = vsel %vm484, %v54, 0
  %v567 = vsel %vm484, %v55, 0
  %v570 = vsel %vm484, %v56, 0
  %v573 = vsel %vm484, %v57, 0
  %v576 = vsel %vm484, %v58, 0
  %v579 = vsel %vm484, %v59, 0
  %v582 = vsel %vm484, %v60, 0
  %v585 = vsel %vm484, %v61, 0
  %v588 = vsel %vm484, %v62, 0
  %v591 = vsel %vm484, %v63, 0
  %v594 = vsel %vm484, %v64, 0
  %v597 = vsel %vm484, %v65, 0
  %v600 = vsel %vm484, %v66, 0
  %v603 = vsel %vm484, %v67, 0
  %v606 = vsel %vm484, %v68, 0
  %v609 = vsel %vm484, %v69, 0
  %v612 = vsel %vm484, %v70, 0
  %v615 = vsel %vm484, %v71, 0
  %v618 = vsel %vm484, %v72, 0
  %v621 = vsel %vm484, %v73, 0
  %v624 = vsel %vm484, %v74, 0
  %v627 = vsel %vm484, %v75, 0
  %v630 = vsel %vm484, %v76, 0
  %v633 = vsel %vm484, %v77, 0
  %v636 = vsel %vm484, %v78, 0
  %v639 = vsel %vm484, %v79, 0
  %v642 = vsel %vm484, %v80, 0
  %v645 = vsel %vm484, %v81, 0
  %v648 = vsel %vm484, %v82, 0
  %v651 = vsel %vm484, %v83, 0
  %v654 = vsel %vm484, %v84, 0
  %v657 = vsel %vm484, %v85, 0
  %v660 = vsel %vm484, %v86, 0
  %v663 = vsel %vm484, %v87, 0
  %v666 = vsel %vm484, %v88, 0
  %v669 = vsel %vm484, %v89, 0
  %v672 = vsel %vm484, %v90, 0
  %v675 = vsel %vm484, %v91, 0
  %677 = vmatprep.subr.mxu0 0.0
  %678 = vmatpush1.msra.mxu0 0.0
  %679 = vmatprep.subr.mxu0 0.0
  %680 = vmatpush1.msra.mxu0 0.0
  %681 = vmatprep.subr.mxu0 0.0
  %682 = vmatpush1.msra.mxu0 0.0
  %683 = vmatprep.subr.mxu0 0.0
  %684 = vmatpush1.msra.mxu0 0.0
  %685 = vmatprep.subr.mxu0 0.0
  %686 = vmatpush1.msra.mxu0 0.0
  %687 = vmatprep.subr.mxu0 0.0
  %688 = vmatpush1.msra.mxu0 0.0
  %689 = vmatprep.subr.mxu0 0.0
  %690 = vmatpush1.msra.mxu0 0.0
  %691 = vmatprep.subr.mxu0 0.0
  %692 = vmatpush1.msra.mxu0 0.0
  %693 = vmatprep.subr.mxu0 0.0
  %694 = vmatpush1.msra.mxu0 %v99
  %695 = vmatprep.subr.mxu0 0.0
  %696 = vmatpush1.msra.mxu0 %v98
  %697 = vmatprep.subr.mxu0 0.0
  %698 = vmatpush1.msra.mxu0 %v97
  %699 = vmatprep.subr.mxu0 0.0
  %700 = vmatpush1.msra.mxu0 %v96
  %701 = vmatprep.subr.mxu0 0.0
  %702 = vmatpush1.msra.mxu0 %v95
  %703 = vmatprep.subr.mxu0 0.0
  %704 = vmatpush1.msra.mxu0 %v94
  %705 = vmatprep.subr.mxu0 0.0
  %706 = vmatpush1.msra.mxu0 %v93
  %707 = vmatprep.subr.mxu0 0.0
  %708 = vmatpush1.msra.mxu0 %v92
  %709 = vmatprep.subr.mxu0 0.0
  %710 = vmatpush2.msra.mxu0 0.0
  %711 = vmatprep.subr.mxu0 0.0
  %712 = vmatpush2.msra.mxu0 0.0
  %713 = vmatprep.subr.mxu0 0.0
  %714 = vmatpush2.msra.mxu0 0.0
  %715 = vmatprep.subr.mxu0 0.0
  %716 = vmatpush2.msra.mxu0 0.0
  %717 = vmatprep.subr.mxu0 0.0
  %718 = vmatpush2.msra.mxu0 0.0
  %719 = vmatprep.subr.mxu0 0.0
  %720 = vmatpush2.msra.mxu0 0.0
  %721 = vmatprep.subr.mxu0 0.0
  %722 = vmatpush2.msra.mxu0 0.0
  %723 = vmatprep.subr.mxu0 0.0
  %724 = vmatpush2.msra.mxu0 0.0
  %725 = vmatprep.subr.mxu0 0.0
  %726 = vmatpush2.msra.mxu0 0.0
  %727 = vmatprep.subr.mxu0 0.0
  %728 = vmatpush2.msra.mxu0 0.0
  %729 = vmatprep.subr.mxu0 0.0
  %730 = vmatpush2.msra.mxu0 0.0
  %731 = vmatprep.subr.mxu0 0.0
  %732 = vmatpush2.msra.mxu0 0.0
  %733 = vmatprep.subr.mxu0 0.0
  %734 = vmatpush2.msra.mxu0 0.0
  %735 = vmatprep.subr.mxu0 0.0
  %736 = vmatpush2.msra.mxu0 0.0
  %737 = vmatprep.subr.mxu0 0.0
  %738 = vmatpush2.msra.mxu0 0.0
  %739 = vmatprep.subr.mxu0 0.0
  %740 = vmatpush2.msra.mxu0 0.0
  %741 = vmatprep.mubr.f32.mxu0 0.0
  %742 = vmatmul.mubr.f32.gmra.mxu0 %v486
  %v743 = vpop.f32.mrf.mxu0
  %v744 = vadd.f32 %v167, %v743
  %v745 = vpop.f32.mrf.mxu0
  %746 = vmatprep.mubr.f32.mxu0 0.0
  %747 = vmatmul.mubr.f32.gmra.mxu0 %v489
  %v748 = vpop.f32.mrf.mxu0
  %v749 = vadd.f32 %v172, %v748
  %v750 = vpop.f32.mrf.mxu0
  %751 = vmatprep.mubr.f32.mxu0 0.0
  %752 = vmatmul.mubr.f32.gmra.mxu0 %v492
  %v753 = vpop.f32.mrf.mxu0
  %v754 = vadd.f32 %v177, %v753
  %v755 = vpop.f32.mrf.mxu0
  %756 = vmatprep.mubr.f32.mxu0 0.0
  %757 = vmatmul.mubr.f32.gmra.mxu0 %v495
  %v758 = vpop.f32.mrf.mxu0
  %v759 = vadd.f32 %v182, %v758
  %v760 = vpop.f32.mrf.mxu0
  %761 = vmatprep.mubr.f32.mxu0 0.0
  %762 = vmatmul.mubr.f32.gmra.mxu0 %v498
  %v763 = vpop.f32.mrf.mxu0
  %v764 = vadd.f32 %v187, %v763
  %v765 = vpop.f32.mrf.mxu0
  %766 = vmatprep.mubr.f32.mxu0 0.0
  %767 = vmatmul.mubr.f32.gmra.mxu0 %v501
  %v768 = vpop.f32.mrf.mxu0
  %v769 = vadd.f32 %v192, %v768
  %v770 = vpop.f32.mrf.mxu0
  %771 = vmatprep.mubr.f32.mxu0 0.0
  %772 = vmatmul.mubr.f32.gmra.mxu0 %v504
  %v773 = vpop.f32.mrf.mxu0
  %v774 = vadd.f32 %v197, %v773
  %v775 = vpop.f32.mrf.mxu0
  %776 = vmatprep.mubr.f32.mxu0 0.0
  %777 = vmatmul.mubr.f32.gmra.mxu0 %v507
  %v778 = vpop.f32.mrf.mxu0
  %v779 = vadd.f32 %v202, %v778
  %v780 = vpop.f32.mrf.mxu0
  %781 = vmatprep.mubr.f32.mxu0 0.0
  %782 = vmatmul.mubr.f32.gmra.mxu0 %v510
  %v783 = vpop.f32.mrf.mxu0
  %v784 = vadd.f32 %v207, %v783
  %v785 = vpop.f32.mrf.mxu0
  %786 = vmatprep.mubr.f32.mxu0 0.0
  %787 = vmatmul.mubr.f32.gmra.mxu0 %v513
  %v788 = vpop.f32.mrf.mxu0
  %v789 = vadd.f32 %v212, %v788
  %v790 = vpop.f32.mrf.mxu0
  %791 = vmatprep.mubr.f32.mxu0 0.0
  %792 = vmatmul.mubr.f32.gmra.mxu0 %v516
  %v793 = vpop.f32.mrf.mxu0
  %v794 = vadd.f32 %v217, %v793
  %v795 = vpop.f32.mrf.mxu0
  %796 = vmatprep.mubr.f32.mxu0 0.0
  %797 = vmatmul.mubr.f32.gmra.mxu0 %v519
  %v798 = vpop.f32.mrf.mxu0
  %v799 = vadd.f32 %v222, %v798
  %v800 = vpop.f32.mrf.mxu0
  %801 = vmatprep.mubr.f32.mxu0 0.0
  %802 = vmatmul.mubr.f32.gmra.mxu0 %v522
  %v803 = vpop.f32.mrf.mxu0
  %v804 = vadd.f32 %v227, %v803
  %v805 = vpop.f32.mrf.mxu0
  %806 = vmatprep.mubr.f32.mxu0 0.0
  %807 = vmatmul.mubr.f32.gmra.mxu0 %v525
  %v808 = vpop.f32.mrf.mxu0
  %v809 = vadd.f32 %v232, %v808
  %v810 = vpop.f32.mrf.mxu0
  %811 = vmatprep.mubr.f32.mxu0 0.0
  %812 = vmatmul.mubr.f32.gmra.mxu0 %v528
  %v813 = vpop.f32.mrf.mxu0
  %v814 = vadd.f32 %v237, %v813
  %v815 = vpop.f32.mrf.mxu0
  %816 = vmatprep.mubr.f32.mxu0 0.0
  %817 = vmatmul.mubr.f32.gmra.mxu0 %v531
  %v818 = vpop.f32.mrf.mxu0
  %v819 = vadd.f32 %v242, %v818
  %v820 = vpop.f32.mrf.mxu0
  %821 = vmatprep.mubr.f32.mxu0 0.0
  %822 = vmatmul.mubr.f32.gmra.mxu0 %v534
  %v823 = vpop.f32.mrf.mxu0
  %v824 = vadd.f32 %v247, %v823
  %v825 = vpop.f32.mrf.mxu0
  %826 = vmatprep.mubr.f32.mxu0 0.0
  %827 = vmatmul.mubr.f32.gmra.mxu0 %v537
  %v828 = vpop.f32.mrf.mxu0
  %v829 = vadd.f32 %v252, %v828
  %v830 = vpop.f32.mrf.mxu0
  %831 = vmatprep.mubr.f32.mxu0 0.0
  %832 = vmatmul.mubr.f32.gmra.mxu0 %v540
  %v833 = vpop.f32.mrf.mxu0
  %v834 = vadd.f32 %v257, %v833
  %v835 = vpop.f32.mrf.mxu0
  %836 = vmatprep.mubr.f32.mxu0 0.0
  %837 = vmatmul.mubr.f32.gmra.mxu0 %v543
  %v838 = vpop.f32.mrf.mxu0
  %v839 = vadd.f32 %v262, %v838
  %v840 = vpop.f32.mrf.mxu0
  %841 = vmatprep.mubr.f32.mxu0 0.0
  %842 = vmatmul.mubr.f32.gmra.mxu0 %v546
  %v843 = vpop.f32.mrf.mxu0
  %v844 = vadd.f32 %v267, %v843
  %v845 = vpop.f32.mrf.mxu0
  %846 = vmatprep.mubr.f32.mxu0 0.0
  %847 = vmatmul.mubr.f32.gmra.mxu0 %v549
  %v848 = vpop.f32.mrf.mxu0
  %v849 = vadd.f32 %v272, %v848
  %v850 = vpop.f32.mrf.mxu0
  %851 = vmatprep.mubr.f32.mxu0 0.0
  %852 = vmatmul.mubr.f32.gmra.mxu0 %v552
  %v853 = vpop.f32.mrf.mxu0
  %v854 = vadd.f32 %v277, %v853
  %v855 = vpop.f32.mrf.mxu0
  %856 = vmatprep.mubr.f32.mxu0 0.0
  %857 = vmatmul.mubr.f32.gmra.mxu0 %v555
  %v858 = vpop.f32.mrf.mxu0
  %v859 = vadd.f32 %v282, %v858
  %v860 = vpop.f32.mrf.mxu0
  %861 = vmatprep.mubr.f32.mxu0 0.0
  %862 = vmatmul.mubr.f32.gmra.mxu0 %v558
  %v863 = vpop.f32.mrf.mxu0
  %v864 = vadd.f32 %v287, %v863
  %v865 = vpop.f32.mrf.mxu0
  %866 = vmatprep.mubr.f32.mxu0 0.0
  %867 = vmatmul.mubr.f32.gmra.mxu0 %v561
  %v868 = vpop.f32.mrf.mxu0
  %v869 = vadd.f32 %v292, %v868
  %v870 = vpop.f32.mrf.mxu0
  %871 = vmatprep.mubr.f32.mxu0 0.0
  %872 = vmatmul.mubr.f32.gmra.mxu0 %v564
  %v873 = vpop.f32.mrf.mxu0
  %v874 = vadd.f32 %v297, %v873
  %v875 = vpop.f32.mrf.mxu0
  %876 = vmatprep.mubr.f32.mxu0 0.0
  %877 = vmatmul.mubr.f32.gmra.mxu0 %v567
  %v878 = vpop.f32.mrf.mxu0
  %v879 = vadd.f32 %v302, %v878
  %v880 = vpop.f32.mrf.mxu0
  %881 = vmatprep.mubr.f32.mxu0 0.0
  %882 = vmatmul.mubr.f32.gmra.mxu0 %v570
  %v883 = vpop.f32.mrf.mxu0
  %v884 = vadd.f32 %v307, %v883
  %v885 = vpop.f32.mrf.mxu0
  %886 = vmatprep.mubr.f32.mxu0 0.0
  %887 = vmatmul.mubr.f32.gmra.mxu0 %v573
  %v888 = vpop.f32.mrf.mxu0
  %v889 = vadd.f32 %v312, %v888
  %v890 = vpop.f32.mrf.mxu0
  %891 = vmatprep.mubr.f32.mxu0 0.0
  %892 = vmatmul.mubr.f32.gmra.mxu0 %v576
  %v893 = vpop.f32.mrf.mxu0
  %v894 = vadd.f32 %v317, %v893
  %v895 = vpop.f32.mrf.mxu0
  %896 = vmatprep.mubr.f32.mxu0 0.0
  %897 = vmatmul.mubr.f32.gmra.mxu0 %v579
  %v898 = vpop.f32.mrf.mxu0
  %v899 = vadd.f32 %v322, %v898
  %v900 = vpop.f32.mrf.mxu0
  %901 = vmatprep.mubr.f32.mxu0 0.0
  %902 = vmatmul.mubr.f32.gmra.mxu0 %v582
  %v903 = vpop.f32.mrf.mxu0
  %v904 = vadd.f32 %v327, %v903
  %v905 = vpop.f32.mrf.mxu0
  %906 = vmatprep.mubr.f32.mxu0 0.0
  %907 = vmatmul.mubr.f32.gmra.mxu0 %v585
  %v908 = vpop.f32.mrf.mxu0
  %v909 = vadd.f32 %v332, %v908
  %v910 = vpop.f32.mrf.mxu0
  %911 = vmatprep.mubr.f32.mxu0 0.0
  %912 = vmatmul.mubr.f32.gmra.mxu0 %v588
  %v913 = vpop.f32.mrf.mxu0
  %v914 = vadd.f32 %v337, %v913
  %v915 = vpop.f32.mrf.mxu0
  %916 = vmatprep.mubr.f32.mxu0 0.0
  %917 = vmatmul.mubr.f32.gmra.mxu0 %v591
  %v918 = vpop.f32.mrf.mxu0
  %v919 = vadd.f32 %v342, %v918
  %v920 = vpop.f32.mrf.mxu0
  %921 = vmatprep.mubr.f32.mxu0 0.0
  %922 = vmatmul.mubr.f32.gmra.mxu0 %v594
  %v923 = vpop.f32.mrf.mxu0
  %v924 = vadd.f32 %v347, %v923
  %v925 = vpop.f32.mrf.mxu0
  %926 = vmatprep.mubr.f32.mxu0 0.0
  %927 = vmatmul.mubr.f32.gmra.mxu0 %v597
  %v928 = vpop.f32.mrf.mxu0
  %v929 = vadd.f32 %v352, %v928
  %v930 = vpop.f32.mrf.mxu0
  %931 = vmatprep.mubr.f32.mxu0 0.0
  %932 = vmatmul.mubr.f32.gmra.mxu0 %v600
  %v933 = vpop.f32.mrf.mxu0
  %v934 = vadd.f32 %v357, %v933
  %v935 = vpop.f32.mrf.mxu0
  %936 = vmatprep.mubr.f32.mxu0 0.0
  %937 = vmatmul.mubr.f32.gmra.mxu0 %v603
  %v938 = vpop.f32.mrf.mxu0
  %v939 = vadd.f32 %v362, %v938
  %v940 = vpop.f32.mrf.mxu0
  %941 = vmatprep.mubr.f32.mxu0 0.0
  %942 = vmatmul.mubr.f32.gmra.mxu0 %v606
  %v943 = vpop.f32.mrf.mxu0
  %v944 = vadd.f32 %v367, %v943
  %v945 = vpop.f32.mrf.mxu0
  %946 = vmatprep.mubr.f32.mxu0 0.0
  %947 = vmatmul.mubr.f32.gmra.mxu0 %v609
  %v948 = vpop.f32.mrf.mxu0
  %v949 = vadd.f32 %v372, %v948
  %v950 = vpop.f32.mrf.mxu0
  %951 = vmatprep.mubr.f32.mxu0 0.0
  %952 = vmatmul.mubr.f32.gmra.mxu0 %v612
  %v953 = vpop.f32.mrf.mxu0
  %v954 = vadd.f32 %v377, %v953
  %v955 = vpop.f32.mrf.mxu0
  %956 = vmatprep.mubr.f32.mxu0 0.0
  %957 = vmatmul.mubr.f32.gmra.mxu0 %v615
  %v958 = vpop.f32.mrf.mxu0
  %v959 = vadd.f32 %v382, %v958
  %v960 = vpop.f32.mrf.mxu0
  %961 = vmatprep.mubr.f32.mxu0 0.0
  %962 = vmatmul.mubr.f32.gmra.mxu0 %v618
  %v963 = vpop.f32.mrf.mxu0
  %v964 = vadd.f32 %v387, %v963
  %v965 = vpop.f32.mrf.mxu0
  %966 = vmatprep.mubr.f32.mxu0 0.0
  %967 = vmatmul.mubr.f32.gmra.mxu0 %v621
  %v968 = vpop.f32.mrf.mxu0
  %v969 = vadd.f32 %v392, %v968
  %v970 = vpop.f32.mrf.mxu0
  %971 = vmatprep.mubr.f32.mxu0 0.0
  %972 = vmatmul.mubr.f32.gmra.mxu0 %v624
  %v973 = vpop.f32.mrf.mxu0
  %v974 = vadd.f32 %v397, %v973
  %v975 = vpop.f32.mrf.mxu0
  %976 = vmatprep.mubr.f32.mxu0 0.0
  %977 = vmatmul.mubr.f32.gmra.mxu0 %v627
  %v978 = vpop.f32.mrf.mxu0
  %v979 = vadd.f32 %v402, %v978
  %v980 = vpop.f32.mrf.mxu0
  %981 = vmatprep.mubr.f32.mxu0 0.0
  %982 = vmatmul.mubr.f32.gmra.mxu0 %v630
  %v983 = vpop.f32.mrf.mxu0
  %v984 = vadd.f32 %v407, %v983
  %v985 = vpop.f32.mrf.mxu0
  %986 = vmatprep.mubr.f32.mxu0 0.0
  %987 = vmatmul.mubr.f32.gmra.mxu0 %v633
  %v988 = vpop.f32.mrf.mxu0
  %v989 = vadd.f32 %v412, %v988
  %v990 = vpop.f32.mrf.mxu0
  %991 = vmatprep.mubr.f32.mxu0 0.0
  %992 = vmatmul.mubr.f32.gmra.mxu0 %v636
  %v993 = vpop.f32.mrf.mxu0
  %v994 = vadd.f32 %v417, %v993
  %v995 = vpop.f32.mrf.mxu0
  %996 = vmatprep.mubr.f32.mxu0 0.0
  %997 = vmatmul.mubr.f32.gmra.mxu0 %v639
  %v998 = vpop.f32.mrf.mxu0
  %v999 = vadd.f32 %v422, %v998
  %v1000 = vpop.f32.mrf.mxu0
  %1001 = vmatprep.mubr.f32.mxu0 0.0
  %1002 = vmatmul.mubr.f32.gmra.mxu0 %v642
  %v1003 = vpop.f32.mrf.mxu0
  %v1004 = vadd.f32 %v427, %v1003
  %v1005 = vpop.f32.mrf.mxu0
  %1006 = vmatprep.mubr.f32.mxu0 0.0
  %1007 = vmatmul.mubr.f32.gmra.mxu0 %v645
  %v1008 = vpop.f32.mrf.mxu0
  %v1009 = vadd.f32 %v432, %v1008
  %v1010 = vpop.f32.mrf.mxu0
  %1011 = vmatprep.mubr.f32.mxu0 0.0
  %1012 = vmatmul.mubr.f32.gmra.mxu0 %v648
  %v1013 = vpop.f32.mrf.mxu0
  %v1014 = vadd.f32 %v437, %v1013
  %v1015 = vpop.f32.mrf.mxu0
  %1016 = vmatprep.mubr.f32.mxu0 0.0
  %1017 = vmatmul.mubr.f32.gmra.mxu0 %v651
  %v1018 = vpop.f32.mrf.mxu0
  %v1019 = vadd.f32 %v442, %v1018
  %v1020 = vpop.f32.mrf.mxu0
  %1021 = vmatprep.mubr.f32.mxu0 0.0
  %1022 = vmatmul.mubr.f32.gmra.mxu0 %v654
  %v1023 = vpop.f32.mrf.mxu0
  %v1024 = vadd.f32 %v447, %v1023
  %v1025 = vpop.f32.mrf.mxu0
  %1026 = vmatprep.mubr.f32.mxu0 0.0
  %1027 = vmatmul.mubr.f32.gmra.mxu0 %v657
  %v1028 = vpop.f32.mrf.mxu0
  %v1029 = vadd.f32 %v452, %v1028
  %v1030 = vpop.f32.mrf.mxu0
  %1031 = vmatprep.mubr.f32.mxu0 0.0
  %1032 = vmatmul.mubr.f32.gmra.mxu0 %v660
  %v1033 = vpop.f32.mrf.mxu0
  %v1034 = vadd.f32 %v457, %v1033
  %v1035 = vpop.f32.mrf.mxu0
  %1036 = vmatprep.mubr.f32.mxu0 0.0
  %1037 = vmatmul.mubr.f32.gmra.mxu0 %v663
  %v1038 = vpop.f32.mrf.mxu0
  %v1039 = vadd.f32 %v462, %v1038
  %v1040 = vpop.f32.mrf.mxu0
  %1041 = vmatprep.mubr.f32.mxu0 0.0
  %1042 = vmatmul.mubr.f32.gmra.mxu0 %v666
  %v1043 = vpop.f32.mrf.mxu0
  %v1044 = vadd.f32 %v467, %v1043
  %v1045 = vpop.f32.mrf.mxu0
  %1046 = vmatprep.mubr.f32.mxu0 0.0
  %1047 = vmatmul.mubr.f32.gmra.mxu0 %v669
  %v1048 = vpop.f32.mrf.mxu0
  %v1049 = vadd.f32 %v472, %v1048
  %v1050 = vpop.f32.mrf.mxu0
  %1051 = vmatprep.mubr.f32.mxu0 0.0
  %1052 = vmatmul.mubr.f32.gmra.mxu0 %v672
  %v1053 = vpop.f32.mrf.mxu0
  %v1054 = vadd.f32 %v477, %v1053
  %v1055 = vpop.f32.mrf.mxu0
  %1056 = vmatprep.mubr.f32.mxu0 0.0
  %1057 = vmatmul.mubr.f32.gmra.mxu0 %v675
  %v1058 = vpop.f32.mrf.mxu0
  %v1059 = vadd.f32 %v482, %v1058
  %v1060 = vpop.f32.mrf.mxu0
  %1061 = vdwg.mxu0
  %v1062 = vmax.f32 %v744, 0.0
  %v1063 = vmax.f32 %v749, 0.0
  %v1064 = vmax.f32 %v754, 0.0
  %v1065 = vmax.f32 %v759, 0.0
  %v1066 = vmax.f32 %v764, 0.0
  %v1067 = vmax.f32 %v769, 0.0
  %v1068 = vmax.f32 %v774, 0.0
  %v1069 = vmax.f32 %v779, 0.0
  %v1070 = vmax.f32 %v784, 0.0
  %v1071 = vmax.f32 %v789, 0.0
  %v1072 = vmax.f32 %v794, 0.0
  %v1073 = vmax.f32 %v799, 0.0
  %v1074 = vmax.f32 %v804, 0.0
  %v1075 = vmax.f32 %v809, 0.0
  %v1076 = vmax.f32 %v814, 0.0
  %v1077 = vmax.f32 %v819, 0.0
  %v1078 = vmax.f32 %v824, 0.0
  %v1079 = vmax.f32 %v829, 0.0
  %v1080 = vmax.f32 %v834, 0.0
  %v1081 = vmax.f32 %v839, 0.0
  %v1082 = vmax.f32 %v844, 0.0
  %v1083 = vmax.f32 %v849, 0.0
  %v1084 = vmax.f32 %v854, 0.0
  %v1085 = vmax.f32 %v859, 0.0
  %v1086 = vmax.f32 %v864, 0.0
  %v1087 = vmax.f32 %v869, 0.0
  %v1088 = vmax.f32 %v874, 0.0
  %v1089 = vmax.f32 %v879, 0.0
  %v1090 = vmax.f32 %v884, 0.0
  %v1091 = vmax.f32 %v889, 0.0
  %v1092 = vmax.f32 %v894, 0.0
  %v1093 = vmax.f32 %v899, 0.0
  %v1094 = vmax.f32 %v904, 0.0
  %v1095 = vmax.f32 %v909, 0.0
  %v1096 = vmax.f32 %v914, 0.0
  %v1097 = vmax.f32 %v919, 0.0
  %v1098 = vmax.f32 %v924, 0.0
  %v1099 = vmax.f32 %v929, 0.0
  %v1100 = vmax.f32 %v934, 0.0
  %v1101 = vmax.f32 %v939, 0.0
  %v1102 = vmax.f32 %v944, 0.0
  %v1103 = vmax.f32 %v949, 0.0
  %v1104 = vmax.f32 %v954, 0.0
  %v1105 = vmax.f32 %v959, 0.0
  %v1106 = vmax.f32 %v964, 0.0
  %v1107 = vmax.f32 %v969, 0.0
  %v1108 = vmax.f32 %v974, 0.0
  %v1109 = vmax.f32 %v979, 0.0
  %v1110 = vmax.f32 %v984, 0.0
  %v1111 = vmax.f32 %v989, 0.0
  %v1112 = vmax.f32 %v994, 0.0
  %v1113 = vmax.f32 %v999, 0.0
  %v1114 = vmax.f32 %v1004, 0.0
  %v1115 = vmax.f32 %v1009, 0.0
  %v1116 = vmax.f32 %v1014, 0.0
  %v1117 = vmax.f32 %v1019, 0.0
  %v1118 = vmax.f32 %v1024, 0.0
  %v1119 = vmax.f32 %v1029, 0.0
  %v1120 = vmax.f32 %v1034, 0.0
  %v1121 = vmax.f32 %v1039, 0.0
  %v1122 = vmax.f32 %v1044, 0.0
  %v1123 = vmax.f32 %v1049, 0.0
  %v1124 = vmax.f32 %v1054, 0.0
  %v1125 = vmax.f32 %v1059, 0.0
  %v1126 = vmax.f32 %v1062, %v1066
  %v1127 = vmax.f32 %v1063, %v1067
  %v1128 = vmax.f32 %v1064, %v1068
  %v1129 = vmax.f32 %v1065, %v1069
  %v1130 = vmax.f32 %v1070, %v1074
  %v1131 = vmax.f32 %v1071, %v1075
  %v1132 = vmax.f32 %v1072, %v1076
  %v1133 = vmax.f32 %v1073, %v1077
  %v1134 = vmax.f32 %v1078, %v1082
  %v1135 = vmax.f32 %v1079, %v1083
  %v1136 = vmax.f32 %v1080, %v1084
  %v1137 = vmax.f32 %v1081, %v1085
  %v1138 = vmax.f32 %v1086, %v1090
  %v1139 = vmax.f32 %v1087, %v1091
  %v1140 = vmax.f32 %v1088, %v1092
  %v1141 = vmax.f32 %v1089, %v1093
  %v1142 = vmax.f32 %v1094, %v1098
  %v1143 = vmax.f32 %v1095, %v1099
  %v1144 = vmax.f32 %v1096, %v1100
  %v1145 = vmax.f32 %v1097, %v1101
  %v1146 = vmax.f32 %v1102, %v1106
  %v1147 = vmax.f32 %v1103, %v1107
  %v1148 = vmax.f32 %v1104, %v1108
  %v1149 = vmax.f32 %v1105, %v1109
  %v1150 = vmax.f32 %v1110, %v1114
  %v1151 = vmax.f32 %v1111, %v1115
  %v1152 = vmax.f32 %v1112, %v1116
  %v1153 = vmax.f32 %v1113, %v1117
  %v1154 = vmax.f32 %v1118, %v1122
  %v1155 = vmax.f32 %v1119, %v1123
  %v1156 = vmax.f32 %v1120, %v1124
  %v1157 = vmax.f32 %v1121, %v1125
  %v1158 = vld [vmem:[%s3] sm:$0xff]
  %v1159 = vld [vmem:[%s3 + $0x8] sm:$0xff]
  %v1160 = vld [vmem:[%s3 + $0x10] sm:$0xff]
  %v1161 = vld [vmem:[%s3 + $0x18] sm:$0xff]
  %v1162 = vld [vmem:[%s3 + $0x20] sm:$0xff]
  %v1163 = vld [vmem:[%s3 + $0x28] sm:$0xff]
  %v1164 = vld [vmem:[%s3 + $0x30] sm:$0xff]
  %v1165 = vld [vmem:[%s3 + $0x38] sm:$0xff]
  %v1166 = vld [vmem:[%s3 + $0x40] sm:$0xff]
  %v1167 = vld [vmem:[%s3 + $0x48] sm:$0xff]
  %v1168 = vld [vmem:[%s3 + $0x50] sm:$0xff]
  %v1169 = vld [vmem:[%s3 + $0x58] sm:$0xff]
  %v1170 = vld [vmem:[%s3 + $0x60] sm:$0xff]
  %v1171 = vld [vmem:[%s3 + $0x68] sm:$0xff]
  %v1172 = vld [vmem:[%s3 + $0x70] sm:$0xff]
  %v1173 = vld [vmem:[%s3 + $0x78] sm:$0xff]
  %v1174 = vld [vmem:[%s3 + $0x80] sm:$0xff]
  %v1175 = vld [vmem:[%s3 + $0x88] sm:$0xff]
  %v1176 = vld [vmem:[%s3 + $0x90] sm:$0xff]
  %v1177 = vld [vmem:[%s3 + $0x98] sm:$0xff]
  %v1178 = vld [vmem:[%s3 + $0xa0] sm:$0xff]
  %v1179 = vld [vmem:[%s3 + $0xa8] sm:$0xff]
  %v1180 = vld [vmem:[%s3 + $0xb0] sm:$0xff]
  %v1181 = vld [vmem:[%s3 + $0xb8] sm:$0xff]
  %v1182 = vld [vmem:[%s3 + $0xc0] sm:$0xff]
  %v1183 = vld [vmem:[%s3 + $0xc8] sm:$0xff]
  %v1184 = vld [vmem:[%s3 + $0xd0] sm:$0xff]
  %v1185 = vld [vmem:[%s3 + $0xd8] sm:$0xff]
  %v1186 = vld [vmem:[%s3 + $0xe0] sm:$0xff]
  %v1187 = vld [vmem:[%s3 + $0xe8] sm:$0xff]
  %v1188 = vld [vmem:[%s3 + $0xf0] sm:$0xff]
  %v1189 = vld [vmem:[%s3 + $0xf8] sm:$0xff]
  %v1190 = vld [vmem:[%s3 + $0x100] sm:$0xff]
  %v1191 = vld [vmem:[%s3 + $0x108] sm:$0xff]
  %v1192 = vld [vmem:[%s3 + $0x110] sm:$0xff]
  %v1193 = vld [vmem:[%s3 + $0x118] sm:$0xff]
  %v1194 = vld [vmem:[%s3 + $0x120] sm:$0xff]
  %v1195 = vld [vmem:[%s3 + $0x128] sm:$0xff]
  %v1196 = vld [vmem:[%s3 + $0x130] sm:$0xff]
  %v1197 = vld [vmem:[%s3 + $0x138] sm:$0xff]
  %v1198 = vld [vmem:[%s3 + $0x140] sm:$0xff]
  %v1199 = vld [vmem:[%s3 + $0x148] sm:$0xff]
  %v1200 = vld [vmem:[%s3 + $0x150] sm:$0xff]
  %v1201 = vld [vmem:[%s3 + $0x158] sm:$0xff]
  %v1202 = vld [vmem:[%s3 + $0x160] sm:$0xff]
  %v1203 = vld [vmem:[%s3 + $0x168] sm:$0xff]
  %v1204 = vld [vmem:[%s3 + $0x170] sm:$0xff]
  %v1205 = vld [vmem:[%s3 + $0x178] sm:$0xff]
  %v1206 = vld [vmem:[%s3 + $0x180] sm:$0xff]
  %v1207 = vld [vmem:[%s3 + $0x188] sm:$0xff]
  %v1208 = vld [vmem:[%s3 + $0x190] sm:$0xff]
  %v1209 = vld [vmem:[%s3 + $0x198] sm:$0xff]
  %v1210 = vld [vmem:[%s3 + $0x1a0] sm:$0xff]
  %v1211 = vld [vmem:[%s3 + $0x1a8] sm:$0xff]
  %v1212 = vld [vmem:[%s3 + $0x1b0] sm:$0xff]
  %v1213 = vld [vmem:[%s3 + $0x1b8] sm:$0xff]
  %v1214 = vld [vmem:[%s3 + $0x1c0] sm:$0xff]
  %v1215 = vld [vmem:[%s3 + $0x1c8] sm:$0xff]
  %v1216 = vld [vmem:[%s3 + $0x1d0] sm:$0xff]
  %v1217 = vld [vmem:[%s3 + $0x1d8] sm:$0xff]
  %v1218 = vld [vmem:[%s3 + $0x1e0] sm:$0xff]
  %v1219 = vld [vmem:[%s3 + $0x1e8] sm:$0xff]
  %v1220 = vld [vmem:[%s3 + $0x1f0] sm:$0xff]
  %v1221 = vld [vmem:[%s3 + $0x1f8] sm:$0xff]
  %v1222 = vld [vmem:[%s4] sm:$0xff]
  %v1223 = vld [vmem:[%s4 + $0x8] sm:$0xff]
  %v1224 = vld [vmem:[%s4 + $0x10] sm:$0xff]
  %v1225 = vld [vmem:[%s4 + $0x18] sm:$0xff]
  %v1226 = vld [vmem:[%s4 + $0x20] sm:$0xff]
  %v1227 = vld [vmem:[%s4 + $0x28] sm:$0xff]
  %v1228 = vld [vmem:[%s4 + $0x30] sm:$0xff]
  %v1229 = vld [vmem:[%s4 + $0x38] sm:$0xff]
  %v1230 = vld [vmem:[%s4 + $0x40] sm:$0xff]
  %v1231 = vld [vmem:[%s4 + $0x48] sm:$0xff]
  %v1232 = vld [vmem:[%s4 + $0x50] sm:$0xff]
  %v1233 = vld [vmem:[%s4 + $0x58] sm:$0xff]
  %v1234 = vld [vmem:[%s4 + $0x60] sm:$0xff]
  %v1235 = vld [vmem:[%s4 + $0x68] sm:$0xff]
  %v1236 = vld [vmem:[%s4 + $0x70] sm:$0xff]
  %v1237 = vld [vmem:[%s4 + $0x78] sm:$0xff]
  %v1238 = vld [vmem:[%s4 + $0x80] sm:$0xff]
  %v1239 = vld [vmem:[%s4 + $0x88] sm:$0xff]
  %v1240 = vld [vmem:[%s4 + $0x90] sm:$0xff]
  %v1241 = vld [vmem:[%s4 + $0x98] sm:$0xff]
  %v1242 = vld [vmem:[%s4 + $0xa0] sm:$0xff]
  %v1243 = vld [vmem:[%s4 + $0xa8] sm:$0xff]
  %v1244 = vld [vmem:[%s4 + $0xb0] sm:$0xff]
  %v1245 = vld [vmem:[%s4 + $0xb8] sm:$0xff]
  %v1246 = vld [vmem:[%s4 + $0xc0] sm:$0xff]
  %v1247 = vld [vmem:[%s4 + $0xc8] sm:$0xff]
  %v1248 = vld [vmem:[%s4 + $0xd0] sm:$0xff]
  %v1249 = vld [vmem:[%s4 + $0xd8] sm:$0xff]
  %v1250 = vld [vmem:[%s4 + $0xe0] sm:$0xff]
  %v1251 = vld [vmem:[%s4 + $0xe8] sm:$0xff]
  %v1252 = vld [vmem:[%s4 + $0xf0] sm:$0xff]
  %v1253 = vld [vmem:[%s4 + $0xf8] sm:$0xff]
  %1255 = vset.pattern.permute.xlu0 0
  %1256 = vperm.xlu0 %1255, %v1222
  %v1257 = vpop.permute.xlu0 %1256
  %1260 = vset.pattern.permute.xlu0 0
  %1261 = vperm.xlu0 %1260, %v1223
  %v1262 = vpop.permute.xlu0 %1261
  %1265 = vset.pattern.permute.xlu0 0
  %1266 = vperm.xlu0 %1265, %v1224
  %v1267 = vpop.permute.xlu0 %1266
  %1270 = vset.pattern.permute.xlu0 0
  %1271 = vperm.xlu0 %1270, %v1225
  %v1272 = vpop.permute.xlu0 %1271
  %1275 = vset.pattern.permute.xlu0 0
  %1276 = vperm.xlu0 %1275, %v1226
  %v1277 = vpop.permute.xlu0 %1276
  %1280 = vset.pattern.permute.xlu0 0
  %1281 = vperm.xlu0 %1280, %v1227
  %v1282 = vpop.permute.xlu0 %1281
  %1285 = vset.pattern.permute.xlu0 0
  %1286 = vperm.xlu0 %1285, %v1228
  %v1287 = vpop.permute.xlu0 %1286
  %1290 = vset.pattern.permute.xlu0 0
  %1291 = vperm.xlu0 %1290, %v1229
  %v1292 = vpop.permute.xlu0 %1291
  %1295 = vset.pattern.permute.xlu0 0
  %1296 = vperm.xlu0 %1295, %v1230
  %v1297 = vpop.permute.xlu0 %1296
  %1300 = vset.pattern.permute.xlu0 0
  %1301 = vperm.xlu0 %1300, %v1231
  %v1302 = vpop.permute.xlu0 %1301
  %1305 = vset.pattern.permute.xlu0 0
  %1306 = vperm.xlu0 %1305, %v1232
  %v1307 = vpop.permute.xlu0 %1306
  %1310 = vset.pattern.permute.xlu0 0
  %1311 = vperm.xlu0 %1310, %v1233
  %v1312 = vpop.permute.xlu0 %1311
  %1315 = vset.pattern.permute.xlu0 0
  %1316 = vperm.xlu0 %1315, %v1234
  %v1317 = vpop.permute.xlu0 %1316
  %1320 = vset.pattern.permute.xlu0 0
  %1321 = vperm.xlu0 %1320, %v1235
  %v1322 = vpop.permute.xlu0 %1321
  %1325 = vset.pattern.permute.xlu0 0
  %1326 = vperm.xlu0 %1325, %v1236
  %v1327 = vpop.permute.xlu0 %1326
  %1330 = vset.pattern.permute.xlu0 0
  %1331 = vperm.xlu0 %1330, %v1237
  %v1332 = vpop.permute.xlu0 %1331
  %1335 = vset.pattern.permute.xlu0 0
  %1336 = vperm.xlu0 %1335, %v1238
  %v1337 = vpop.permute.xlu0 %1336
  %1340 = vset.pattern.permute.xlu0 0
  %1341 = vperm.xlu0 %1340, %v1239
  %v1342 = vpop.permute.xlu0 %1341
  %1345 = vset.pattern.permute.xlu0 0
  %1346 = vperm.xlu0 %1345, %v1240
  %v1347 = vpop.permute.xlu0 %1346
  %1350 = vset.pattern.permute.xlu0 0
  %1351 = vperm.xlu0 %1350, %v1241
  %v1352 = vpop.permute.xlu0 %1351
  %1355 = vset.pattern.permute.xlu0 0
  %1356 = vperm.xlu0 %1355, %v1242
  %v1357 = vpop.permute.xlu0 %1356
  %1360 = vset.pattern.permute.xlu0 0
  %1361 = vperm.xlu0 %1360, %v1243
  %v1362 = vpop.permute.xlu0 %1361
  %1365 = vset.pattern.permute.xlu0 0
  %1366 = vperm.xlu0 %1365, %v1244
  %v1367 = vpop.permute.xlu0 %1366
  %1370 = vset.pattern.permute.xlu0 0
  %1371 = vperm.xlu0 %1370, %v1245
  %v1372 = vpop.permute.xlu0 %1371
  %1375 = vset.pattern.permute.xlu0 0
  %1376 = vperm.xlu0 %1375, %v1246
  %v1377 = vpop.permute.xlu0 %1376
  %1380 = vset.pattern.permute.xlu0 0
  %1381 = vperm.xlu0 %1380, %v1247
  %v1382 = vpop.permute.xlu0 %1381
  %1385 = vset.pattern.permute.xlu0 0
  %1386 = vperm.xlu0 %1385, %v1248
  %v1387 = vpop.permute.xlu0 %1386
  %1390 = vset.pattern.permute.xlu0 0
  %1391 = vperm.xlu0 %1390, %v1249
  %v1392 = vpop.permute.xlu0 %1391
  %1395 = vset.pattern.permute.xlu0 0
  %1396 = vperm.xlu0 %1395, %v1250
  %v1397 = vpop.permute.xlu0 %1396
  %1400 = vset.pattern.permute.xlu0 0
  %1401 = vperm.xlu0 %1400, %v1251
  %v1402 = vpop.permute.xlu0 %1401
  %1405 = vset.pattern.permute.xlu0 0
  %1406 = vperm.xlu0 %1405, %v1252
  %v1407 = vpop.permute.xlu0 %1406
  %1410 = vset.pattern.permute.xlu0 0
  %1411 = vperm.xlu0 %1410, %v1253
  %v1412 = vpop.permute.xlu0 %1411
  %1414 = vmatprep.subr.mxu0 0.0
  %1415 = vmatpush1.msra.mxu0 %v1141
  %1416 = vmatprep.subr.mxu0 0.0
  %1417 = vmatpush1.msra.mxu0 %v1140
  %1418 = vmatprep.subr.mxu0 0.0
  %1419 = vmatpush1.msra.mxu0 %v1139
  %1420 = vmatprep.subr.mxu0 0.0
  %1421 = vmatpush1.msra.mxu0 %v1138
  %1422 = vmatprep.subr.mxu0 0.0
  %1423 = vmatpush1.msra.mxu0 %v1137
  %1424 = vmatprep.subr.mxu0 0.0
  %1425 = vmatpush1.msra.mxu0 %v1136
  %1426 = vmatprep.subr.mxu0 0.0
  %1427 = vmatpush1.msra.mxu0 %v1135
  %1428 = vmatprep.subr.mxu0 0.0
  %1429 = vmatpush1.msra.mxu0 %v1134
  %1430 = vmatprep.subr.mxu0 0.0
  %1431 = vmatpush1.msra.mxu0 %v1133
  %1432 = vmatprep.subr.mxu0 0.0
  %1433 = vmatpush1.msra.mxu0 %v1132
  %1434 = vmatprep.subr.mxu0 0.0
  %1435 = vmatpush1.msra.mxu0 %v1131
  %1436 = vmatprep.subr.mxu0 0.0
  %1437 = vmatpush1.msra.mxu0 %v1130
  %1438 = vmatprep.subr.mxu0 0.0
  %1439 = vmatpush1.msra.mxu0 %v1129
  %1440 = vmatprep.subr.mxu0 0.0
  %1441 = vmatpush1.msra.mxu0 %v1128
  %1442 = vmatprep.subr.mxu0 0.0
  %1443 = vmatpush1.msra.mxu0 %v1127
  %1444 = vmatprep.subr.mxu0 0.0
  %1445 = vmatpush1.msra.mxu0 %v1126
  %1446 = vmatprep.subr.mxu0 0.0
  %1447 = vmatpush2.msra.mxu0 %v1157
  %1448 = vmatprep.subr.mxu0 0.0
  %1449 = vmatpush2.msra.mxu0 %v1156
  %1450 = vmatprep.subr.mxu0 0.0
  %1451 = vmatpush2.msra.mxu0 %v1155
  %1452 = vmatprep.subr.mxu0 0.0
  %1453 = vmatpush2.msra.mxu0 %v1154
  %1454 = vmatprep.subr.mxu0 0.0
  %1455 = vmatpush2.msra.mxu0 %v1153
  %1456 = vmatprep.subr.mxu0 0.0
  %1457 = vmatpush2.msra.mxu0 %v1152
  %1458 = vmatprep.subr.mxu0 0.0
  %1459 = vmatpush2.msra.mxu0 %v1151
  %1460 = vmatprep.subr.mxu0 0.0
  %1461 = vmatpush2.msra.mxu0 %v1150
  %1462 = vmatprep.subr.mxu0 0.0
  %1463 = vmatpush2.msra.mxu0 %v1149
  %1464 = vmatprep.subr.mxu0 0.0
  %1465 = vmatpush2.msra.mxu0 %v1148
  %1466 = vmatprep.subr.mxu0 0.0
  %1467 = vmatpush2.msra.mxu0 %v1147
  %1468 = vmatprep.subr.mxu0 0.0
  %1469 = vmatpush2.msra.mxu0 %v1146
  %1470 = vmatprep.subr.mxu0 0.0
  %1471 = vmatpush2.msra.mxu0 %v1145
  %1472 = vmatprep.subr.mxu0 0.0
  %1473 = vmatpush2.msra.mxu0 %v1144
  %1474 = vmatprep.subr.mxu0 0.0
  %1475 = vmatpush2.msra.mxu0 %v1143
  %1476 = vmatprep.subr.mxu0 0.0
  %1477 = vmatpush2.msra.mxu0 %v1142
  %1478 = vmatprep.mubr.f32.mxu0 %v1159
  %1479 = vmatmul.mubr.f32.gmra.mxu0 %v1158
  %v1480 = vpop.f32.mrf.mxu0
  %v1481 = vadd.f32 %v1257, %v1480
  %v1482 = vpop.f32.mrf.mxu0
  %1483 = vmatprep.mubr.f32.mxu0 %v1161
  %1484 = vmatmul.mubr.f32.gmra.mxu0 %v1160
  %v1485 = vpop.f32.mrf.mxu0
  %v1486 = vadd.f32 %v1262, %v1485
  %v1487 = vpop.f32.mrf.mxu0
  %1488 = vmatprep.mubr.f32.mxu0 %v1163
  %1489 = vmatmul.mubr.f32.gmra.mxu0 %v1162
  %v1490 = vpop.f32.mrf.mxu0
  %v1491 = vadd.f32 %v1267, %v1490
  %v1492 = vpop.f32.mrf.mxu0
  %1493 = vmatprep.mubr.f32.mxu0 %v1165
  %1494 = vmatmul.mubr.f32.gmra.mxu0 %v1164
  %v1495 = vpop.f32.mrf.mxu0
  %v1496 = vadd.f32 %v1272, %v1495
  %v1497 = vpop.f32.mrf.mxu0
  %1498 = vmatprep.mubr.f32.mxu0 %v1167
  %1499 = vmatmul.mubr.f32.gmra.mxu0 %v1166
  %v1500 = vpop.f32.mrf.mxu0
  %v1501 = vadd.f32 %v1277, %v1500
  %v1502 = vpop.f32.mrf.mxu0
  %1503 = vmatprep.mubr.f32.mxu0 %v1169
  %1504 = vmatmul.mubr.f32.gmra.mxu0 %v1168
  %v1505 = vpop.f32.mrf.mxu0
  %v1506 = vadd.f32 %v1282, %v1505
  %v1507 = vpop.f32.mrf.mxu0
  %1508 = vmatprep.mubr.f32.mxu0 %v1171
  %1509 = vmatmul.mubr.f32.gmra.mxu0 %v1170
  %v1510 = vpop.f32.mrf.mxu0
  %v1511 = vadd.f32 %v1287, %v1510
  %v1512 = vpop.f32.mrf.mxu0
  %1513 = vmatprep.mubr.f32.mxu0 %v1173
  %1514 = vmatmul.mubr.f32.gmra.mxu0 %v1172
  %v1515 = vpop.f32.mrf.mxu0
  %v1516 = vadd.f32 %v1292, %v1515
  %v1517 = vpop.f32.mrf.mxu0
  %1518 = vmatprep.mubr.f32.mxu0 %v1175
  %1519 = vmatmul.mubr.f32.gmra.mxu0 %v1174
  %v1520 = vpop.f32.mrf.mxu0
  %v1521 = vadd.f32 %v1297, %v1520
  %v1522 = vpop.f32.mrf.mxu0
  %1523 = vmatprep.mubr.f32.mxu0 %v1177
  %1524 = vmatmul.mubr.f32.gmra.mxu0 %v1176
  %v1525 = vpop.f32.mrf.mxu0
  %v1526 = vadd.f32 %v1302, %v1525
  %v1527 = vpop.f32.mrf.mxu0
  %1528 = vmatprep.mubr.f32.mxu0 %v1179
  %1529 = vmatmul.mubr.f32.gmra.mxu0 %v1178
  %v1530 = vpop.f32.mrf.mxu0
  %v1531 = vadd.f32 %v1307, %v1530
  %v1532 = vpop.f32.mrf.mxu0
  %1533 = vmatprep.mubr.f32.mxu0 %v1181
  %1534 = vmatmul.mubr.f32.gmra.mxu0 %v1180
  %v1535 = vpop.f32.mrf.mxu0
  %v1536 = vadd.f32 %v1312, %v1535
  %v1537 = vpop.f32.mrf.mxu0
  %1538 = vmatprep.mubr.f32.mxu0 %v1183
  %1539 = vmatmul.mubr.f32.gmra.mxu0 %v1182
  %v1540 = vpop.f32.mrf.mxu0
  %v1541 = vadd.f32 %v1317, %v1540
  %v1542 = vpop.f32.mrf.mxu0
  %1543 = vmatprep.mubr.f32.mxu0 %v1185
  %1544 = vmatmul.mubr.f32.gmra.mxu0 %v1184
  %v1545 = vpop.f32.mrf.mxu0
  %v1546 = vadd.f32 %v1322, %v1545
  %v1547 = vpop.f32.mrf.mxu0
  %1548 = vmatprep.mubr.f32.mxu0 %v1187
  %1549 = vmatmul.mubr.f32.gmra.mxu0 %v1186
  %v1550 = vpop.f32.mrf.mxu0
  %v1551 = vadd.f32 %v1327, %v1550
  %v1552 = vpop.f32.mrf.mxu0
  %1553 = vmatprep.mubr.f32.mxu0 %v1189
  %1554 = vmatmul.mubr.f32.gmra.mxu0 %v1188
  %v1555 = vpop.f32.mrf.mxu0
  %v1556 = vadd.f32 %v1332, %v1555
  %v1557 = vpop.f32.mrf.mxu0
  %1558 = vmatprep.mubr.f32.mxu0 %v1191
  %1559 = vmatmul.mubr.f32.gmra.mxu0 %v1190
  %v1560 = vpop.f32.mrf.mxu0
  %v1561 = vadd.f32 %v1337, %v1560
  %v1562 = vpop.f32.mrf.mxu0
  %1563 = vmatprep.mubr.f32.mxu0 %v1193
  %1564 = vmatmul.mubr.f32.gmra.mxu0 %v1192
  %v1565 = vpop.f32.mrf.mxu0
  %v1566 = vadd.f32 %v1342, %v1565
  %v1567 = vpop.f32.mrf.mxu0
  %1568 = vmatprep.mubr.f32.mxu0 %v1195
  %1569 = vmatmul.mubr.f32.gmra.mxu0 %v1194
  %v1570 = vpop.f32.mrf.mxu0
  %v1571 = vadd.f32 %v1347, %v1570
  %v1572 = vpop.f32.mrf.mxu0
  %1573 = vmatprep.mubr.f32.mxu0 %v1197
  %1574 = vmatmul.mubr.f32.gmra.mxu0 %v1196
  %v1575 = vpop.f32.mrf.mxu0
  %v1576 = vadd.f32 %v1352, %v1575
  %v1577 = vpop.f32.mrf.mxu0
  %1578 = vmatprep.mubr.f32.mxu0 %v1199
  %1579 = vmatmul.mubr.f32.gmra.mxu0 %v1198
  %v1580 = vpop.f32.mrf.mxu0
  %v1581 = vadd.f32 %v1357, %v1580
  %v1582 = vpop.f32.mrf.mxu0
  %1583 = vmatprep.mubr.f32.mxu0 %v1201
  %1584 = vmatmul.mubr.f32.gmra.mxu0 %v1200
  %v1585 = vpop.f32.mrf.mxu0
  %v1586 = vadd.f32 %v1362, %v1585
  %v1587 = vpop.f32.mrf.mxu0
  %1588 = vmatprep.mubr.f32.mxu0 %v1203
  %1589 = vmatmul.mubr.f32.gmra.mxu0 %v1202
  %v1590 = vpop.f32.mrf.mxu0
  %v1591 = vadd.f32 %v1367, %v1590
  %v1592 = vpop.f32.mrf.mxu0
  %1593 = vmatprep.mubr.f32.mxu0 %v1205
  %1594 = vmatmul.mubr.f32.gmra.mxu0 %v1204
  %v1595 = vpop.f32.mrf.mxu0
  %v1596 = vadd.f32 %v1372, %v1595
  %v1597 = vpop.f32.mrf.mxu0
  %1598 = vmatprep.mubr.f32.mxu0 %v1207
  %1599 = vmatmul.mubr.f32.gmra.mxu0 %v1206
  %v1600 = vpop.f32.mrf.mxu0
  %v1601 = vadd.f32 %v1377, %v1600
  %v1602 = vpop.f32.mrf.mxu0
  %1603 = vmatprep.mubr.f32.mxu0 %v1209
  %1604 = vmatmul.mubr.f32.gmra.mxu0 %v1208
  %v1605 = vpop.f32.mrf.mxu0
  %v1606 = vadd.f32 %v1382, %v1605
  %v1607 = vpop.f32.mrf.mxu0
  %1608 = vmatprep.mubr.f32.mxu0 %v1211
  %1609 = vmatmul.mubr.f32.gmra.mxu0 %v1210
  %v1610 = vpop.f32.mrf.mxu0
  %v1611 = vadd.f32 %v1387, %v1610
  %v1612 = vpop.f32.mrf.mxu0
  %1613 = vmatprep.mubr.f32.mxu0 %v1213
  %1614 = vmatmul.mubr.f32.gmra.mxu0 %v1212
  %v1615 = vpop.f32.mrf.mxu0
  %v1616 = vadd.f32 %v1392, %v1615
  %v1617 = vpop.f32.mrf.mxu0
  %1618 = vmatprep.mubr.f32.mxu0 %v1215
  %1619 = vmatmul.mubr.f32.gmra.mxu0 %v1214
  %v1620 = vpop.f32.mrf.mxu0
  %v1621 = vadd.f32 %v1397, %v1620
  %v1622 = vpop.f32.mrf.mxu0
  %1623 = vmatprep.mubr.f32.mxu0 %v1217
  %1624 = vmatmul.mubr.f32.gmra.mxu0 %v1216
  %v1625 = vpop.f32.mrf.mxu0
  %v1626 = vadd.f32 %v1402, %v1625
  %v1627 = vpop.f32.mrf.mxu0
  %1628 = vmatprep.mubr.f32.mxu0 %v1219
  %1629 = vmatmul.mubr.f32.gmra.mxu0 %v1218
  %v1630 = vpop.f32.mrf.mxu0
  %v1631 = vadd.f32 %v1407, %v1630
  %v1632 = vpop.f32.mrf.mxu0
  %1633 = vmatprep.mubr.f32.mxu0 %v1221
  %1634 = vmatmul.mubr.f32.gmra.mxu0 %v1220
  %v1635 = vpop.f32.mrf.mxu0
  %v1636 = vadd.f32 %v1412, %v1635
  %v1637 = vpop.f32.mrf.mxu0
  %1638 = vdwg.mxu0
  %v1639 = vmax.f32 %v1481, 0.0
  %v1640 = vmax.f32 %v1486, 0.0
  %v1641 = vmax.f32 %v1491, 0.0
  %v1642 = vmax.f32 %v1496, 0.0
  %v1643 = vmax.f32 %v1501, 0.0
  %v1644 = vmax.f32 %v1506, 0.0
  %v1645 = vmax.f32 %v1511, 0.0
  %v1646 = vmax.f32 %v1516, 0.0
  %v1647 = vmax.f32 %v1521, 0.0
  %v1648 = vmax.f32 %v1526, 0.0
  %v1649 = vmax.f32 %v1531, 0.0
  %v1650 = vmax.f32 %v1536, 0.0
  %v1651 = vmax.f32 %v1541, 0.0
  %v1652 = vmax.f32 %v1546, 0.0
  %v1653 = vmax.f32 %v1551, 0.0
  %v1654 = vmax.f32 %v1556, 0.0
  %v1655 = vmax.f32 %v1561, 0.0
  %v1656 = vmax.f32 %v1566, 0.0
  %v1657 = vmax.f32 %v1571, 0.0
  %v1658 = vmax.f32 %v1576, 0.0
  %v1659 = vmax.f32 %v1581, 0.0
  %v1660 = vmax.f32 %v1586, 0.0
  %v1661 = vmax.f32 %v1591, 0.0
  %v1662 = vmax.f32 %v1596, 0.0
  %v1663 = vmax.f32 %v1601, 0.0
  %v1664 = vmax.f32 %v1606, 0.0
  %v1665 = vmax.f32 %v1611, 0.0
  %v1666 = vmax.f32 %v1616, 0.0
  %v1667 = vmax.f32 %v1621, 0.0
  %v1668 = vmax.f32 %v1626, 0.0
  %v1669 = vmax.f32 %v1631, 0.0
  %v1670 = vmax.f32 %v1636, 0.0
  %v1671 = vmax.f32 %v1639, %v1643
  %v1672 = vmax.f32 %v1640, %v1644
  %v1673 = vmax.f32 %v1641, %v1645
  %v1674 = vmax.f32 %v1642, %v1646
  %v1675 = vmax.f32 %v1647, %v1651
  %v1676 = vmax.f32 %v1648, %v1652
  %v1677 = vmax.f32 %v1649, %v1653
  %v1678 = vmax.f32 %v1650, %v1654
  %v1679 = vmax.f32 %v1655, %v1659
  %v1680 = vmax.f32 %v1656, %v1660
  %v1681 = vmax.f32 %v1657, %v1661
  %v1682 = vmax.f32 %v1658, %v1662
  %v1683 = vmax.f32 %v1663, %v1667
  %v1684 = vmax.f32 %v1664, %v1668
  %v1685 = vmax.f32 %v1665, %v1669
  %v1686 = vmax.f32 %v1666, %v1670
  %v1687 = vld [vmem:[%s5] sm:$0x1]
  %v1688 = vld [vmem:[#allocation2] sm:$0x1]
  %1690 = vset.pattern.permute.xlu0 0
  %1691 = vperm.xlu0 %1690, %v1688
  %v1692 = vpop.permute.xlu0 %1691
  %v1694 = vlaneseq
  %v1695 = vshrl.u32 %v1694, 7
  %v1696 = vsub.s32 0, %v1695
  %v1697 = vrot.slane %v1692, %v1696
  %1698 = vmatprep.subr.mxu0 0.0
  %1699 = vmatpush1.msra.mxu0 %v1686
  %1700 = vmatprep.subr.mxu0 0.0
  %1701 = vmatpush1.msra.mxu0 %v1685
  %1702 = vmatprep.subr.mxu0 0.0
  %1703 = vmatpush1.msra.mxu0 %v1684
  %1704 = vmatprep.subr.mxu0 0.0
  %1705 = vmatpush1.msra.mxu0 %v1683
  %1706 = vmatprep.subr.mxu0 0.0
  %1707 = vmatpush1.msra.mxu0 %v1682
  %1708 = vmatprep.subr.mxu0 0.0
  %1709 = vmatpush1.msra.mxu0 %v1681
  %1710 = vmatprep.subr.mxu0 0.0
  %1711 = vmatpush1.msra.mxu0 %v1680
  %1712 = vmatprep.subr.mxu0 0.0
  %1713 = vmatpush1.msra.mxu0 %v1679
  %1714 = vmatprep.subr.mxu0 0.0
  %1715 = vmatpush1.msra.mxu0 %v1678
  %1716 = vmatprep.subr.mxu0 0.0
  %1717 = vmatpush1.msra.mxu0 %v1677
  %1718 = vmatprep.subr.mxu0 0.0
  %1719 = vmatpush1.msra.mxu0 %v1676
  %1720 = vmatprep.subr.mxu0 0.0
  %1721 = vmatpush1.msra.mxu0 %v1675
  %1722 = vmatprep.subr.mxu0 0.0
  %1723 = vmatpush1.msra.mxu0 %v1674
  %1724 = vmatprep.subr.mxu0 0.0
  %1725 = vmatpush1.msra.mxu0 %v1673
  %1726 = vmatprep.subr.mxu0 0.0
  %1727 = vmatpush1.msra.mxu0 %v1672
  %1728 = vmatprep.subr.mxu0 0.0
  %1729 = vmatpush1.msra.mxu0 %v1671
  %1730 = vmatprep.subr.mxu0 0.0
  %1731 = vmatpush2.msra.mxu0 0.0
  %1732 = vmatprep.subr.mxu0 0.0
  %1733 = vmatpush2.msra.mxu0 0.0
  %1734 = vmatprep.subr.mxu0 0.0
  %1735 = vmatpush2.msra.mxu0 0.0
  %1736 = vmatprep.subr.mxu0 0.0
  %1737 = vmatpush2.msra.mxu0 0.0
  %1738 = vmatprep.subr.mxu0 0.0
  %1739 = vmatpush2.msra.mxu0 0.0
  %1740 = vmatprep.subr.mxu0 0.0
  %1741 = vmatpush2.msra.mxu0 0.0
  %1742 = vmatprep.subr.mxu0 0.0
  %1743 = vmatpush2.msra.mxu0 0.0
  %1744 = vmatprep.subr.mxu0 0.0
  %1745 = vmatpush2.msra.mxu0 0.0
  %1746 = vmatprep.subr.mxu0 0.0
  %1747 = vmatpush2.msra.mxu0 0.0
  %1748 = vmatprep.subr.mxu0 0.0
  %1749 = vmatpush2.msra.mxu0 0.0
  %1750 = vmatprep.subr.mxu0 0.0
  %1751 = vmatpush2.msra.mxu0 0.0
  %1752 = vmatprep.subr.mxu0 0.0
  %1753 = vmatpush2.msra.mxu0 0.0
  %1754 = vmatprep.subr.mxu0 0.0
  %1755 = vmatpush2.msra.mxu0 0.0
  %1756 = vmatprep.subr.mxu0 0.0
  %1757 = vmatpush2.msra.mxu0 0.0
  %1758 = vmatprep.subr.mxu0 0.0
  %1759 = vmatpush2.msra.mxu0 0.0
  %1760 = vmatprep.subr.mxu0 0.0
  %1761 = vmatpush2.msra.mxu0 0.0
  %1762 = vmatprep.mubr.f32.mxu0 0.0
  %1763 = vmatmul.mubr.f32.gmra.mxu0 %v1687
  %v1764 = vpop.f32.mrf.mxu0
  %v1765 = vadd.f32 %v1697, %v1764
  %v1766 = vpop.f32.mrf.mxu0
  %1767 = vdwg.mxu0
  %v1768 = vand.u32 2147483647, %v1765
  %v1769 = vsub.f32 0.0, %v1768
  %v1770 = vmul.f32 %v1769, 1.442695
  %v1771 = vpow.pop %v1770
  %vm1772 = vcmp.ge.f32.partialorder %v1765, 0.0
  %v1773 = vadd.f32 %v1771, 1.0
  %v1774 = vrcp.pop %v1773
  %v1775 = vmul.f32 1.0, %v1774
  %v1776 = vmul.f32 %v1771, %v1774
  %v1777 = vsel %vm1772, %v1775, %v1776
  %1778 = vst [vmem:[%s7] sm:$0x1] %v1777
  // Predicated region
  $region30: #{cnn_forward.1} parent=0 // pred_check
    _
  $region31: #{cnn_forward.1} parent=0 // pred_check_branch
    %1780 = sbr.rel (0) target = $region33
  $region32: #{cnn_forward.1} parent=0 // pred_region
    _
  $region33: #{cnn_forward.1} parent=0 // pred_fallthru
    _
  // Predicated region
  $region34: #{cnn_forward.1} parent=0 // pred_check
    _
  $region35: #{cnn_forward.1} parent=0 // pred_check_branch
    %1782 = sbr.rel (0) target = $region37
  $region36: #{cnn_forward.1} parent=0 // pred_region
    _
  $region37: #{cnn_forward.1} parent=0 // pred_fallthru
    _

</llo_original>
